<compile_context>
chip_gen: v5e
topology: v5e:2x2
jax: 0.10.0
libtpu: 0.0.40
codegen_flags: <defaults>
</compile_context>

<pallas_src>
import jax
import jax.numpy as jnp
from jax.experimental import pallas as pl
from jax.experimental.pallas import tpu as pltpu


# ---------------------------------------------------------------------------
# In-kernel helpers (all operate on 2-D values: channels on sublanes, length on lanes)
# ---------------------------------------------------------------------------

def _shift_matrix(L, s):
    # T[i, j] = 1 iff i == j + s   =>   (x @ T)[:, j] = x[:, j + s]  (0 outside [0, L))
    ri = jax.lax.broadcasted_iota(jnp.int32, (L, L), 0)
    ci = jax.lax.broadcasted_iota(jnp.int32, (L, L), 1)
    return (ri == ci + s).astype(jnp.float32)


def _pool_select(L, offset):
    # S[i, j] = 1 iff i == 2*j + offset   =>   (x @ S)[:, j] = x[:, 2*j + offset]
    ri = jax.lax.broadcasted_iota(jnp.int32, (L, L // 2), 0)
    ci = jax.lax.broadcasted_iota(jnp.int32, (L, L // 2), 1)
    return (ri == 2 * ci + offset).astype(jnp.float32)


def _conv1d_relu(x, w_ref, b_ref):
    # x: (Cin, L) f32.  w_ref: (K, Cout, Cin) Ref.  b_ref: (Cout, 1) Ref.
    K, Cout, Cin = w_ref.shape
    L = x.shape[1]
    pad = K // 2
    acc = jnp.zeros((Cout, L), jnp.float32)
    for k in range(K):                      # static, unrolled (K = 5)
        s = k - pad
        xs = x if s == 0 else jnp.dot(
            x, _shift_matrix(L, s), preferred_element_type=jnp.float32)
        wk = w_ref[k]                       # (Cout, Cin)
        if Cin == 1:
            acc = acc + wk * xs             # (Cout,1)*(1,L) broadcast outer product
        else:
            acc = acc + jnp.dot(wk, xs, preferred_element_type=jnp.float32)
    return jnp.maximum(acc + b_ref[...], 0.0)   # bias + ReLU (Dropout = identity)


def _maxpool2(h):
    # MaxPool1d(kernel=2, stride=2): (C, L) -> (C, L//2)
    L = h.shape[1]
    even = jnp.dot(h, _pool_select(L, 0), preferred_element_type=jnp.float32)
    odd = jnp.dot(h, _pool_select(L, 1), preferred_element_type=jnp.float32)
    return jnp.maximum(even, odd)


# ---------------------------------------------------------------------------
# Kernel 1: conv feature extractor (grid over batch)
# ---------------------------------------------------------------------------

def _conv_feature_kernel(x_ref, w0_ref, b0_ref, w1_ref, b1_ref, w2_ref, b2_ref,
                         out_ref):
    x = x_ref[0].astype(jnp.float32)            # (1, 128)
    h = _conv1d_relu(x, w0_ref, b0_ref)         # (8, 128)
    h = _maxpool2(h)                            # (8, 64)
    h = _conv1d_relu(h, w1_ref, b1_ref)         # (32, 64)
    h = _maxpool2(h)                            # (32, 32)
    h = _conv1d_relu(h, w2_ref, b2_ref)         # (64, 32)
    h = _maxpool2(h)                            # (64, 16)
    out_ref[0] = h.astype(out_ref.dtype)


# ---------------------------------------------------------------------------
# Kernel 2: fused fully-connected head
# ---------------------------------------------------------------------------

def _fc_head_kernel(f_ref, w0, b0, w1, b1, w2, b2, w3, b3, w4, b4, out_ref):
    z = f_ref[...].astype(jnp.float32)                                      # (B, 1024)
    z = jnp.dot(z, w0[...], preferred_element_type=jnp.float32) + b0[...]   # (B, 512)
    z = jnp.dot(z, w1[...], preferred_element_type=jnp.float32) + b1[...]   # (B, 256)
    z = jnp.dot(z, w2[...], preferred_element_type=jnp.float32) + b2[...]   # (B, 128)
    z = jnp.maximum(z, 0.0)
    z = jnp.dot(z, w3[...], preferred_element_type=jnp.float32) + b3[...]   # (B, 64)
    z = jnp.maximum(z, 0.0)
    z = jnp.dot(z, w4[...], preferred_element_type=jnp.float32) + b4[...]   # (B, 1)
    out_ref[...] = (1.0 / (1.0 + jnp.exp(-z))).astype(out_ref.dtype)        # sigmoid


# ---------------------------------------------------------------------------
# Wrapper
# ---------------------------------------------------------------------------

def simple1d_cnn_forward(x, params):
    """x: (B, 1, L) with L = 128.  params laid out like the PyTorch module."""
    ((cw0, cb0), (cw1, cb1), (cw2, cb2),
     (lw0, lb0), (lw1, lb1), (lw2, lb2), (lw3, lb3), (lw4, lb4)) = params

    B, Cin, L = x.shape
    C2 = cw2.shape[0]          # 64
    Lf = L // 8                # 16

    # --- Kernel 1: conv blocks, grid over batch (parallel => uses both TCs on v7x) ---
    w0t = jnp.transpose(cw0, (2, 0, 1)).astype(jnp.float32)    # (K, 8, 1)
    w1t = jnp.transpose(cw1, (2, 0, 1)).astype(jnp.float32)    # (K, 32, 8)
    w2t = jnp.transpose(cw2, (2, 0, 1)).astype(jnp.float32)    # (K, 64, 32)
    b0c = cb0.reshape(-1, 1).astype(jnp.float32)
    b1c = cb1.reshape(-1, 1).astype(jnp.float32)
    b2c = cb2.reshape(-1, 1).astype(jnp.float32)

    def full_spec(shape):
        return pl.BlockSpec(shape, lambda b: (0,) * len(shape))

    feats = pl.pallas_call(
        _conv_feature_kernel,
        out_shape=jax.ShapeDtypeStruct((B, C2, Lf), jnp.float32),
        grid_spec=pltpu.PrefetchScalarGridSpec(
            num_scalar_prefetch=0,
            grid=(B,),
            in_specs=[
                pl.BlockSpec((1, Cin, L), lambda b: (b, 0, 0)),
                full_spec(w0t.shape), full_spec(b0c.shape),
                full_spec(w1t.shape), full_spec(b1c.shape),
                full_spec(w2t.shape), full_spec(b2c.shape),
            ],
            out_specs=pl.BlockSpec((1, C2, Lf), lambda b: (b, 0, 0)),
        ),
        compiler_params=pltpu.CompilerParams(
            dimension_semantics=("parallel",)),
    )(x, w0t, b0c, w1t, b1c, w2t, b2c)

    # Flatten (B, 64, 16) -> (B, 1024); channel-major, identical to torch.nn.Flatten.
    f = feats.reshape(B, C2 * Lf)

    # --- Kernel 2: fused FC head (all weights resident in VMEM) ---
    fc_ins = []
    for w, b in ((lw0, lb0), (lw1, lb1), (lw2, lb2), (lw3, lb3), (lw4, lb4)):
        fc_ins.append(jnp.transpose(w).astype(jnp.float32))    # (in, out)
        fc_ins.append(b.reshape(1, -1).astype(jnp.float32))    # (1, out)

    def full_spec2(shape):
        return pl.BlockSpec(shape, lambda i: (0,) * len(shape))

    out = pl.pallas_call(
        _fc_head_kernel,
        out_shape=jax.ShapeDtypeStruct((B, 1), jnp.float32),
        grid_spec=pltpu.PrefetchScalarGridSpec(
            num_scalar_prefetch=0,
            grid=(1,),
            in_specs=[full_spec2(f.shape)] + [full_spec2(a.shape) for a in fc_ins],
            out_specs=full_spec2((B, 1)),
        ),
        compiler_params=pltpu.CompilerParams(
            dimension_semantics=("arbitrary",)),
    )(f, *fc_ins)
    return out


# ---------------------------------------------------------------------------
# Pure-JAX reference (same math as the PyTorch module, eval mode)
# ---------------------------------------------------------------------------

def reference_forward(x, params):
    ((cw0, cb0), (cw1, cb1), (cw2, cb2),
     fcs0, fcs1, fcs2, fcs3, fcs4) = params

    def conv(h, w, b):
        K = w.shape[2]
        pad = K // 2
        L = h.shape[2]
        hp = jnp.pad(h, ((0, 0), (0, 0), (pad, pad)))
        out = sum(jnp.einsum('oc,bcl->bol', w[:, :, k], hp[:, :, k:k + L],
                             precision=jax.lax.Precision.HIGHEST)
                  for k in range(K))
        return jax.nn.relu(out + b[None, :, None])

    def pool(h):
        B, C, L = h.shape
        return jnp.max(h.reshape(B, C, L // 2, 2), axis=-1)

    h = pool(conv(x, cw0, cb0))
    h = pool(conv(h, cw1, cb1))
    h = pool(conv(h, cw2, cb2))
    z = h.reshape(x.shape[0], -1)
    for i, (w, b) in enumerate((fcs0, fcs1, fcs2, fcs3, fcs4)):
        z = jnp.dot(z, w.T, precision=jax.lax.Precision.HIGHEST) + b[None, :]
        if i in (2, 3):
            z = jax.nn.relu(z)
    return jax.nn.sigmoid(z)


# ---------------------------------------------------------------------------
# Demo / self-check
# ---------------------------------------------------------------------------

if __name__ == "__main__":
    key = jax.random.PRNGKey(0)
    init_features = 8
    L = 128
    B = 2
    K = 5

    def conv_init(k, cin, cout, klen):
        kw, kb = jax.random.split(k)
        scale = 1.0 / jnp.sqrt(jnp.float32(cin * klen))
        w = jax.random.uniform(kw, (cout, cin, klen), jnp.float32, -scale, scale)
        b = jax.random.uniform(kb, (cout,), jnp.float32, -scale, scale)
        return w, b

    def dense_init(k, fan_in, fan_out):
        kw, kb = jax.random.split(k)
        scale = 1.0 / jnp.sqrt(jnp.float32(fan_in))
        w = jax.random.uniform(kw, (fan_out, fan_in), jnp.float32, -scale, scale)
        b = jax.random.uniform(kb, (fan_out,), jnp.float32, -scale, scale)
        return w, b

    keys = jax.random.split(key, 9)
    params = (
        conv_init(keys[0], 1, init_features, K),
        conv_init(keys[1], init_features, init_features * 4, K),
        conv_init(keys[2], init_features * 4, init_features * 8, K),
        dense_init(keys[3], (L // 8) * init_features * 8, 512),
        dense_init(keys[4], 512, 256),
        dense_init(keys[5], 256, 128),
        dense_init(keys[6], 128, 64),
        dense_init(keys[7], 64, 1),
    )
    x = jax.random.normal(keys[8], (B, 1, L), dtype=jnp.float32)

    out = jax.jit(simple1d_cnn_forward)(x, params)
    jax.block_until_ready(out)

    ref = reference_forward(x, params)
    assert out.shape == (B, 1), out.shape
    assert bool(jnp.all(jnp.isfinite(out)))
    max_err = float(jnp.max(jnp.abs(out - ref)))
    assert max_err < 1e-2, (max_err, out, ref)

    print("KERNEL_OK")
</pallas_src>

<mosaic_0001>
module attributes {stable_mosaic.version = 11 : i64} {
  func.func @_conv_feature_kernel(%arg0: i32, %arg1: memref<1x1x128xf32, #tpu.memory_space<vmem>>, %arg2: memref<5x8x1xf32, #tpu.memory_space<vmem>>, %arg3: memref<8x1xf32, #tpu.memory_space<vmem>>, %arg4: memref<5x32x8xf32, #tpu.memory_space<vmem>>, %arg5: memref<32x1xf32, #tpu.memory_space<vmem>>, %arg6: memref<5x64x32xf32, #tpu.memory_space<vmem>>, %arg7: memref<64x1xf32, #tpu.memory_space<vmem>>, %arg8: memref<1x64x16xf32, #tpu.memory_space<vmem>>) attributes {dimension_semantics = [#tpu.dimension_semantics<parallel>], iteration_bounds = array<i64: 2>, scalar_prefetch = 0 : i64, scratch_operands = 0 : i64, tpu.core_type = #tpu.core_type<tc>, window_params = [{transform_indices = @transform_0, window_bounds = array<i64: 1, 1, 128>}, {pipeline_mode = #tpu.pipeline_mode<synchronous>, transform_indices = @transform_1, window_bounds = array<i64: 5, 8, 1>}, {pipeline_mode = #tpu.pipeline_mode<synchronous>, transform_indices = @transform_2, window_bounds = array<i64: 8, 1>}, {pipeline_mode = #tpu.pipeline_mode<synchronous>, transform_indices = @transform_3, window_bounds = array<i64: 5, 32, 8>}, {pipeline_mode = #tpu.pipeline_mode<synchronous>, transform_indices = @transform_4, window_bounds = array<i64: 32, 1>}, {pipeline_mode = #tpu.pipeline_mode<synchronous>, transform_indices = @transform_5, window_bounds = array<i64: 5, 64, 32>}, {pipeline_mode = #tpu.pipeline_mode<synchronous>, transform_indices = @transform_6, window_bounds = array<i64: 64, 1>}, {transform_indices = @transform_7, window_bounds = array<i64: 1, 64, 16>}]} {
    %c0 = arith.constant 0 : index
    %c0_0 = arith.constant 0 : index
    %c0_1 = arith.constant 0 : index
    %0 = vector.load %arg1[%c0, %c0_0, %c0_1] : memref<1x1x128xf32, #tpu.memory_space<vmem>>, vector<1x1x128xf32>
    %1 = vector.shape_cast %0 : vector<1x1x128xf32> to vector<1x128xf32>
    %cst = arith.constant 0.000000e+00 : f32
    %2 = vector.broadcast %cst : f32 to vector<8x128xf32>
    %3 = tpu.iota {dimensions = array<i32: 0>} : vector<128x128xi32>
    %4 = tpu.iota {dimensions = array<i32: 1>} : vector<128x128xi32>
    %c-2_i32 = arith.constant -2 : i32
    %5 = vector.broadcast %c-2_i32 : i32 to vector<128x128xi32>
    %6 = arith.addi %4, %5 : vector<128x128xi32>
    %7 = arith.cmpi eq, %3, %6 : vector<128x128xi32>
    %8 = arith.extui %7 : vector<128x128xi1> to vector<128x128xi32>
    %9 = arith.sitofp %8 : vector<128x128xi32> to vector<128x128xf32>
    %cst_2 = arith.constant dense<0.000000e+00> : vector<1x128xf32>
    %10 = tpu.matmul %1, %9, %cst_2 {dimension_numbers = #tpu.dot_dimension_numbers<[1], [0], [0], [1], [0, 0, 1, 1], [], []>} : vector<1x128xf32>, vector<128x128xf32>, vector<1x128xf32> -> vector<1x128xf32>
    %c0_3 = arith.constant 0 : index
    %c0_4 = arith.constant 0 : index
    %c0_5 = arith.constant 0 : index
    %11 = vector.load %arg2[%c0_3, %c0_4, %c0_5] : memref<5x8x1xf32, #tpu.memory_space<vmem>>, vector<1x8x1xf32>
    %12 = vector.shape_cast %11 : vector<1x8x1xf32> to vector<8x1xf32>
    %13 = vector.broadcast %12 : vector<8x1xf32> to vector<8x128xf32>
    %14 = vector.broadcast %10 : vector<1x128xf32> to vector<8x128xf32>
    %15 = arith.mulf %13, %14 : vector<8x128xf32>
    %16 = arith.addf %2, %15 : vector<8x128xf32>
    %17 = tpu.iota {dimensions = array<i32: 0>} : vector<128x128xi32>
    %18 = tpu.iota {dimensions = array<i32: 1>} : vector<128x128xi32>
    %c-1_i32 = arith.constant -1 : i32
    %19 = vector.broadcast %c-1_i32 : i32 to vector<128x128xi32>
    %20 = arith.addi %18, %19 : vector<128x128xi32>
    %21 = arith.cmpi eq, %17, %20 : vector<128x128xi32>
    %22 = arith.extui %21 : vector<128x128xi1> to vector<128x128xi32>
    %23 = arith.sitofp %22 : vector<128x128xi32> to vector<128x128xf32>
    %cst_6 = arith.constant dense<0.000000e+00> : vector<1x128xf32>
    %24 = tpu.matmul %1, %23, %cst_6 {dimension_numbers = #tpu.dot_dimension_numbers<[1], [0], [0], [1], [0, 0, 1, 1], [], []>} : vector<1x128xf32>, vector<128x128xf32>, vector<1x128xf32> -> vector<1x128xf32>
    %c1 = arith.constant 1 : index
    %c0_7 = arith.constant 0 : index
    %c0_8 = arith.constant 0 : index
    %25 = vector.load %arg2[%c1, %c0_7, %c0_8] : memref<5x8x1xf32, #tpu.memory_space<vmem>>, vector<1x8x1xf32>
    %26 = vector.shape_cast %25 : vector<1x8x1xf32> to vector<8x1xf32>
    %27 = vector.broadcast %26 : vector<8x1xf32> to vector<8x128xf32>
    %28 = vector.broadcast %24 : vector<1x128xf32> to vector<8x128xf32>
    %29 = arith.mulf %27, %28 : vector<8x128xf32>
    %30 = arith.addf %16, %29 : vector<8x128xf32>
    %c2 = arith.constant 2 : index
    %c0_9 = arith.constant 0 : index
    %c0_10 = arith.constant 0 : index
    %31 = vector.load %arg2[%c2, %c0_9, %c0_10] : memref<5x8x1xf32, #tpu.memory_space<vmem>>, vector<1x8x1xf32>
    %32 = vector.shape_cast %31 : vector<1x8x1xf32> to vector<8x1xf32>
    %33 = vector.broadcast %32 : vector<8x1xf32> to vector<8x128xf32>
    %34 = vector.broadcast %1 : vector<1x128xf32> to vector<8x128xf32>
    %35 = arith.mulf %33, %34 : vector<8x128xf32>
    %36 = arith.addf %30, %35 : vector<8x128xf32>
    %37 = tpu.iota {dimensions = array<i32: 0>} : vector<128x128xi32>
    %38 = tpu.iota {dimensions = array<i32: 1>} : vector<128x128xi32>
    %c1_i32 = arith.constant 1 : i32
    %39 = vector.broadcast %c1_i32 : i32 to vector<128x128xi32>
    %40 = arith.addi %38, %39 : vector<128x128xi32>
    %41 = arith.cmpi eq, %37, %40 : vector<128x128xi32>
    %42 = arith.extui %41 : vector<128x128xi1> to vector<128x128xi32>
    %43 = arith.sitofp %42 : vector<128x128xi32> to vector<128x128xf32>
    %cst_11 = arith.constant dense<0.000000e+00> : vector<1x128xf32>
    %44 = tpu.matmul %1, %43, %cst_11 {dimension_numbers = #tpu.dot_dimension_numbers<[1], [0], [0], [1], [0, 0, 1, 1], [], []>} : vector<1x128xf32>, vector<128x128xf32>, vector<1x128xf32> -> vector<1x128xf32>
    %c3 = arith.constant 3 : index
    %c0_12 = arith.constant 0 : index
    %c0_13 = arith.constant 0 : index
    %45 = vector.load %arg2[%c3, %c0_12, %c0_13] : memref<5x8x1xf32, #tpu.memory_space<vmem>>, vector<1x8x1xf32>
    %46 = vector.shape_cast %45 : vector<1x8x1xf32> to vector<8x1xf32>
    %47 = vector.broadcast %46 : vector<8x1xf32> to vector<8x128xf32>
    %48 = vector.broadcast %44 : vector<1x128xf32> to vector<8x128xf32>
    %49 = arith.mulf %47, %48 : vector<8x128xf32>
    %50 = arith.addf %36, %49 : vector<8x128xf32>
    %51 = tpu.iota {dimensions = array<i32: 0>} : vector<128x128xi32>
    %52 = tpu.iota {dimensions = array<i32: 1>} : vector<128x128xi32>
    %c2_i32 = arith.constant 2 : i32
    %53 = vector.broadcast %c2_i32 : i32 to vector<128x128xi32>
    %54 = arith.addi %52, %53 : vector<128x128xi32>
    %55 = arith.cmpi eq, %51, %54 : vector<128x128xi32>
    %56 = arith.extui %55 : vector<128x128xi1> to vector<128x128xi32>
    %57 = arith.sitofp %56 : vector<128x128xi32> to vector<128x128xf32>
    %cst_14 = arith.constant dense<0.000000e+00> : vector<1x128xf32>
    %58 = tpu.matmul %1, %57, %cst_14 {dimension_numbers = #tpu.dot_dimension_numbers<[1], [0], [0], [1], [0, 0, 1, 1], [], []>} : vector<1x128xf32>, vector<128x128xf32>, vector<1x128xf32> -> vector<1x128xf32>
    %c4 = arith.constant 4 : index
    %c0_15 = arith.constant 0 : index
    %c0_16 = arith.constant 0 : index
    %59 = vector.load %arg2[%c4, %c0_15, %c0_16] : memref<5x8x1xf32, #tpu.memory_space<vmem>>, vector<1x8x1xf32>
    %60 = vector.shape_cast %59 : vector<1x8x1xf32> to vector<8x1xf32>
    %61 = vector.broadcast %60 : vector<8x1xf32> to vector<8x128xf32>
    %62 = vector.broadcast %58 : vector<1x128xf32> to vector<8x128xf32>
    %63 = arith.mulf %61, %62 : vector<8x128xf32>
    %64 = arith.addf %50, %63 : vector<8x128xf32>
    %c0_17 = arith.constant 0 : index
    %c0_18 = arith.constant 0 : index
    %65 = vector.load %arg3[%c0_17, %c0_18] : memref<8x1xf32, #tpu.memory_space<vmem>>, vector<8x1xf32>
    %66 = vector.broadcast %65 : vector<8x1xf32> to vector<8x128xf32>
    %67 = arith.addf %64, %66 : vector<8x128xf32>
    %cst_19 = arith.constant 0.000000e+00 : f32
    %68 = vector.broadcast %cst_19 : f32 to vector<8x128xf32>
    %69 = arith.maximumf %67, %68 : vector<8x128xf32>
    %70 = tpu.iota {dimensions = array<i32: 0>} : vector<128x64xi32>
    %71 = tpu.iota {dimensions = array<i32: 1>} : vector<128x64xi32>
    %c2_i32_20 = arith.constant 2 : i32
    %72 = vector.broadcast %c2_i32_20 : i32 to vector<128x64xi32>
    %73 = arith.muli %72, %71 : vector<128x64xi32>
    %c0_i32 = arith.constant 0 : i32
    %74 = vector.broadcast %c0_i32 : i32 to vector<128x64xi32>
    %75 = arith.addi %73, %74 : vector<128x64xi32>
    %76 = arith.cmpi eq, %70, %75 : vector<128x64xi32>
    %77 = arith.extui %76 : vector<128x64xi1> to vector<128x64xi32>
    %78 = arith.sitofp %77 : vector<128x64xi32> to vector<128x64xf32>
    %cst_21 = arith.constant dense<0.000000e+00> : vector<8x64xf32>
    %79 = tpu.matmul %69, %78, %cst_21 {dimension_numbers = #tpu.dot_dimension_numbers<[1], [0], [0], [1], [0, 0, 1, 1], [], []>} : vector<8x128xf32>, vector<128x64xf32>, vector<8x64xf32> -> vector<8x64xf32>
    %80 = tpu.iota {dimensions = array<i32: 0>} : vector<128x64xi32>
    %81 = tpu.iota {dimensions = array<i32: 1>} : vector<128x64xi32>
    %c2_i32_22 = arith.constant 2 : i32
    %82 = vector.broadcast %c2_i32_22 : i32 to vector<128x64xi32>
    %83 = arith.muli %82, %81 : vector<128x64xi32>
    %c1_i32_23 = arith.constant 1 : i32
    %84 = vector.broadcast %c1_i32_23 : i32 to vector<128x64xi32>
    %85 = arith.addi %83, %84 : vector<128x64xi32>
    %86 = arith.cmpi eq, %80, %85 : vector<128x64xi32>
    %87 = arith.extui %86 : vector<128x64xi1> to vector<128x64xi32>
    %88 = arith.sitofp %87 : vector<128x64xi32> to vector<128x64xf32>
    %cst_24 = arith.constant dense<0.000000e+00> : vector<8x64xf32>
    %89 = tpu.matmul %69, %88, %cst_24 {dimension_numbers = #tpu.dot_dimension_numbers<[1], [0], [0], [1], [0, 0, 1, 1], [], []>} : vector<8x128xf32>, vector<128x64xf32>, vector<8x64xf32> -> vector<8x64xf32>
    %90 = arith.maximumf %79, %89 : vector<8x64xf32>
    %cst_25 = arith.constant 0.000000e+00 : f32
    %91 = vector.broadcast %cst_25 : f32 to vector<32x64xf32>
    %92 = tpu.iota {dimensions = array<i32: 0>} : vector<64x64xi32>
    %93 = tpu.iota {dimensions = array<i32: 1>} : vector<64x64xi32>
    %c-2_i32_26 = arith.constant -2 : i32
    %94 = vector.broadcast %c-2_i32_26 : i32 to vector<64x64xi32>
    %95 = arith.addi %93, %94 : vector<64x64xi32>
    %96 = arith.cmpi eq, %92, %95 : vector<64x64xi32>
    %97 = arith.extui %96 : vector<64x64xi1> to vector<64x64xi32>
    %98 = arith.sitofp %97 : vector<64x64xi32> to vector<64x64xf32>
    %cst_27 = arith.constant dense<0.000000e+00> : vector<8x64xf32>
    %99 = tpu.matmul %90, %98, %cst_27 {dimension_numbers = #tpu.dot_dimension_numbers<[1], [0], [0], [1], [0, 0, 1, 1], [], []>} : vector<8x64xf32>, vector<64x64xf32>, vector<8x64xf32> -> vector<8x64xf32>
    %c0_28 = arith.constant 0 : index
    %c0_29 = arith.constant 0 : index
    %c0_30 = arith.constant 0 : index
    %100 = vector.load %arg4[%c0_28, %c0_29, %c0_30] : memref<5x32x8xf32, #tpu.memory_space<vmem>>, vector<1x32x8xf32>
    %101 = vector.shape_cast %100 : vector<1x32x8xf32> to vector<32x8xf32>
    %cst_31 = arith.constant dense<0.000000e+00> : vector<32x64xf32>
    %102 = tpu.matmul %101, %99, %cst_31 {dimension_numbers = #tpu.dot_dimension_numbers<[1], [0], [0], [1], [0, 0, 1, 1], [], []>} : vector<32x8xf32>, vector<8x64xf32>, vector<32x64xf32> -> vector<32x64xf32>
    %103 = arith.addf %91, %102 : vector<32x64xf32>
    %104 = tpu.iota {dimensions = array<i32: 0>} : vector<64x64xi32>
    %105 = tpu.iota {dimensions = array<i32: 1>} : vector<64x64xi32>
    %c-1_i32_32 = arith.constant -1 : i32
    %106 = vector.broadcast %c-1_i32_32 : i32 to vector<64x64xi32>
    %107 = arith.addi %105, %106 : vector<64x64xi32>
    %108 = arith.cmpi eq, %104, %107 : vector<64x64xi32>
    %109 = arith.extui %108 : vector<64x64xi1> to vector<64x64xi32>
    %110 = arith.sitofp %109 : vector<64x64xi32> to vector<64x64xf32>
    %cst_33 = arith.constant dense<0.000000e+00> : vector<8x64xf32>
    %111 = tpu.matmul %90, %110, %cst_33 {dimension_numbers = #tpu.dot_dimension_numbers<[1], [0], [0], [1], [0, 0, 1, 1], [], []>} : vector<8x64xf32>, vector<64x64xf32>, vector<8x64xf32> -> vector<8x64xf32>
    %c1_34 = arith.constant 1 : index
    %c0_35 = arith.constant 0 : index
    %c0_36 = arith.constant 0 : index
    %112 = vector.load %arg4[%c1_34, %c0_35, %c0_36] : memref<5x32x8xf32, #tpu.memory_space<vmem>>, vector<1x32x8xf32>
    %113 = vector.shape_cast %112 : vector<1x32x8xf32> to vector<32x8xf32>
    %cst_37 = arith.constant dense<0.000000e+00> : vector<32x64xf32>
    %114 = tpu.matmul %113, %111, %cst_37 {dimension_numbers = #tpu.dot_dimension_numbers<[1], [0], [0], [1], [0, 0, 1, 1], [], []>} : vector<32x8xf32>, vector<8x64xf32>, vector<32x64xf32> -> vector<32x64xf32>
    %115 = arith.addf %103, %114 : vector<32x64xf32>
    %c2_38 = arith.constant 2 : index
    %c0_39 = arith.constant 0 : index
    %c0_40 = arith.constant 0 : index
    %116 = vector.load %arg4[%c2_38, %c0_39, %c0_40] : memref<5x32x8xf32, #tpu.memory_space<vmem>>, vector<1x32x8xf32>
    %117 = vector.shape_cast %116 : vector<1x32x8xf32> to vector<32x8xf32>
    %cst_41 = arith.constant dense<0.000000e+00> : vector<32x64xf32>
    %118 = tpu.matmul %117, %90, %cst_41 {dimension_numbers = #tpu.dot_dimension_numbers<[1], [0], [0], [1], [0, 0, 1, 1], [], []>} : vector<32x8xf32>, vector<8x64xf32>, vector<32x64xf32> -> vector<32x64xf32>
    %119 = arith.addf %115, %118 : vector<32x64xf32>
    %120 = tpu.iota {dimensions = array<i32: 0>} : vector<64x64xi32>
    %121 = tpu.iota {dimensions = array<i32: 1>} : vector<64x64xi32>
    %c1_i32_42 = arith.constant 1 : i32
    %122 = vector.broadcast %c1_i32_42 : i32 to vector<64x64xi32>
    %123 = arith.addi %121, %122 : vector<64x64xi32>
    %124 = arith.cmpi eq, %120, %123 : vector<64x64xi32>
    %125 = arith.extui %124 : vector<64x64xi1> to vector<64x64xi32>
    %126 = arith.sitofp %125 : vector<64x64xi32> to vector<64x64xf32>
    %cst_43 = arith.constant dense<0.000000e+00> : vector<8x64xf32>
    %127 = tpu.matmul %90, %126, %cst_43 {dimension_numbers = #tpu.dot_dimension_numbers<[1], [0], [0], [1], [0, 0, 1, 1], [], []>} : vector<8x64xf32>, vector<64x64xf32>, vector<8x64xf32> -> vector<8x64xf32>
    %c3_44 = arith.constant 3 : index
    %c0_45 = arith.constant 0 : index
    %c0_46 = arith.constant 0 : index
    %128 = vector.load %arg4[%c3_44, %c0_45, %c0_46] : memref<5x32x8xf32, #tpu.memory_space<vmem>>, vector<1x32x8xf32>
    %129 = vector.shape_cast %128 : vector<1x32x8xf32> to vector<32x8xf32>
    %cst_47 = arith.constant dense<0.000000e+00> : vector<32x64xf32>
    %130 = tpu.matmul %129, %127, %cst_47 {dimension_numbers = #tpu.dot_dimension_numbers<[1], [0], [0], [1], [0, 0, 1, 1], [], []>} : vector<32x8xf32>, vector<8x64xf32>, vector<32x64xf32> -> vector<32x64xf32>
    %131 = arith.addf %119, %130 : vector<32x64xf32>
    %132 = tpu.iota {dimensions = array<i32: 0>} : vector<64x64xi32>
    %133 = tpu.iota {dimensions = array<i32: 1>} : vector<64x64xi32>
    %c2_i32_48 = arith.constant 2 : i32
    %134 = vector.broadcast %c2_i32_48 : i32 to vector<64x64xi32>
    %135 = arith.addi %133, %134 : vector<64x64xi32>
    %136 = arith.cmpi eq, %132, %135 : vector<64x64xi32>
    %137 = arith.extui %136 : vector<64x64xi1> to vector<64x64xi32>
    %138 = arith.sitofp %137 : vector<64x64xi32> to vector<64x64xf32>
    %cst_49 = arith.constant dense<0.000000e+00> : vector<8x64xf32>
    %139 = tpu.matmul %90, %138, %cst_49 {dimension_numbers = #tpu.dot_dimension_numbers<[1], [0], [0], [1], [0, 0, 1, 1], [], []>} : vector<8x64xf32>, vector<64x64xf32>, vector<8x64xf32> -> vector<8x64xf32>
    %c4_50 = arith.constant 4 : index
    %c0_51 = arith.constant 0 : index
    %c0_52 = arith.constant 0 : index
    %140 = vector.load %arg4[%c4_50, %c0_51, %c0_52] : memref<5x32x8xf32, #tpu.memory_space<vmem>>, vector<1x32x8xf32>
    %141 = vector.shape_cast %140 : vector<1x32x8xf32> to vector<32x8xf32>
    %cst_53 = arith.constant dense<0.000000e+00> : vector<32x64xf32>
    %142 = tpu.matmul %141, %139, %cst_53 {dimension_numbers = #tpu.dot_dimension_numbers<[1], [0], [0], [1], [0, 0, 1, 1], [], []>} : vector<32x8xf32>, vector<8x64xf32>, vector<32x64xf32> -> vector<32x64xf32>
    %143 = arith.addf %131, %142 : vector<32x64xf32>
    %c0_54 = arith.constant 0 : index
    %c0_55 = arith.constant 0 : index
    %144 = vector.load %arg5[%c0_54, %c0_55] : memref<32x1xf32, #tpu.memory_space<vmem>>, vector<32x1xf32>
    %145 = vector.broadcast %144 : vector<32x1xf32> to vector<32x64xf32>
    %146 = arith.addf %143, %145 : vector<32x64xf32>
    %cst_56 = arith.constant 0.000000e+00 : f32
    %147 = vector.broadcast %cst_56 : f32 to vector<32x64xf32>
    %148 = arith.maximumf %146, %147 : vector<32x64xf32>
    %149 = tpu.iota {dimensions = array<i32: 0>} : vector<64x32xi32>
    %150 = tpu.iota {dimensions = array<i32: 1>} : vector<64x32xi32>
    %c2_i32_57 = arith.constant 2 : i32
    %151 = vector.broadcast %c2_i32_57 : i32 to vector<64x32xi32>
    %152 = arith.muli %151, %150 : vector<64x32xi32>
    %c0_i32_58 = arith.constant 0 : i32
    %153 = vector.broadcast %c0_i32_58 : i32 to vector<64x32xi32>
    %154 = arith.addi %152, %153 : vector<64x32xi32>
    %155 = arith.cmpi eq, %149, %154 : vector<64x32xi32>
    %156 = arith.extui %155 : vector<64x32xi1> to vector<64x32xi32>
    %157 = arith.sitofp %156 : vector<64x32xi32> to vector<64x32xf32>
    %cst_59 = arith.constant dense<0.000000e+00> : vector<32x32xf32>
    %158 = tpu.matmul %148, %157, %cst_59 {dimension_numbers = #tpu.dot_dimension_numbers<[1], [0], [0], [1], [0, 0, 1, 1], [], []>} : vector<32x64xf32>, vector<64x32xf32>, vector<32x32xf32> -> vector<32x32xf32>
    %159 = tpu.iota {dimensions = array<i32: 0>} : vector<64x32xi32>
    %160 = tpu.iota {dimensions = array<i32: 1>} : vector<64x32xi32>
    %c2_i32_60 = arith.constant 2 : i32
    %161 = vector.broadcast %c2_i32_60 : i32 to vector<64x32xi32>
    %162 = arith.muli %161, %160 : vector<64x32xi32>
    %c1_i32_61 = arith.constant 1 : i32
    %163 = vector.broadcast %c1_i32_61 : i32 to vector<64x32xi32>
    %164 = arith.addi %162, %163 : vector<64x32xi32>
    %165 = arith.cmpi eq, %159, %164 : vector<64x32xi32>
    %166 = arith.extui %165 : vector<64x32xi1> to vector<64x32xi32>
    %167 = arith.sitofp %166 : vector<64x32xi32> to vector<64x32xf32>
    %cst_62 = arith.constant dense<0.000000e+00> : vector<32x32xf32>
    %168 = tpu.matmul %148, %167, %cst_62 {dimension_numbers = #tpu.dot_dimension_numbers<[1], [0], [0], [1], [0, 0, 1, 1], [], []>} : vector<32x64xf32>, vector<64x32xf32>, vector<32x32xf32> -> vector<32x32xf32>
    %169 = arith.maximumf %158, %168 : vector<32x32xf32>
    %cst_63 = arith.constant 0.000000e+00 : f32
    %170 = vector.broadcast %cst_63 : f32 to vector<64x32xf32>
    %171 = tpu.iota {dimensions = array<i32: 0>} : vector<32x32xi32>
    %172 = tpu.iota {dimensions = array<i32: 1>} : vector<32x32xi32>
    %c-2_i32_64 = arith.constant -2 : i32
    %173 = vector.broadcast %c-2_i32_64 : i32 to vector<32x32xi32>
    %174 = arith.addi %172, %173 : vector<32x32xi32>
    %175 = arith.cmpi eq, %171, %174 : vector<32x32xi32>
    %176 = arith.extui %175 : vector<32x32xi1> to vector<32x32xi32>
    %177 = arith.sitofp %176 : vector<32x32xi32> to vector<32x32xf32>
    %cst_65 = arith.constant dense<0.000000e+00> : vector<32x32xf32>
    %178 = tpu.matmul %169, %177, %cst_65 {dimension_numbers = #tpu.dot_dimension_numbers<[1], [0], [0], [1], [0, 0, 1, 1], [], []>} : vector<32x32xf32>, vector<32x32xf32>, vector<32x32xf32> -> vector<32x32xf32>
    %c0_66 = arith.constant 0 : index
    %c0_67 = arith.constant 0 : index
    %c0_68 = arith.constant 0 : index
    %179 = vector.load %arg6[%c0_66, %c0_67, %c0_68] : memref<5x64x32xf32, #tpu.memory_space<vmem>>, vector<1x64x32xf32>
    %180 = vector.shape_cast %179 : vector<1x64x32xf32> to vector<64x32xf32>
    %cst_69 = arith.constant dense<0.000000e+00> : vector<64x32xf32>
    %181 = tpu.matmul %180, %178, %cst_69 {dimension_numbers = #tpu.dot_dimension_numbers<[1], [0], [0], [1], [0, 0, 1, 1], [], []>} : vector<64x32xf32>, vector<32x32xf32>, vector<64x32xf32> -> vector<64x32xf32>
    %182 = arith.addf %170, %181 : vector<64x32xf32>
    %183 = tpu.iota {dimensions = array<i32: 0>} : vector<32x32xi32>
    %184 = tpu.iota {dimensions = array<i32: 1>} : vector<32x32xi32>
    %c-1_i32_70 = arith.constant -1 : i32
    %185 = vector.broadcast %c-1_i32_70 : i32 to vector<32x32xi32>
    %186 = arith.addi %184, %185 : vector<32x32xi32>
    %187 = arith.cmpi eq, %183, %186 : vector<32x32xi32>
    %188 = arith.extui %187 : vector<32x32xi1> to vector<32x32xi32>
    %189 = arith.sitofp %188 : vector<32x32xi32> to vector<32x32xf32>
    %cst_71 = arith.constant dense<0.000000e+00> : vector<32x32xf32>
    %190 = tpu.matmul %169, %189, %cst_71 {dimension_numbers = #tpu.dot_dimension_numbers<[1], [0], [0], [1], [0, 0, 1, 1], [], []>} : vector<32x32xf32>, vector<32x32xf32>, vector<32x32xf32> -> vector<32x32xf32>
    %c1_72 = arith.constant 1 : index
    %c0_73 = arith.constant 0 : index
    %c0_74 = arith.constant 0 : index
    %191 = vector.load %arg6[%c1_72, %c0_73, %c0_74] : memref<5x64x32xf32, #tpu.memory_space<vmem>>, vector<1x64x32xf32>
    %192 = vector.shape_cast %191 : vector<1x64x32xf32> to vector<64x32xf32>
    %cst_75 = arith.constant dense<0.000000e+00> : vector<64x32xf32>
    %193 = tpu.matmul %192, %190, %cst_75 {dimension_numbers = #tpu.dot_dimension_numbers<[1], [0], [0], [1], [0, 0, 1, 1], [], []>} : vector<64x32xf32>, vector<32x32xf32>, vector<64x32xf32> -> vector<64x32xf32>
    %194 = arith.addf %182, %193 : vector<64x32xf32>
    %c2_76 = arith.constant 2 : index
    %c0_77 = arith.constant 0 : index
    %c0_78 = arith.constant 0 : index
    %195 = vector.load %arg6[%c2_76, %c0_77, %c0_78] : memref<5x64x32xf32, #tpu.memory_space<vmem>>, vector<1x64x32xf32>
    %196 = vector.shape_cast %195 : vector<1x64x32xf32> to vector<64x32xf32>
    %cst_79 = arith.constant dense<0.000000e+00> : vector<64x32xf32>
    %197 = tpu.matmul %196, %169, %cst_79 {dimension_numbers = #tpu.dot_dimension_numbers<[1], [0], [0], [1], [0, 0, 1, 1], [], []>} : vector<64x32xf32>, vector<32x32xf32>, vector<64x32xf32> -> vector<64x32xf32>
    %198 = arith.addf %194, %197 : vector<64x32xf32>
    %199 = tpu.iota {dimensions = array<i32: 0>} : vector<32x32xi32>
    %200 = tpu.iota {dimensions = array<i32: 1>} : vector<32x32xi32>
    %c1_i32_80 = arith.constant 1 : i32
    %201 = vector.broadcast %c1_i32_80 : i32 to vector<32x32xi32>
    %202 = arith.addi %200, %201 : vector<32x32xi32>
    %203 = arith.cmpi eq, %199, %202 : vector<32x32xi32>
    %204 = arith.extui %203 : vector<32x32xi1> to vector<32x32xi32>
    %205 = arith.sitofp %204 : vector<32x32xi32> to vector<32x32xf32>
    %cst_81 = arith.constant dense<0.000000e+00> : vector<32x32xf32>
    %206 = tpu.matmul %169, %205, %cst_81 {dimension_numbers = #tpu.dot_dimension_numbers<[1], [0], [0], [1], [0, 0, 1, 1], [], []>} : vector<32x32xf32>, vector<32x32xf32>, vector<32x32xf32> -> vector<32x32xf32>
    %c3_82 = arith.constant 3 : index
    %c0_83 = arith.constant 0 : index
    %c0_84 = arith.constant 0 : index
    %207 = vector.load %arg6[%c3_82, %c0_83, %c0_84] : memref<5x64x32xf32, #tpu.memory_space<vmem>>, vector<1x64x32xf32>
    %208 = vector.shape_cast %207 : vector<1x64x32xf32> to vector<64x32xf32>
    %cst_85 = arith.constant dense<0.000000e+00> : vector<64x32xf32>
    %209 = tpu.matmul %208, %206, %cst_85 {dimension_numbers = #tpu.dot_dimension_numbers<[1], [0], [0], [1], [0, 0, 1, 1], [], []>} : vector<64x32xf32>, vector<32x32xf32>, vector<64x32xf32> -> vector<64x32xf32>
    %210 = arith.addf %198, %209 : vector<64x32xf32>
    %211 = tpu.iota {dimensions = array<i32: 0>} : vector<32x32xi32>
    %212 = tpu.iota {dimensions = array<i32: 1>} : vector<32x32xi32>
    %c2_i32_86 = arith.constant 2 : i32
    %213 = vector.broadcast %c2_i32_86 : i32 to vector<32x32xi32>
    %214 = arith.addi %212, %213 : vector<32x32xi32>
    %215 = arith.cmpi eq, %211, %214 : vector<32x32xi32>
    %216 = arith.extui %215 : vector<32x32xi1> to vector<32x32xi32>
    %217 = arith.sitofp %216 : vector<32x32xi32> to vector<32x32xf32>
    %cst_87 = arith.constant dense<0.000000e+00> : vector<32x32xf32>
    %218 = tpu.matmul %169, %217, %cst_87 {dimension_numbers = #tpu.dot_dimension_numbers<[1], [0], [0], [1], [0, 0, 1, 1], [], []>} : vector<32x32xf32>, vector<32x32xf32>, vector<32x32xf32> -> vector<32x32xf32>
    %c4_88 = arith.constant 4 : index
    %c0_89 = arith.constant 0 : index
    %c0_90 = arith.constant 0 : index
    %219 = vector.load %arg6[%c4_88, %c0_89, %c0_90] : memref<5x64x32xf32, #tpu.memory_space<vmem>>, vector<1x64x32xf32>
    %220 = vector.shape_cast %219 : vector<1x64x32xf32> to vector<64x32xf32>
    %cst_91 = arith.constant dense<0.000000e+00> : vector<64x32xf32>
    %221 = tpu.matmul %220, %218, %cst_91 {dimension_numbers = #tpu.dot_dimension_numbers<[1], [0], [0], [1], [0, 0, 1, 1], [], []>} : vector<64x32xf32>, vector<32x32xf32>, vector<64x32xf32> -> vector<64x32xf32>
    %222 = arith.addf %210, %221 : vector<64x32xf32>
    %c0_92 = arith.constant 0 : index
    %c0_93 = arith.constant 0 : index
    %223 = vector.load %arg7[%c0_92, %c0_93] : memref<64x1xf32, #tpu.memory_space<vmem>>, vector<64x1xf32>
    %224 = vector.broadcast %223 : vector<64x1xf32> to vector<64x32xf32>
    %225 = arith.addf %222, %224 : vector<64x32xf32>
    %cst_94 = arith.constant 0.000000e+00 : f32
    %226 = vector.broadcast %cst_94 : f32 to vector<64x32xf32>
    %227 = arith.maximumf %225, %226 : vector<64x32xf32>
    %228 = tpu.iota {dimensions = array<i32: 0>} : vector<32x16xi32>
    %229 = tpu.iota {dimensions = array<i32: 1>} : vector<32x16xi32>
    %c2_i32_95 = arith.constant 2 : i32
    %230 = vector.broadcast %c2_i32_95 : i32 to vector<32x16xi32>
    %231 = arith.muli %230, %229 : vector<32x16xi32>
    %c0_i32_96 = arith.constant 0 : i32
    %232 = vector.broadcast %c0_i32_96 : i32 to vector<32x16xi32>
    %233 = arith.addi %231, %232 : vector<32x16xi32>
    %234 = arith.cmpi eq, %228, %233 : vector<32x16xi32>
    %235 = arith.extui %234 : vector<32x16xi1> to vector<32x16xi32>
    %236 = arith.sitofp %235 : vector<32x16xi32> to vector<32x16xf32>
    %cst_97 = arith.constant dense<0.000000e+00> : vector<64x16xf32>
    %237 = tpu.matmul %227, %236, %cst_97 {dimension_numbers = #tpu.dot_dimension_numbers<[1], [0], [0], [1], [0, 0, 1, 1], [], []>} : vector<64x32xf32>, vector<32x16xf32>, vector<64x16xf32> -> vector<64x16xf32>
    %238 = tpu.iota {dimensions = array<i32: 0>} : vector<32x16xi32>
    %239 = tpu.iota {dimensions = array<i32: 1>} : vector<32x16xi32>
    %c2_i32_98 = arith.constant 2 : i32
    %240 = vector.broadcast %c2_i32_98 : i32 to vector<32x16xi32>
    %241 = arith.muli %240, %239 : vector<32x16xi32>
    %c1_i32_99 = arith.constant 1 : i32
    %242 = vector.broadcast %c1_i32_99 : i32 to vector<32x16xi32>
    %243 = arith.addi %241, %242 : vector<32x16xi32>
    %244 = arith.cmpi eq, %238, %243 : vector<32x16xi32>
    %245 = arith.extui %244 : vector<32x16xi1> to vector<32x16xi32>
    %246 = arith.sitofp %245 : vector<32x16xi32> to vector<32x16xf32>
    %cst_100 = arith.constant dense<0.000000e+00> : vector<64x16xf32>
    %247 = tpu.matmul %227, %246, %cst_100 {dimension_numbers = #tpu.dot_dimension_numbers<[1], [0], [0], [1], [0, 0, 1, 1], [], []>} : vector<64x32xf32>, vector<32x16xf32>, vector<64x16xf32> -> vector<64x16xf32>
    %248 = arith.maximumf %237, %247 : vector<64x16xf32>
    %c0_101 = arith.constant 0 : index
    %c0_102 = arith.constant 0 : index
    %c0_103 = arith.constant 0 : index
    %249 = vector.load %arg8[%c0_101, %c0_102, %c0_103] : memref<1x64x16xf32, #tpu.memory_space<vmem>>, vector<1x64x16xf32>
    %250 = vector.shape_cast %249 : vector<1x64x16xf32> to vector<64x16xf32>
    %251 = vector.shape_cast %248 : vector<64x16xf32> to vector<1x64x16xf32>
    tpu.vector_store %arg8[%c0_101, %c0_102, %c0_103], %251 {strides = array<i32>} : memref<1x64x16xf32, #tpu.memory_space<vmem>>, vector<1x64x16xf32>,
    return
  }
  func.func @transform_0(%arg0: i32) -> (i32, i32, i32) {
    %c0_i32 = arith.constant 0 : i32
    %c0_i32_0 = arith.constant 0 : i32
    %c0_i32_1 = arith.constant 0 : i32
    return %arg0, %c0_i32, %c0_i32_0 : i32, i32, i32
  }
  func.func @transform_1(%arg0: i32) -> (i32, i32, i32) {
    %c0_i32 = arith.constant 0 : i32
    %c0_i32_0 = arith.constant 0 : i32
    %c0_i32_1 = arith.constant 0 : i32
    %c0_i32_2 = arith.constant 0 : i32
    return %c0_i32, %c0_i32_0, %c0_i32_1 : i32, i32, i32
  }
  func.func @transform_2(%arg0: i32) -> (i32, i32) {
    %c0_i32 = arith.constant 0 : i32
    %c0_i32_0 = arith.constant 0 : i32
    %c0_i32_1 = arith.constant 0 : i32
    return %c0_i32, %c0_i32_0 : i32, i32
  }
  func.func @transform_3(%arg0: i32) -> (i32, i32, i32) {
    %c0_i32 = arith.constant 0 : i32
    %c0_i32_0 = arith.constant 0 : i32
    %c0_i32_1 = arith.constant 0 : i32
    %c0_i32_2 = arith.constant 0 : i32
    return %c0_i32, %c0_i32_0, %c0_i32_1 : i32, i32, i32
  }
  func.func @transform_4(%arg0: i32) -> (i32, i32) {
    %c0_i32 = arith.constant 0 : i32
    %c0_i32_0 = arith.constant 0 : i32
    %c0_i32_1 = arith.constant 0 : i32
    return %c0_i32, %c0_i32_0 : i32, i32
  }
  func.func @transform_5(%arg0: i32) -> (i32, i32, i32) {
    %c0_i32 = arith.constant 0 : i32
    %c0_i32_0 = arith.constant 0 : i32
    %c0_i32_1 = arith.constant 0 : i32
    %c0_i32_2 = arith.constant 0 : i32
    return %c0_i32, %c0_i32_0, %c0_i32_1 : i32, i32, i32
  }
  func.func @transform_6(%arg0: i32) -> (i32, i32) {
    %c0_i32 = arith.constant 0 : i32
    %c0_i32_0 = arith.constant 0 : i32
    %c0_i32_1 = arith.constant 0 : i32
    return %c0_i32, %c0_i32_0 : i32, i32
  }
  func.func @transform_7(%arg0: i32) -> (i32, i32, i32) {
    %c0_i32 = arith.constant 0 : i32
    %c0_i32_0 = arith.constant 0 : i32
    %c0_i32_1 = arith.constant 0 : i32
    return %arg0, %c0_i32, %c0_i32_0 : i32, i32, i32
  }
}

module attributes {stable_mosaic.version = 11 : i64} {
  func.func @_fc_head_kernel(%arg0: i32, %arg1: memref<2x1024xf32, #tpu.memory_space<vmem>>, %arg2: memref<1024x512xf32, #tpu.memory_space<vmem>>, %arg3: memref<1x512xf32, #tpu.memory_space<vmem>>, %arg4: memref<512x256xf32, #tpu.memory_space<vmem>>, %arg5: memref<1x256xf32, #tpu.memory_space<vmem>>, %arg6: memref<256x128xf32, #tpu.memory_space<vmem>>, %arg7: memref<1x128xf32, #tpu.memory_space<vmem>>, %arg8: memref<128x64xf32, #tpu.memory_space<vmem>>, %arg9: memref<1x64xf32, #tpu.memory_space<vmem>>, %arg10: memref<64x1xf32, #tpu.memory_space<vmem>>, %arg11: memref<1x1xf32, #tpu.memory_space<vmem>>, %arg12: memref<2x1xf32, #tpu.memory_space<vmem>>) attributes {dimension_semantics = [#tpu.dimension_semantics<arbitrary>], iteration_bounds = array<i64: 1>, scalar_prefetch = 0 : i64, scratch_operands = 0 : i64, tpu.core_type = #tpu.core_type<tc>, window_params = [{pipeline_mode = #tpu.pipeline_mode<synchronous>, transform_indices = @transform_0, window_bounds = array<i64: 2, 1024>}, {pipeline_mode = #tpu.pipeline_mode<synchronous>, transform_indices = @transform_1, window_bounds = array<i64: 1024, 512>}, {pipeline_mode = #tpu.pipeline_mode<synchronous>, transform_indices = @transform_2, window_bounds = array<i64: 1, 512>}, {pipeline_mode = #tpu.pipeline_mode<synchronous>, transform_indices = @transform_3, window_bounds = array<i64: 512, 256>}, {pipeline_mode = #tpu.pipeline_mode<synchronous>, transform_indices = @transform_4, window_bounds = array<i64: 1, 256>}, {pipeline_mode = #tpu.pipeline_mode<synchronous>, transform_indices = @transform_5, window_bounds = array<i64: 256, 128>}, {pipeline_mode = #tpu.pipeline_mode<synchronous>, transform_indices = @transform_6, window_bounds = array<i64: 1, 128>}, {pipeline_mode = #tpu.pipeline_mode<synchronous>, transform_indices = @transform_7, window_bounds = array<i64: 128, 64>}, {pipeline_mode = #tpu.pipeline_mode<synchronous>, transform_indices = @transform_8, window_bounds = array<i64: 1, 64>}, {pipeline_mode = #tpu.pipeline_mode<synchronous>, transform_indices = @transform_9, window_bounds = array<i64: 64, 1>}, {pipeline_mode = #tpu.pipeline_mode<synchronous>, transform_indices = @transform_10, window_bounds = array<i64: 1, 1>}, {pipeline_mode = #tpu.pipeline_mode<synchronous>, transform_indices = @transform_11, window_bounds = array<i64: 2, 1>}]} {
    %c0 = arith.constant 0 : index
    %c0_0 = arith.constant 0 : index
    %0 = vector.load %arg1[%c0, %c0_0] : memref<2x1024xf32, #tpu.memory_space<vmem>>, vector<2x1024xf32>
    %c0_1 = arith.constant 0 : index
    %c0_2 = arith.constant 0 : index
    %1 = vector.load %arg2[%c0_1, %c0_2] : memref<1024x512xf32, #tpu.memory_space<vmem>>, vector<1024x512xf32>
    %cst = arith.constant dense<0.000000e+00> : vector<2x512xf32>
    %2 = tpu.matmul %0, %1, %cst {dimension_numbers = #tpu.dot_dimension_numbers<[1], [0], [0], [1], [0, 0, 1, 1], [], []>} : vector<2x1024xf32>, vector<1024x512xf32>, vector<2x512xf32> -> vector<2x512xf32>
    %c0_3 = arith.constant 0 : index
    %c0_4 = arith.constant 0 : index
    %3 = vector.load %arg3[%c0_3, %c0_4] : memref<1x512xf32, #tpu.memory_space<vmem>>, vector<1x512xf32>
    %4 = vector.broadcast %3 : vector<1x512xf32> to vector<2x512xf32>
    %5 = arith.addf %2, %4 : vector<2x512xf32>
    %c0_5 = arith.constant 0 : index
    %c0_6 = arith.constant 0 : index
    %6 = vector.load %arg4[%c0_5, %c0_6] : memref<512x256xf32, #tpu.memory_space<vmem>>, vector<512x256xf32>
    %cst_7 = arith.constant dense<0.000000e+00> : vector<2x256xf32>
    %7 = tpu.matmul %5, %6, %cst_7 {dimension_numbers = #tpu.dot_dimension_numbers<[1], [0], [0], [1], [0, 0, 1, 1], [], []>} : vector<2x512xf32>, vector<512x256xf32>, vector<2x256xf32> -> vector<2x256xf32>
    %c0_8 = arith.constant 0 : index
    %c0_9 = arith.constant 0 : index
    %8 = vector.load %arg5[%c0_8, %c0_9] : memref<1x256xf32, #tpu.memory_space<vmem>>, vector<1x256xf32>
    %9 = vector.broadcast %8 : vector<1x256xf32> to vector<2x256xf32>
    %10 = arith.addf %7, %9 : vector<2x256xf32>
    %c0_10 = arith.constant 0 : index
    %c0_11 = arith.constant 0 : index
    %11 = vector.load %arg6[%c0_10, %c0_11] : memref<256x128xf32, #tpu.memory_space<vmem>>, vector<256x128xf32>
    %cst_12 = arith.constant dense<0.000000e+00> : vector<2x128xf32>
    %12 = tpu.matmul %10, %11, %cst_12 {dimension_numbers = #tpu.dot_dimension_numbers<[1], [0], [0], [1], [0, 0, 1, 1], [], []>} : vector<2x256xf32>, vector<256x128xf32>, vector<2x128xf32> -> vector<2x128xf32>
    %c0_13 = arith.constant 0 : index
    %c0_14 = arith.constant 0 : index
    %13 = vector.load %arg7[%c0_13, %c0_14] : memref<1x128xf32, #tpu.memory_space<vmem>>, vector<1x128xf32>
    %14 = vector.broadcast %13 : vector<1x128xf32> to vector<2x128xf32>
    %15 = arith.addf %12, %14 : vector<2x128xf32>
    %cst_15 = arith.constant 0.000000e+00 : f32
    %16 = vector.broadcast %cst_15 : f32 to vector<2x128xf32>
    %17 = arith.maximumf %15, %16 : vector<2x128xf32>
    %c0_16 = arith.constant 0 : index
    %c0_17 = arith.constant 0 : index
    %18 = vector.load %arg8[%c0_16, %c0_17] : memref<128x64xf32, #tpu.memory_space<vmem>>, vector<128x64xf32>
    %cst_18 = arith.constant dense<0.000000e+00> : vector<2x64xf32>
    %19 = tpu.matmul %17, %18, %cst_18 {dimension_numbers = #tpu.dot_dimension_numbers<[1], [0], [0], [1], [0, 0, 1, 1], [], []>} : vector<2x128xf32>, vector<128x64xf32>, vector<2x64xf32> -> vector<2x64xf32>
    %c0_19 = arith.constant 0 : index
    %c0_20 = arith.constant 0 : index
    %20 = vector.load %arg9[%c0_19, %c0_20] : memref<1x64xf32, #tpu.memory_space<vmem>>, vector<1x64xf32>
    %21 = vector.broadcast %20 : vector<1x64xf32> to vector<2x64xf32>
    %22 = arith.addf %19, %21 : vector<2x64xf32>
    %cst_21 = arith.constant 0.000000e+00 : f32
    %23 = vector.broadcast %cst_21 : f32 to vector<2x64xf32>
    %24 = arith.maximumf %22, %23 : vector<2x64xf32>
    %c0_22 = arith.constant 0 : index
    %c0_23 = arith.constant 0 : index
    %25 = vector.load %arg10[%c0_22, %c0_23] : memref<64x1xf32, #tpu.memory_space<vmem>>, vector<64x1xf32>
    %cst_24 = arith.constant dense<0.000000e+00> : vector<2x1xf32>
    %26 = tpu.matmul %24, %25, %cst_24 {dimension_numbers = #tpu.dot_dimension_numbers<[1], [0], [0], [1], [0, 0, 1, 1], [], []>} : vector<2x64xf32>, vector<64x1xf32>, vector<2x1xf32> -> vector<2x1xf32>
    %c0_25 = arith.constant 0 : index
    %c0_26 = arith.constant 0 : index
    %27 = vector.load %arg11[%c0_25, %c0_26] : memref<1x1xf32, #tpu.memory_space<vmem>>, vector<1x1xf32>
    %28 = vector.broadcast %27 : vector<1x1xf32> to vector<2x1xf32>
    %29 = arith.addf %26, %28 : vector<2x1xf32>
    %cst_27 = arith.constant 0.000000e+00 : f32
    %30 = vector.broadcast %cst_27 : f32 to vector<2x1xf32>
    %31 = arith.subf %30, %29 : vector<2x1xf32>
    %32 = math.exp %31 : vector<2x1xf32>
    %cst_28 = arith.constant 1.000000e+00 : f32
    %33 = vector.broadcast %cst_28 : f32 to vector<2x1xf32>
    %34 = arith.addf %33, %32 : vector<2x1xf32>
    %cst_29 = arith.constant 1.000000e+00 : f32
    %35 = vector.broadcast %cst_29 : f32 to vector<2x1xf32>
    %36 = arith.divf %35, %34 : vector<2x1xf32>
    %c0_30 = arith.constant 0 : index
    %c0_31 = arith.constant 0 : index
    %37 = vector.load %arg12[%c0_30, %c0_31] : memref<2x1xf32, #tpu.memory_space<vmem>>, vector<2x1xf32>
    tpu.vector_store %arg12[%c0_30, %c0_31], %36 {strides = array<i32>} : memref<2x1xf32, #tpu.memory_space<vmem>>, vector<2x1xf32>,
    return
  }
  func.func @transform_0(%arg0: i32) -> (i32, i32) {
    %c0_i32 = arith.constant 0 : i32
    %c0_i32_0 = arith.constant 0 : i32
    %c0_i32_1 = arith.constant 0 : i32
    return %c0_i32, %c0_i32_0 : i32, i32
  }
  func.func @transform_1(%arg0: i32) -> (i32, i32) {
    %c0_i32 = arith.constant 0 : i32
    %c0_i32_0 = arith.constant 0 : i32
    %c0_i32_1 = arith.constant 0 : i32
    return %c0_i32, %c0_i32_0 : i32, i32
  }
  func.func @transform_2(%arg0: i32) -> (i32, i32) {
    %c0_i32 = arith.constant 0 : i32
    %c0_i32_0 = arith.constant 0 : i32
    %c0_i32_1 = arith.constant 0 : i32
    return %c0_i32, %c0_i32_0 : i32, i32
  }
  func.func @transform_3(%arg0: i32) -> (i32, i32) {
    %c0_i32 = arith.constant 0 : i32
    %c0_i32_0 = arith.constant 0 : i32
    %c0_i32_1 = arith.constant 0 : i32
    return %c0_i32, %c0_i32_0 : i32, i32
  }
  func.func @transform_4(%arg0: i32) -> (i32, i32) {
    %c0_i32 = arith.constant 0 : i32
    %c0_i32_0 = arith.constant 0 : i32
    %c0_i32_1 = arith.constant 0 : i32
    return %c0_i32, %c0_i32_0 : i32, i32
  }
  func.func @transform_5(%arg0: i32) -> (i32, i32) {
    %c0_i32 = arith.constant 0 : i32
    %c0_i32_0 = arith.constant 0 : i32
    %c0_i32_1 = arith.constant 0 : i32
    return %c0_i32, %c0_i32_0 : i32, i32
  }
  func.func @transform_6(%arg0: i32) -> (i32, i32) {
    %c0_i32 = arith.constant 0 : i32
    %c0_i32_0 = arith.constant 0 : i32
    %c0_i32_1 = arith.constant 0 : i32
    return %c0_i32, %c0_i32_0 : i32, i32
  }
  func.func @transform_7(%arg0: i32) -> (i32, i32) {
    %c0_i32 = arith.constant 0 : i32
    %c0_i32_0 = arith.constant 0 : i32
    %c0_i32_1 = arith.constant 0 : i32
    return %c0_i32, %c0_i32_0 : i32, i32
  }
  func.func @transform_8(%arg0: i32) -> (i32, i32) {
    %c0_i32 = arith.constant 0 : i32
    %c0_i32_0 = arith.constant 0 : i32
    %c0_i32_1 = arith.constant 0 : i32
    return %c0_i32, %c0_i32_0 : i32, i32
  }
  func.func @transform_9(%arg0: i32) -> (i32, i32) {
    %c0_i32 = arith.constant 0 : i32
    %c0_i32_0 = arith.constant 0 : i32
    %c0_i32_1 = arith.constant 0 : i32
    return %c0_i32, %c0_i32_0 : i32, i32
  }
  func.func @transform_10(%arg0: i32) -> (i32, i32) {
    %c0_i32 = arith.constant 0 : i32
    %c0_i32_0 = arith.constant 0 : i32
    %c0_i32_1 = arith.constant 0 : i32
    return %c0_i32, %c0_i32_0 : i32, i32
  }
  func.func @transform_11(%arg0: i32) -> (i32, i32) {
    %c0_i32 = arith.constant 0 : i32
    %c0_i32_0 = arith.constant 0 : i32
    %c0_i32_1 = arith.constant 0 : i32
    return %c0_i32, %c0_i32_0 : i32, i32
  }
}

</mosaic_0001>

<llo_original>
// kernel: simple1d_cnn_forward.2
$region0: #{simple1d_cnn_forward.2}
  #allocation0 [shape = 'u32[]', space=smem, size = 0x4, offset = 0x4, fixed_abs, tag = 'smem constant byte address 0x4 - core index']
  #allocation1 [shape = 'u32[72,128]{1,0:T(1,128)}', space=vmem, size = 0x9000, scoped, tag = 'internal scratch']
  %s0 = inlined_call_operand.hbm [shape: f32[2,1,128], index: 0, kind: input, shape index: {}]
  %s1 = inlined_call_operand.vmem [shape: f32[5,8,1], index: 1, kind: input, shape index: {}]
  %s2 = inlined_call_operand.vmem [shape: f32[8,1], index: 2, kind: input, shape index: {}]
  %s3 = inlined_call_operand.vmem [shape: f32[5,32,8], index: 3, kind: input, shape index: {}]
  %s4 = inlined_call_operand.vmem [shape: f32[32,1], index: 4, kind: input, shape index: {}]
  %s5 = inlined_call_operand.vmem [shape: f32[5,64,32], index: 5, kind: input, shape index: {}]
  %s6 = inlined_call_operand.vmem [shape: f32[64,1], index: 6, kind: input, shape index: {}]
  %s7 = inlined_call_operand.vmem [shape: f32[2,64,16], index: 7, kind: output, shape index: {}]
  %s8 = sld [smem:[#allocation0]]
  $region65: #{simple1d_cnn_forward.2} parent=0
    _
  %s10 = ssub.s32 1, %s8
  %s11 = scalar_select 0, %s10, %s8
  $region1: #{simple1d_cnn_forward.2} parent=0
    #allocation2 [shape = 'u8[1024]{0}', space=vmem, size = 0x400, scoped, tag = 'input window, operand 0']
    #allocation3 [shape = 's32[2]{0}', space=sflag, size = 0x8, scoped, tag = 'scoped memory for simple1d_cnn_forward.2']
    %12 = vsyncpa [#allocation3], 0
    %s13 = scalar_lea.sflag [#allocation3], 1
    %14 = vsyncpa %s13, 0
    loop: start=0, step=1, limit=4
    $region2: #{simple1d_cnn_forward.2} parent=1 // loop_pre_header
      _
    $region3: #{simple1d_cnn_forward.2} parent=1 // loop_header
      %s16 = sphi 0, %s20
      %p17 = scmp.ge.s32.totalorder %s16, 4
      %s26 = sphi 0, %s28
      %s29 = sphi 0, %s26
      %s30 = sphi 0, %s29
      %s46 = sphi 0, %s30
      %s50 = sphi 0, %s50
      %s52 = sphi 0, %s50
      %s53 = sphi 0, %s52
      %s67 = sphi 0, %s53
      %s71 = sphi 0, %s71
      %s73 = sphi 0, %s71
      %s74 = sphi 0, %s73
      %s88 = sphi 0, %s74
      %s92 = sphi 0, %s92
      %s94 = sphi 0, %s92
      %s95 = sphi 0, %s94
      %s109 = sphi 0, %s95
      %s113 = sphi 0, %s113
      %s115 = sphi 0, %s113
      %s116 = sphi 0, %s115
      %s130 = sphi 0, %s116
      %s134 = sphi 0, %s134
      %s136 = sphi 0, %s134
      %s137 = sphi 0, %s136
      %s151 = sphi 0, %s137
      %s155 = sphi 0, %s155
      %s157 = sphi 0, %s155
      %s158 = sphi 0, %s157
      %s172 = sphi 0, %s158
      %s178 = sphi 0, %s180
      %s181 = sphi 0, %s178
      %s182 = sphi 0, %s181
      %s198 = sphi 0, %s182
    $region4: #{simple1d_cnn_forward.2} parent=1 // loop_header_branch
      %19 = sbr.rel (%p17) target = $region8
    $region5: #{simple1d_cnn_forward.2} parent=1 // loop_body
      %s21 = ssub.s32 %s16, 1
      %s22 = ssub.s32 %s16, 2
      %s23 = sadd.s32 %s16, 1
      %s24 = ssub.s32 %s16, %s23
      %p25 = scmp.eq.s32.totalorder %s24, 0
      %s27 = sadd.s32 %s26, 1
      %s28 = scalar_select %p25, %s26, %s27
      %p31 = pneg %p25
      %p32 = scmp.eq.s32.totalorder %s16, 1
      %p33 = por %p31, %p32
      %p34 = scmp.ne.s32.totalorder %s26, %s29
      %p35 = scmp.eq.s32.totalorder %s16, 0
      %p36 = por %p34, %p35
      %p37 = scmp.ne.s32.totalorder %s26, %s29
      %p38 = scmp.eq.s32.totalorder %s21, 1
      %p39 = por %p37, %p38
      %p40 = scmp.ne.s32.totalorder %s29, %s30
      %p41 = scmp.eq.s32.totalorder %s21, 0
      %p42 = por %p40, %p41
      %p43 = scmp.ne.s32.totalorder %s29, %s30
      %p44 = scmp.eq.s32.totalorder %s22, 1
      %p45 = por %p43, %p44
      %p47 = scmp.ne.s32.totalorder %s30, %s46
      %p48 = scmp.eq.s32.totalorder %s22, 0
      %p49 = por %p47, %p48
      %s51 = sadd.s32 %s50, 1
      %p54 = scmp.eq.s32.totalorder %s16, 1
      %p55 = scmp.ne.s32.totalorder %s50, %s52
      %p56 = scmp.eq.s32.totalorder %s16, 0
      %p57 = por %p55, %p56
      %p58 = scmp.ne.s32.totalorder %s50, %s52
      %p59 = scmp.eq.s32.totalorder %s21, 1
      %p60 = por %p58, %p59
      %p61 = scmp.ne.s32.totalorder %s52, %s53
      %p62 = scmp.eq.s32.totalorder %s21, 0
      %p63 = por %p61, %p62
      %p64 = scmp.ne.s32.totalorder %s52, %s53
      %p65 = scmp.eq.s32.totalorder %s22, 1
      %p66 = por %p64, %p65
      %p68 = scmp.ne.s32.totalorder %s53, %s67
      %p69 = scmp.eq.s32.totalorder %s22, 0
      %p70 = por %p68, %p69
      %s72 = sadd.s32 %s71, 1
      %p75 = scmp.eq.s32.totalorder %s16, 1
      %p76 = scmp.ne.s32.totalorder %s71, %s73
      %p77 = scmp.eq.s32.totalorder %s16, 0
      %p78 = por %p76, %p77
      %p79 = scmp.ne.s32.totalorder %s71, %s73
      %p80 = scmp.eq.s32.totalorder %s21, 1
      %p81 = por %p79, %p80
      %p82 = scmp.ne.s32.totalorder %s73, %s74
      %p83 = scmp.eq.s32.totalorder %s21, 0
      %p84 = por %p82, %p83
      %p85 = scmp.ne.s32.totalorder %s73, %s74
      %p86 = scmp.eq.s32.totalorder %s22, 1
      %p87 = por %p85, %p86
      %p89 = scmp.ne.s32.totalorder %s74, %s88
      %p90 = scmp.eq.s32.totalorder %s22, 0
      %p91 = por %p89, %p90
      %s93 = sadd.s32 %s92, 1
      %p96 = scmp.eq.s32.totalorder %s16, 1
      %p97 = scmp.ne.s32.totalorder %s92, %s94
      %p98 = scmp.eq.s32.totalorder %s16, 0
      %p99 = por %p97, %p98
      %p100 = scmp.ne.s32.totalorder %s92, %s94
      %p101 = scmp.eq.s32.totalorder %s21, 1
      %p102 = por %p100, %p101
      %p103 = scmp.ne.s32.totalorder %s94, %s95
      %p104 = scmp.eq.s32.totalorder %s21, 0
      %p105 = por %p103, %p104
      %p106 = scmp.ne.s32.totalorder %s94, %s95
      %p107 = scmp.eq.s32.totalorder %s22, 1
      %p108 = por %p106, %p107
      %p110 = scmp.ne.s32.totalorder %s95, %s109
      %p111 = scmp.eq.s32.totalorder %s22, 0
      %p112 = por %p110, %p111
      %s114 = sadd.s32 %s113, 1
      %p117 = scmp.eq.s32.totalorder %s16, 1
      %p118 = scmp.ne.s32.totalorder %s113, %s115
      %p119 = scmp.eq.s32.totalorder %s16, 0
      %p120 = por %p118, %p119
      %p121 = scmp.ne.s32.totalorder %s113, %s115
      %p122 = scmp.eq.s32.totalorder %s21, 1
      %p123 = por %p121, %p122
      %p124 = scmp.ne.s32.totalorder %s115, %s116
      %p125 = scmp.eq.s32.totalorder %s21, 0
      %p126 = por %p124, %p125
      %p127 = scmp.ne.s32.totalorder %s115, %s116
      %p128 = scmp.eq.s32.totalorder %s22, 1
      %p129 = por %p127, %p128
      %p131 = scmp.ne.s32.totalorder %s116, %s130
      %p132 = scmp.eq.s32.totalorder %s22, 0
      %p133 = por %p131, %p132
      %s135 = sadd.s32 %s134, 1
      %p138 = scmp.eq.s32.totalorder %s16, 1
      %p139 = scmp.ne.s32.totalorder %s134, %s136
      %p140 = scmp.eq.s32.totalorder %s16, 0
      %p141 = por %p139, %p140
      %p142 = scmp.ne.s32.totalorder %s134, %s136
      %p143 = scmp.eq.s32.totalorder %s21, 1
      %p144 = por %p142, %p143
      %p145 = scmp.ne.s32.totalorder %s136, %s137
      %p146 = scmp.eq.s32.totalorder %s21, 0
      %p147 = por %p145, %p146
      %p148 = scmp.ne.s32.totalorder %s136, %s137
      %p149 = scmp.eq.s32.totalorder %s22, 1
      %p150 = por %p148, %p149
      %p152 = scmp.ne.s32.totalorder %s137, %s151
      %p153 = scmp.eq.s32.totalorder %s22, 0
      %p154 = por %p152, %p153
      %s156 = sadd.s32 %s155, 1
      %p159 = scmp.eq.s32.totalorder %s16, 1
      %p160 = scmp.ne.s32.totalorder %s155, %s157
      %p161 = scmp.eq.s32.totalorder %s16, 0
      %p162 = por %p160, %p161
      %p163 = scmp.ne.s32.totalorder %s155, %s157
      %p164 = scmp.eq.s32.totalorder %s21, 1
      %p165 = por %p163, %p164
      %p166 = scmp.ne.s32.totalorder %s157, %s158
      %p167 = scmp.eq.s32.totalorder %s21, 0
      %p168 = por %p166, %p167
      %p169 = scmp.ne.s32.totalorder %s157, %s158
      %p170 = scmp.eq.s32.totalorder %s22, 1
      %p171 = por %p169, %p170
      %p173 = scmp.ne.s32.totalorder %s158, %s172
      %p174 = scmp.eq.s32.totalorder %s22, 0
      %p175 = por %p173, %p174
      %s176 = ssub.s32 %s16, %s23
      %p177 = scmp.eq.s32.totalorder %s176, 0
      %s179 = sadd.s32 %s178, 1
      %s180 = scalar_select %p177, %s178, %s179
      %p183 = pneg %p177
      %p184 = scmp.eq.s32.totalorder %s16, 1
      %p185 = por %p183, %p184
      %p186 = scmp.ne.s32.totalorder %s178, %s181
      %p187 = scmp.eq.s32.totalorder %s16, 0
      %p188 = por %p186, %p187
      %p189 = scmp.ne.s32.totalorder %s178, %s181
      %p190 = scmp.eq.s32.totalorder %s21, 1
      %p191 = por %p189, %p190
      %p192 = scmp.ne.s32.totalorder %s181, %s182
      %p193 = scmp.eq.s32.totalorder %s21, 0
      %p194 = por %p192, %p193
      %p195 = scmp.ne.s32.totalorder %s181, %s182
      %p196 = scmp.eq.s32.totalorder %s22, 1
      %p197 = por %p195, %p196
      %p199 = scmp.ne.s32.totalorder %s182, %s198
      %p200 = scmp.eq.s32.totalorder %s22, 0
      %p201 = por %p199, %p200
      %p202 = scmp.le.s32.totalorder 1, %s16
      %p203 = scmp.lt.s32.totalorder %s16, 3
      %p204 = pnand %p202, %p203
      %p205 = pneg %p204
      // Predicated region
      $region9: #{simple1d_cnn_forward.2} parent=5 // pred_check
        _
      $region10: #{simple1d_cnn_forward.2} parent=5 // pred_check_branch
        %207 = sbr.rel (%p204) target = $region12
      $region11: #{simple1d_cnn_forward.2} parent=5 // pred_region
        %s208 = ssub.s32 %s16, 1
        // Predicated region
        $region13: #{simple1d_cnn_forward.2} parent=11 // pred_check
          %p209 = pneg %p63
        $region14: #{simple1d_cnn_forward.2} parent=11 // pred_check_branch
          %211 = sbr.rel (%p209) target = $region16
        $region15: #{simple1d_cnn_forward.2} parent=11 // pred_region
          _
        $region16: #{simple1d_cnn_forward.2} parent=11 // pred_fallthru
          _
        // Predicated region
        $region17: #{simple1d_cnn_forward.2} parent=11 // pred_check
          %p212 = pneg %p84
        $region18: #{simple1d_cnn_forward.2} parent=11 // pred_check_branch
          %214 = sbr.rel (%p212) target = $region20
        $region19: #{simple1d_cnn_forward.2} parent=11 // pred_region
          _
        $region20: #{simple1d_cnn_forward.2} parent=11 // pred_fallthru
          _
        // Predicated region
        $region21: #{simple1d_cnn_forward.2} parent=11 // pred_check
          %p215 = pneg %p105
        $region22: #{simple1d_cnn_forward.2} parent=11 // pred_check_branch
          %217 = sbr.rel (%p215) target = $region24
        $region23: #{simple1d_cnn_forward.2} parent=11 // pred_region
          _
        $region24: #{simple1d_cnn_forward.2} parent=11 // pred_fallthru
          _
        // Predicated region
        $region25: #{simple1d_cnn_forward.2} parent=11 // pred_check
          %p218 = pneg %p126
        $region26: #{simple1d_cnn_forward.2} parent=11 // pred_check_branch
          %220 = sbr.rel (%p218) target = $region28
        $region27: #{simple1d_cnn_forward.2} parent=11 // pred_region
          _
        $region28: #{simple1d_cnn_forward.2} parent=11 // pred_fallthru
          _
        // Predicated region
        $region29: #{simple1d_cnn_forward.2} parent=11 // pred_check
          %p221 = pneg %p147
        $region30: #{simple1d_cnn_forward.2} parent=11 // pred_check_branch
          %223 = sbr.rel (%p221) target = $region32
        $region31: #{simple1d_cnn_forward.2} parent=11 // pred_region
          _
        $region32: #{simple1d_cnn_forward.2} parent=11 // pred_fallthru
          _
        // Predicated region
        $region33: #{simple1d_cnn_forward.2} parent=11 // pred_check
          %p224 = pneg %p168
        $region34: #{simple1d_cnn_forward.2} parent=11 // pred_check_branch
          %226 = sbr.rel (%p224) target = $region36
        $region35: #{simple1d_cnn_forward.2} parent=11 // pred_region
          _
        $region36: #{simple1d_cnn_forward.2} parent=11 // pred_fallthru
          _
      $region12: #{simple1d_cnn_forward.2} parent=5 // pred_fallthru
        _
      %p227 = scmp.lt.s32.totalorder %s16, 2
      // Predicated region
      $region37: #{simple1d_cnn_forward.2} parent=5 // pred_check
        %p228 = pneg %p227
      $region38: #{simple1d_cnn_forward.2} parent=5 // pred_check_branch
        %230 = sbr.rel (%p228) target = $region40
      $region39: #{simple1d_cnn_forward.2} parent=5 // pred_region
        // Predicated region
        $region41: #{simple1d_cnn_forward.2} parent=39 // pred_check
          %p231 = pneg %p36
        $region42: #{simple1d_cnn_forward.2} parent=39 // pred_check_branch
          %233 = sbr.rel (%p231) target = $region44
        $region43: #{simple1d_cnn_forward.2} parent=39 // pred_region
          %s234 = sand.u32 %s26, 1
          %s235 = scalar_lea.sflag [#allocation3], %s234
          %s236 = sand.u32 %s26, 1
          %s237 = scalar_lea.vmem [#allocation2], %s236
          %239 = vsyncadd %s235, 0
          %s240 = scalar_lea.hbm %s0, %s16
          %s242 = sshll.u32 %s240, 4
          %s243 = int_to_ptr.hbm [resolvable:$true] %s242
          %s244 = sshll.u32 %s237, 4
          %s245 = int_to_ptr.vmem [resolvable:$true] %s244
          %247 = dma.hbm_to_vmem [thread:$0]  %s243, 16, %s245, %s235
        $region44: #{simple1d_cnn_forward.2} parent=39 // pred_fallthru
          _
      $region40: #{simple1d_cnn_forward.2} parent=5 // pred_fallthru
        _
      %p248 = scmp.le.s32.totalorder 1, %s16
      %p249 = scmp.lt.s32.totalorder %s16, 3
      %p250 = pnand %p248, %p249
      %p251 = pneg %p250
      // Predicated region
      $region45: #{simple1d_cnn_forward.2} parent=5 // pred_check
        _
      $region46: #{simple1d_cnn_forward.2} parent=5 // pred_check_branch
        %253 = sbr.rel (%p250) target = $region48
      $region47: #{simple1d_cnn_forward.2} parent=5 // pred_region
        %s254 = ssub.s32 %s16, 1
        %s255 = sand.u32 %s29, 1
        %s256 = scalar_lea.sflag [#allocation3], %s255
        %s257 = sand.u32 %s29, 1
        %s258 = scalar_lea.vmem [#allocation2], %s257
        // Predicated region
        $region49: #{simple1d_cnn_forward.2} parent=47 // pred_check
          %p259 = pneg %p42
        $region50: #{simple1d_cnn_forward.2} parent=47 // pred_check_branch
          %261 = sbr.rel (%p259) target = $region52
        $region51: #{simple1d_cnn_forward.2} parent=47 // pred_region
          %263 = dma.done %s256, 16
        $region52: #{simple1d_cnn_forward.2} parent=47 // pred_fallthru
          _
        %s264 = sand.u32 %s29, 1
        %s265 = scalar_lea.sflag [#allocation3], %s264
        %s266 = sand.u32 %s29, 1
        %s267 = scalar_lea.vmem [#allocation2], %s266
        %p268 = pneg %p42
        %p269 = pneg %p39
        %p270 = pneg %p63
        %p271 = pneg %p60
        %p272 = pneg %p84
        %p273 = pneg %p81
        %p274 = pneg %p105
        %p275 = pneg %p102
        %p276 = pneg %p126
        %p277 = pneg %p123
        %p278 = pneg %p147
        %p279 = pneg %p144
        %p280 = pneg %p168
        %p281 = pneg %p165
        %p282 = pneg %p194
        %p283 = pneg %p191
        %p284 = scmp.lt.s32.totalorder %s21, 1
        %s285 = scalar_select %p284, %s21, 1
        %s286 = smul.addr %s285, 8
        %s287 = smul.addr %s286, 8
        %s288 = scalar_lea.vmem %s7, %s287
        %p289 = scmp.lt.s32.totalorder %s21, 1
        %s290 = scalar_select %p289, %s21, 1
        %s291 = smul.addr %s290, 8
        %s292 = smul.addr %s291, 8
        %s293 = scalar_lea.vmem %s7, %s292
        %v294 = vld [vmem:[%s258] sm:$0x1]
        %v295 = vlaneseq
        %v296 = vshrl.u32 %v295, 7
        %v297 = vadd.s32 %v296, 8
        %v298 = vadd.s32 %v296, 16
        %v299 = vadd.s32 %v296, 24
        %v300 = vadd.s32 %v296, 32
        %v301 = vadd.s32 %v296, 40
        %v302 = vadd.s32 %v296, 48
        %v303 = vadd.s32 %v296, 56
        %v304 = vadd.s32 %v296, 64
        %v305 = vadd.s32 %v296, 72
        %v306 = vadd.s32 %v296, 80
        %v307 = vadd.s32 %v296, 88
        %v308 = vadd.s32 %v296, 96
        %v309 = vadd.s32 %v296, 104
        %v310 = vadd.s32 %v296, 112
        %v311 = vadd.s32 %v296, 120
        %v312 = vlaneseq
        %v313 = vand.u32 %v312, 127
        %v314 = vadd.s32 %v313, 4294967294
        %vm315 = vcmp.eq.s32.totalorder %v296, %v314
        %vm316 = vcmp.eq.s32.totalorder %v297, %v314
        %vm317 = vcmp.eq.s32.totalorder %v298, %v314
        %vm318 = vcmp.eq.s32.totalorder %v299, %v314
        %vm319 = vcmp.eq.s32.totalorder %v300, %v314
        %vm320 = vcmp.eq.s32.totalorder %v301, %v314
        %vm321 = vcmp.eq.s32.totalorder %v302, %v314
        %vm322 = vcmp.eq.s32.totalorder %v303, %v314
        %vm323 = vcmp.eq.s32.totalorder %v304, %v314
        %vm324 = vcmp.eq.s32.totalorder %v305, %v314
        %vm325 = vcmp.eq.s32.totalorder %v306, %v314
        %vm326 = vcmp.eq.s32.totalorder %v307, %v314
        %vm327 = vcmp.eq.s32.totalorder %v308, %v314
        %vm328 = vcmp.eq.s32.totalorder %v309, %v314
        %vm329 = vcmp.eq.s32.totalorder %v310, %v314
        %vm330 = vcmp.eq.s32.totalorder %v311, %v314
        %v331 = vsel %vm315, 1, 0
        %v332 = vsel %vm316, 1, 0
        %v333 = vsel %vm317, 1, 0
        %v334 = vsel %vm318, 1, 0
        %v335 = vsel %vm319, 1, 0
        %v336 = vsel %vm320, 1, 0
        %v337 = vsel %vm321, 1, 0
        %v338 = vsel %vm322, 1, 0
        %v339 = vsel %vm323, 1, 0
        %v340 = vsel %vm324, 1, 0
        %v341 = vsel %vm325, 1, 0
        %v342 = vsel %vm326, 1, 0
        %v343 = vsel %vm327, 1, 0
        %v344 = vsel %vm328, 1, 0
        %v345 = vsel %vm329, 1, 0
        %v346 = vsel %vm330, 1, 0
        %v347 = vcvt.s32.f32 %v331
        %v348 = vcvt.s32.f32 %v332
        %v349 = vcvt.s32.f32 %v333
        %v350 = vcvt.s32.f32 %v334
        %v351 = vcvt.s32.f32 %v335
        %v352 = vcvt.s32.f32 %v336
        %v353 = vcvt.s32.f32 %v337
        %v354 = vcvt.s32.f32 %v338
        %v355 = vcvt.s32.f32 %v339
        %v356 = vcvt.s32.f32 %v340
        %v357 = vcvt.s32.f32 %v341
        %v358 = vcvt.s32.f32 %v342
        %v359 = vcvt.s32.f32 %v343
        %v360 = vcvt.s32.f32 %v344
        %v361 = vcvt.s32.f32 %v345
        %v362 = vcvt.s32.f32 %v346
        %363 = vmatpush.msra.mxu0 %v362
        %364 = vmatpush.msra.mxu0 %v361
        %365 = vmatpush.msra.mxu0 %v360
        %366 = vmatpush.msra.mxu0 %v359
        %367 = vmatpush.msra.mxu0 %v358
        %368 = vmatpush.msra.mxu0 %v357
        %369 = vmatpush.msra.mxu0 %v356
        %370 = vmatpush.msra.mxu0 %v355
        %371 = vmatpush.msra.mxu0 %v354
        %372 = vmatpush.msra.mxu0 %v353
        %373 = vmatpush.msra.mxu0 %v352
        %374 = vmatpush.msra.mxu0 %v351
        %375 = vmatpush.msra.mxu0 %v350
        %376 = vmatpush.msra.mxu0 %v349
        %377 = vmatpush.msra.mxu0 %v348
        %378 = vmatpush.msra.mxu0 %v347
        %379 = vmatmul.f32.gmra.mxu0 %v294
        %v380 = vpop.f32.mrf.mxu0
        %v381 = vadd.f32 0.0, %v380
        %382 = vdwg.mxu0
        %v383 = vld [vmem:[%s1] sm:$0xff]
        %385 = vset.pattern.permute.xlu0 0
        %386 = vperm.xlu0 %385, %v383
        %v387 = vpop.permute.xlu0 %386
        %v389 = vperm.slane %v381, 0
        %v390 = vmul.f32 %v387, %v389
        %v391 = vadd.f32 %v390, 0.0
        %v392 = vadd.s32 %v313, 4294967295
        %vm393 = vcmp.eq.s32.totalorder %v296, %v392
        %vm394 = vcmp.eq.s32.totalorder %v297, %v392
        %vm395 = vcmp.eq.s32.totalorder %v298, %v392
        %vm396 = vcmp.eq.s32.totalorder %v299, %v392
        %vm397 = vcmp.eq.s32.totalorder %v300, %v392
        %vm398 = vcmp.eq.s32.totalorder %v301, %v392
        %vm399 = vcmp.eq.s32.totalorder %v302, %v392
        %vm400 = vcmp.eq.s32.totalorder %v303, %v392
        %vm401 = vcmp.eq.s32.totalorder %v304, %v392
        %vm402 = vcmp.eq.s32.totalorder %v305, %v392
        %vm403 = vcmp.eq.s32.totalorder %v306, %v392
        %vm404 = vcmp.eq.s32.totalorder %v307, %v392
        %vm405 = vcmp.eq.s32.totalorder %v308, %v392
        %vm406 = vcmp.eq.s32.totalorder %v309, %v392
        %vm407 = vcmp.eq.s32.totalorder %v310, %v392
        %vm408 = vcmp.eq.s32.totalorder %v311, %v392
        %v409 = vsel %vm393, 1, 0
        %v410 = vsel %vm394, 1, 0
        %v411 = vsel %vm395, 1, 0
        %v412 = vsel %vm396, 1, 0
        %v413 = vsel %vm397, 1, 0
        %v414 = vsel %vm398, 1, 0
        %v415 = vsel %vm399, 1, 0
        %v416 = vsel %vm400, 1, 0
        %v417 = vsel %vm401, 1, 0
        %v418 = vsel %vm402, 1, 0
        %v419 = vsel %vm403, 1, 0
        %v420 = vsel %vm404, 1, 0
        %v421 = vsel %vm405, 1, 0
        %v422 = vsel %vm406, 1, 0
        %v423 = vsel %vm407, 1, 0
        %v424 = vsel %vm408, 1, 0
        %v425 = vcvt.s32.f32 %v409
        %v426 = vcvt.s32.f32 %v410
        %v427 = vcvt.s32.f32 %v411
        %v428 = vcvt.s32.f32 %v412
        %v429 = vcvt.s32.f32 %v413
        %v430 = vcvt.s32.f32 %v414
        %v431 = vcvt.s32.f32 %v415
        %v432 = vcvt.s32.f32 %v416
        %v433 = vcvt.s32.f32 %v417
        %v434 = vcvt.s32.f32 %v418
        %v435 = vcvt.s32.f32 %v419
        %v436 = vcvt.s32.f32 %v420
        %v437 = vcvt.s32.f32 %v421
        %v438 = vcvt.s32.f32 %v422
        %v439 = vcvt.s32.f32 %v423
        %v440 = vcvt.s32.f32 %v424
        %441 = vmatpush.msra.mxu0 %v440
        %442 = vmatpush.msra.mxu0 %v439
        %443 = vmatpush.msra.mxu0 %v438
        %444 = vmatpush.msra.mxu0 %v437
        %445 = vmatpush.msra.mxu0 %v436
        %446 = vmatpush.msra.mxu0 %v435
        %447 = vmatpush.msra.mxu0 %v434
        %448 = vmatpush.msra.mxu0 %v433
        %449 = vmatpush.msra.mxu0 %v432
        %450 = vmatpush.msra.mxu0 %v431
        %451 = vmatpush.msra.mxu0 %v430
        %452 = vmatpush.msra.mxu0 %v429
        %453 = vmatpush.msra.mxu0 %v428
        %454 = vmatpush.msra.mxu0 %v427
        %455 = vmatpush.msra.mxu0 %v426
        %456 = vmatpush.msra.mxu0 %v425
        %457 = vmatmul.f32.gmra.mxu0 %v294
        %v458 = vpop.f32.mrf.mxu0
        %v459 = vadd.f32 0.0, %v458
        %460 = vdwg.mxu0
        %s461 = scalar_lea.vmem %s1, 8
        %v462 = vld [vmem:[%s461] sm:$0xff]
        %464 = vset.pattern.permute.xlu0 0
        %465 = vperm.xlu0 %464, %v462
        %v466 = vpop.permute.xlu0 %465
        %v468 = vperm.slane %v459, 0
        %v469 = vmul.f32 %v466, %v468
        %v470 = vadd.f32 %v391, %v469
        %s471 = scalar_lea.vmem %s1, 16
        %v472 = vld [vmem:[%s471] sm:$0xff]
        %474 = vset.pattern.permute.xlu0 0
        %475 = vperm.xlu0 %474, %v472
        %v476 = vpop.permute.xlu0 %475
        %v479 = vperm.slane %v294, 0
        %v481 = vmul.f32 %v476, %v479
        %v482 = vadd.f32 %v470, %v481
        %v483 = vadd.s32 %v313, 1
        %vm484 = vcmp.eq.s32.totalorder %v296, %v483
        %vm485 = vcmp.eq.s32.totalorder %v297, %v483
        %vm486 = vcmp.eq.s32.totalorder %v298, %v483
        %vm487 = vcmp.eq.s32.totalorder %v299, %v483
        %vm488 = vcmp.eq.s32.totalorder %v300, %v483
        %vm489 = vcmp.eq.s32.totalorder %v301, %v483
        %vm490 = vcmp.eq.s32.totalorder %v302, %v483
        %vm491 = vcmp.eq.s32.totalorder %v303, %v483
        %vm492 = vcmp.eq.s32.totalorder %v304, %v483
        %vm493 = vcmp.eq.s32.totalorder %v305, %v483
        %vm494 = vcmp.eq.s32.totalorder %v306, %v483
        %vm495 = vcmp.eq.s32.totalorder %v307, %v483
        %vm496 = vcmp.eq.s32.totalorder %v308, %v483
        %vm497 = vcmp.eq.s32.totalorder %v309, %v483
        %vm498 = vcmp.eq.s32.totalorder %v310, %v483
        %vm499 = vcmp.eq.s32.totalorder %v311, %v483
        %v500 = vsel %vm484, 1, 0
        %v501 = vsel %vm485, 1, 0
        %v502 = vsel %vm486, 1, 0
        %v503 = vsel %vm487, 1, 0
        %v504 = vsel %vm488, 1, 0
        %v505 = vsel %vm489, 1, 0
        %v506 = vsel %vm490, 1, 0
        %v507 = vsel %vm491, 1, 0
        %v508 = vsel %vm492, 1, 0
        %v509 = vsel %vm493, 1, 0
        %v510 = vsel %vm494, 1, 0
        %v511 = vsel %vm495, 1, 0
        %v512 = vsel %vm496, 1, 0
        %v513 = vsel %vm497, 1, 0
        %v514 = vsel %vm498, 1, 0
        %v515 = vsel %vm499, 1, 0
        %v516 = vcvt.s32.f32 %v500
        %v517 = vcvt.s32.f32 %v501
        %v518 = vcvt.s32.f32 %v502
        %v519 = vcvt.s32.f32 %v503
        %v520 = vcvt.s32.f32 %v504
        %v521 = vcvt.s32.f32 %v505
        %v522 = vcvt.s32.f32 %v506
        %v523 = vcvt.s32.f32 %v507
        %v524 = vcvt.s32.f32 %v508
        %v525 = vcvt.s32.f32 %v509
        %v526 = vcvt.s32.f32 %v510
        %v527 = vcvt.s32.f32 %v511
        %v528 = vcvt.s32.f32 %v512
        %v529 = vcvt.s32.f32 %v513
        %v530 = vcvt.s32.f32 %v514
        %v531 = vcvt.s32.f32 %v515
        %532 = vmatpush.msra.mxu0 %v531
        %533 = vmatpush.msra.mxu0 %v530
        %534 = vmatpush.msra.mxu0 %v529
        %535 = vmatpush.msra.mxu0 %v528
        %536 = vmatpush.msra.mxu0 %v527
        %537 = vmatpush.msra.mxu0 %v526
        %538 = vmatpush.msra.mxu0 %v525
        %539 = vmatpush.msra.mxu0 %v524
        %540 = vmatpush.msra.mxu0 %v523
        %541 = vmatpush.msra.mxu0 %v522
        %542 = vmatpush.msra.mxu0 %v521
        %543 = vmatpush.msra.mxu0 %v520
        %544 = vmatpush.msra.mxu0 %v519
        %545 = vmatpush.msra.mxu0 %v518
        %546 = vmatpush.msra.mxu0 %v517
        %547 = vmatpush.msra.mxu0 %v516
        %548 = vmatmul.f32.gmra.mxu0 %v294
        %v549 = vpop.f32.mrf.mxu0
        %v550 = vadd.f32 0.0, %v549
        %551 = vdwg.mxu0
        %s552 = scalar_lea.vmem %s1, 24
        %v553 = vld [vmem:[%s552] sm:$0xff]
        %555 = vset.pattern.permute.xlu0 0
        %556 = vperm.xlu0 %555, %v553
        %v557 = vpop.permute.xlu0 %556
        %v559 = vperm.slane %v550, 0
        %v560 = vmul.f32 %v557, %v559
        %v561 = vadd.f32 %v482, %v560
        %v562 = vadd.s32 %v313, 2
        %vm563 = vcmp.eq.s32.totalorder %v296, %v562
        %vm564 = vcmp.eq.s32.totalorder %v297, %v562
        %vm565 = vcmp.eq.s32.totalorder %v298, %v562
        %vm566 = vcmp.eq.s32.totalorder %v299, %v562
        %vm567 = vcmp.eq.s32.totalorder %v300, %v562
        %vm568 = vcmp.eq.s32.totalorder %v301, %v562
        %vm569 = vcmp.eq.s32.totalorder %v302, %v562
        %vm570 = vcmp.eq.s32.totalorder %v303, %v562
        %vm571 = vcmp.eq.s32.totalorder %v304, %v562
        %vm572 = vcmp.eq.s32.totalorder %v305, %v562
        %vm573 = vcmp.eq.s32.totalorder %v306, %v562
        %vm574 = vcmp.eq.s32.totalorder %v307, %v562
        %vm575 = vcmp.eq.s32.totalorder %v308, %v562
        %vm576 = vcmp.eq.s32.totalorder %v309, %v562
        %vm577 = vcmp.eq.s32.totalorder %v310, %v562
        %vm578 = vcmp.eq.s32.totalorder %v311, %v562
        %v579 = vsel %vm563, 1, 0
        %v580 = vsel %vm564, 1, 0
        %v581 = vsel %vm565, 1, 0
        %v582 = vsel %vm566, 1, 0
        %v583 = vsel %vm567, 1, 0
        %v584 = vsel %vm568, 1, 0
        %v585 = vsel %vm569, 1, 0
        %v586 = vsel %vm570, 1, 0
        %v587 = vsel %vm571, 1, 0
        %v588 = vsel %vm572, 1, 0
        %v589 = vsel %vm573, 1, 0
        %v590 = vsel %vm574, 1, 0
        %v591 = vsel %vm575, 1, 0
        %v592 = vsel %vm576, 1, 0
        %v593 = vsel %vm577, 1, 0
        %v594 = vsel %vm578, 1, 0
        %v595 = vcvt.s32.f32 %v579
        %v596 = vcvt.s32.f32 %v580
        %v597 = vcvt.s32.f32 %v581
        %v598 = vcvt.s32.f32 %v582
        %v599 = vcvt.s32.f32 %v583
        %v600 = vcvt.s32.f32 %v584
        %v601 = vcvt.s32.f32 %v585
        %v602 = vcvt.s32.f32 %v586
        %v603 = vcvt.s32.f32 %v587
        %v604 = vcvt.s32.f32 %v588
        %v605 = vcvt.s32.f32 %v589
        %v606 = vcvt.s32.f32 %v590
        %v607 = vcvt.s32.f32 %v591
        %v608 = vcvt.s32.f32 %v592
        %v609 = vcvt.s32.f32 %v593
        %v610 = vcvt.s32.f32 %v594
        %611 = vmatpush.msra.mxu0 %v610
        %612 = vmatpush.msra.mxu0 %v609
        %613 = vmatpush.msra.mxu0 %v608
        %614 = vmatpush.msra.mxu0 %v607
        %615 = vmatpush.msra.mxu0 %v606
        %616 = vmatpush.msra.mxu0 %v605
        %617 = vmatpush.msra.mxu0 %v604
        %618 = vmatpush.msra.mxu0 %v603
        %619 = vmatpush.msra.mxu0 %v602
        %620 = vmatpush.msra.mxu0 %v601
        %621 = vmatpush.msra.mxu0 %v600
        %622 = vmatpush.msra.mxu0 %v599
        %623 = vmatpush.msra.mxu0 %v598
        %624 = vmatpush.msra.mxu0 %v597
        %625 = vmatpush.msra.mxu0 %v596
        %626 = vmatpush.msra.mxu0 %v595
        %627 = vmatmul.f32.gmra.mxu0 %v294
        %v628 = vpop.f32.mrf.mxu0
        %v629 = vadd.f32 0.0, %v628
        %630 = vdwg.mxu0
        %s631 = scalar_lea.vmem %s1, 32
        %v632 = vld [vmem:[%s631] sm:$0xff]
        %634 = vset.pattern.permute.xlu0 0
        %635 = vperm.xlu0 %634, %v632
        %v636 = vpop.permute.xlu0 %635
        %v638 = vperm.slane %v629, 0
        %v639 = vmul.f32 %v636, %v638
        %v640 = vadd.f32 %v561, %v639
        %v641 = vld [vmem:[%s2] sm:$0xff]
        %643 = vset.pattern.permute.xlu0 0
        %644 = vperm.xlu0 %643, %v641
        %v645 = vpop.permute.xlu0 %644
        %v647 = vadd.f32 %v640, %v645
        %v648 = vmax.f32 %v647, 0.0
        %v649 = vmul.u32 %v313, 2
        %vm650 = vcmp.eq.s32.totalorder %v296, %v649
        %vm651 = vcmp.eq.s32.totalorder %v297, %v649
        %vm652 = vcmp.eq.s32.totalorder %v298, %v649
        %vm653 = vcmp.eq.s32.totalorder %v299, %v649
        %vm654 = vcmp.eq.s32.totalorder %v300, %v649
        %vm655 = vcmp.eq.s32.totalorder %v301, %v649
        %vm656 = vcmp.eq.s32.totalorder %v302, %v649
        %vm657 = vcmp.eq.s32.totalorder %v303, %v649
        %vm658 = vcmp.eq.s32.totalorder %v304, %v649
        %vm659 = vcmp.eq.s32.totalorder %v305, %v649
        %vm660 = vcmp.eq.s32.totalorder %v306, %v649
        %vm661 = vcmp.eq.s32.totalorder %v307, %v649
        %vm662 = vcmp.eq.s32.totalorder %v308, %v649
        %vm663 = vcmp.eq.s32.totalorder %v309, %v649
        %vm664 = vcmp.eq.s32.totalorder %v310, %v649
        %vm665 = vcmp.eq.s32.totalorder %v311, %v649
        %v666 = vsel %vm650, 1, 0
        %v667 = vsel %vm651, 1, 0
        %v668 = vsel %vm652, 1, 0
        %v669 = vsel %vm653, 1, 0
        %v670 = vsel %vm654, 1, 0
        %v671 = vsel %vm655, 1, 0
        %v672 = vsel %vm656, 1, 0
        %v673 = vsel %vm657, 1, 0
        %v674 = vsel %vm658, 1, 0
        %v675 = vsel %vm659, 1, 0
        %v676 = vsel %vm660, 1, 0
        %v677 = vsel %vm661, 1, 0
        %v678 = vsel %vm662, 1, 0
        %v679 = vsel %vm663, 1, 0
        %v680 = vsel %vm664, 1, 0
        %v681 = vsel %vm665, 1, 0
        %v682 = vcvt.s32.f32 %v666
        %v683 = vcvt.s32.f32 %v667
        %v684 = vcvt.s32.f32 %v668
        %v685 = vcvt.s32.f32 %v669
        %v686 = vcvt.s32.f32 %v670
        %v687 = vcvt.s32.f32 %v671
        %v688 = vcvt.s32.f32 %v672
        %v689 = vcvt.s32.f32 %v673
        %v690 = vcvt.s32.f32 %v674
        %v691 = vcvt.s32.f32 %v675
        %v692 = vcvt.s32.f32 %v676
        %v693 = vcvt.s32.f32 %v677
        %v694 = vcvt.s32.f32 %v678
        %v695 = vcvt.s32.f32 %v679
        %v696 = vcvt.s32.f32 %v680
        %v697 = vcvt.s32.f32 %v681
        %698 = vmatpush.msra.mxu0 %v697
        %699 = vmatpush.msra.mxu0 %v696
        %700 = vmatpush.msra.mxu0 %v695
        %701 = vmatpush.msra.mxu0 %v694
        %702 = vmatpush.msra.mxu0 %v693
        %703 = vmatpush.msra.mxu0 %v692
        %704 = vmatpush.msra.mxu0 %v691
        %705 = vmatpush.msra.mxu0 %v690
        %706 = vmatpush.msra.mxu0 %v689
        %707 = vmatpush.msra.mxu0 %v688
        %708 = vmatpush.msra.mxu0 %v687
        %709 = vmatpush.msra.mxu0 %v686
        %710 = vmatpush.msra.mxu0 %v685
        %711 = vmatpush.msra.mxu0 %v684
        %712 = vmatpush.msra.mxu0 %v683
        %713 = vmatpush.msra.mxu0 %v682
        %714 = vmatmul.f32.gmra.mxu0 %v648
        %v715 = vpop.f32.mrf.mxu0
        %v716 = vadd.f32 0.0, %v715
        %717 = vdwg.mxu0
        %v718 = vadd.s32 %v649, 1
        %vm719 = vcmp.eq.s32.totalorder %v296, %v718
        %vm720 = vcmp.eq.s32.totalorder %v297, %v718
        %vm721 = vcmp.eq.s32.totalorder %v298, %v718
        %vm722 = vcmp.eq.s32.totalorder %v299, %v718
        %vm723 = vcmp.eq.s32.totalorder %v300, %v718
        %vm724 = vcmp.eq.s32.totalorder %v301, %v718
        %vm725 = vcmp.eq.s32.totalorder %v302, %v718
        %vm726 = vcmp.eq.s32.totalorder %v303, %v718
        %vm727 = vcmp.eq.s32.totalorder %v304, %v718
        %vm728 = vcmp.eq.s32.totalorder %v305, %v718
        %vm729 = vcmp.eq.s32.totalorder %v306, %v718
        %vm730 = vcmp.eq.s32.totalorder %v307, %v718
        %vm731 = vcmp.eq.s32.totalorder %v308, %v718
        %vm732 = vcmp.eq.s32.totalorder %v309, %v718
        %vm733 = vcmp.eq.s32.totalorder %v310, %v718
        %vm734 = vcmp.eq.s32.totalorder %v311, %v718
        %v735 = vsel %vm719, 1, 0
        %v736 = vsel %vm720, 1, 0
        %v737 = vsel %vm721, 1, 0
        %v738 = vsel %vm722, 1, 0
        %v739 = vsel %vm723, 1, 0
        %v740 = vsel %vm724, 1, 0
        %v741 = vsel %vm725, 1, 0
        %v742 = vsel %vm726, 1, 0
        %v743 = vsel %vm727, 1, 0
        %v744 = vsel %vm728, 1, 0
        %v745 = vsel %vm729, 1, 0
        %v746 = vsel %vm730, 1, 0
        %v747 = vsel %vm731, 1, 0
        %v748 = vsel %vm732, 1, 0
        %v749 = vsel %vm733, 1, 0
        %v750 = vsel %vm734, 1, 0
        %v751 = vcvt.s32.f32 %v735
        %v752 = vcvt.s32.f32 %v736
        %v753 = vcvt.s32.f32 %v737
        %v754 = vcvt.s32.f32 %v738
        %v755 = vcvt.s32.f32 %v739
        %v756 = vcvt.s32.f32 %v740
        %v757 = vcvt.s32.f32 %v741
        %v758 = vcvt.s32.f32 %v742
        %v759 = vcvt.s32.f32 %v743
        %v760 = vcvt.s32.f32 %v744
        %v761 = vcvt.s32.f32 %v745
        %v762 = vcvt.s32.f32 %v746
        %v763 = vcvt.s32.f32 %v747
        %v764 = vcvt.s32.f32 %v748
        %v765 = vcvt.s32.f32 %v749
        %v766 = vcvt.s32.f32 %v750
        %767 = vmatpush.msra.mxu0 %v766
        %768 = vmatpush.msra.mxu0 %v765
        %769 = vmatpush.msra.mxu0 %v764
        %770 = vmatpush.msra.mxu0 %v763
        %771 = vmatpush.msra.mxu0 %v762
        %772 = vmatpush.msra.mxu0 %v761
        %773 = vmatpush.msra.mxu0 %v760
        %774 = vmatpush.msra.mxu0 %v759
        %775 = vmatpush.msra.mxu0 %v758
        %776 = vmatpush.msra.mxu0 %v757
        %777 = vmatpush.msra.mxu0 %v756
        %778 = vmatpush.msra.mxu0 %v755
        %779 = vmatpush.msra.mxu0 %v754
        %780 = vmatpush.msra.mxu0 %v753
        %781 = vmatpush.msra.mxu0 %v752
        %782 = vmatpush.msra.mxu0 %v751
        %783 = vmatmul.f32.gmra.mxu0 %v648
        %v784 = vpop.f32.mrf.mxu0
        %v785 = vadd.f32 0.0, %v784
        %786 = vdwg.mxu0
        %v787 = vmax.f32 %v716, %v785
        %vm788 = vcmask 523264
        %v790 = vsel %vm788, %v787, 0
        %792 = vmatpush.msra.mxu0 0.0
        %793 = vmatpush.msra.mxu0 0.0
        %794 = vmatpush.msra.mxu0 0.0
        %795 = vmatpush.msra.mxu0 0.0
        %796 = vmatpush.msra.mxu0 0.0
        %797 = vmatpush.msra.mxu0 0.0
        %798 = vmatpush.msra.mxu0 0.0
        %799 = vmatpush.msra.mxu0 0.0
        %800 = vmatpush.msra.mxu0 %v354
        %801 = vmatpush.msra.mxu0 %v353
        %802 = vmatpush.msra.mxu0 %v352
        %803 = vmatpush.msra.mxu0 %v351
        %804 = vmatpush.msra.mxu0 %v350
        %805 = vmatpush.msra.mxu0 %v349
        %806 = vmatpush.msra.mxu0 %v348
        %807 = vmatpush.msra.mxu0 %v347
        %808 = vmatmul.f32.gmra.mxu0 %v790
        %v809 = vpop.f32.mrf.mxu0
        %v810 = vadd.f32 0.0, %v809
        %811 = vdwg.mxu0
        %v812 = vld [vmem:[%s3] sm:$0xff]
        %v813 = vld [vmem:[%s3 + $0x8] sm:$0xff]
        %v814 = vld [vmem:[%s3 + $0x10] sm:$0xff]
        %v815 = vld [vmem:[%s3 + $0x18] sm:$0xff]
        %816 = vmatpush.msra.mxu0 0.0
        %817 = vmatpush.msra.mxu0 0.0
        %818 = vmatpush.msra.mxu0 0.0
        %819 = vmatpush.msra.mxu0 0.0
        %820 = vmatpush.msra.mxu0 0.0
        %821 = vmatpush.msra.mxu0 0.0
        %822 = vmatpush.msra.mxu0 0.0
        %823 = vmatpush.msra.mxu0 0.0
        %824 = vmatpush.msra.mxu0 %v432
        %825 = vmatpush.msra.mxu0 %v431
        %826 = vmatpush.msra.mxu0 %v430
        %827 = vmatpush.msra.mxu0 %v429
        %828 = vmatpush.msra.mxu0 %v428
        %829 = vmatpush.msra.mxu0 %v427
        %830 = vmatpush.msra.mxu0 %v426
        %831 = vmatpush.msra.mxu0 %v425
        %832 = vmatmul.f32.gmra.mxu0 %v790
        %v833 = vpop.f32.mrf.mxu0
        %v834 = vadd.f32 0.0, %v833
        %835 = vdwg.mxu0
        %s836 = scalar_lea.vmem %s3, 32
        %v837 = vld [vmem:[%s836] sm:$0xff]
        %v838 = vld [vmem:[%s836 + $0x8] sm:$0xff]
        %v839 = vld [vmem:[%s836 + $0x10] sm:$0xff]
        %v840 = vld [vmem:[%s836 + $0x18] sm:$0xff]
        %vm841 = vcmask 64512
        %v843 = vsel %vm841, %v837, 0
        %v846 = vsel %vm841, %v838, 0
        %v849 = vsel %vm841, %v839, 0
        %v852 = vsel %vm841, %v840, 0
        %854 = vmatpush.msra.mxu0 0.0
        %855 = vmatpush.msra.mxu0 0.0
        %856 = vmatpush.msra.mxu0 0.0
        %857 = vmatpush.msra.mxu0 0.0
        %858 = vmatpush.msra.mxu0 0.0
        %859 = vmatpush.msra.mxu0 0.0
        %860 = vmatpush.msra.mxu0 0.0
        %861 = vmatpush.msra.mxu0 0.0
        %862 = vmatpush.msra.mxu0 0.0
        %863 = vmatpush.msra.mxu0 0.0
        %864 = vmatpush.msra.mxu0 0.0
        %865 = vmatpush.msra.mxu0 0.0
        %866 = vmatpush.msra.mxu0 0.0
        %867 = vmatpush.msra.mxu0 0.0
        %868 = vmatpush.msra.mxu0 0.0
        %869 = vmatpush.msra.mxu0 %v834
        %870 = vmatmul.f32.gmra.mxu0 %v843
        %v871 = vpop.f32.mrf.mxu0
        %v872 = vadd.f32 0.0, %v871
        %873 = vmatmul.f32.gmra.mxu0 %v846
        %v874 = vpop.f32.mrf.mxu0
        %v875 = vadd.f32 0.0, %v874
        %876 = vmatmul.f32.gmra.mxu0 %v849
        %v877 = vpop.f32.mrf.mxu0
        %v878 = vadd.f32 0.0, %v877
        %879 = vmatmul.f32.gmra.mxu0 %v852
        %v880 = vpop.f32.mrf.mxu0
        %v881 = vadd.f32 0.0, %v880
        %882 = vdwg.mxu0
        %v884 = vsel %vm841, %v812, 0
        %v887 = vsel %vm841, %v813, 0
        %v890 = vsel %vm841, %v814, 0
        %v893 = vsel %vm841, %v815, 0
        %895 = vmatpush.msra.mxu0 0.0
        %896 = vmatpush.msra.mxu0 0.0
        %897 = vmatpush.msra.mxu0 0.0
        %898 = vmatpush.msra.mxu0 0.0
        %899 = vmatpush.msra.mxu0 0.0
        %900 = vmatpush.msra.mxu0 0.0
        %901 = vmatpush.msra.mxu0 0.0
        %902 = vmatpush.msra.mxu0 0.0
        %903 = vmatpush.msra.mxu0 0.0
        %904 = vmatpush.msra.mxu0 0.0
        %905 = vmatpush.msra.mxu0 0.0
        %906 = vmatpush.msra.mxu0 0.0
        %907 = vmatpush.msra.mxu0 0.0
        %908 = vmatpush.msra.mxu0 0.0
        %909 = vmatpush.msra.mxu0 0.0
        %910 = vmatpush.msra.mxu0 %v810
        %911 = vmatmul.f32.gmra.mxu0 %v884
        %v912 = vpop.f32.mrf.mxu0
        %v913 = vadd.f32 %v872, %v912
        %914 = vmatmul.f32.gmra.mxu0 %v887
        %v915 = vpop.f32.mrf.mxu0
        %v916 = vadd.f32 %v875, %v915
        %917 = vmatmul.f32.gmra.mxu0 %v890
        %v918 = vpop.f32.mrf.mxu0
        %v919 = vadd.f32 %v878, %v918
        %920 = vmatmul.f32.gmra.mxu0 %v893
        %v921 = vpop.f32.mrf.mxu0
        %v922 = vadd.f32 %v881, %v921
        %923 = vdwg.mxu0
        %s924 = scalar_lea.vmem %s3, 64
        %v925 = vld [vmem:[%s924] sm:$0xff]
        %v926 = vld [vmem:[%s924 + $0x8] sm:$0xff]
        %v927 = vld [vmem:[%s924 + $0x10] sm:$0xff]
        %v928 = vld [vmem:[%s924 + $0x18] sm:$0xff]
        %v930 = vsel %vm841, %v925, 0
        %v933 = vsel %vm841, %v926, 0
        %v936 = vsel %vm841, %v927, 0
        %v939 = vsel %vm841, %v928, 0
        %941 = vmatpush.msra.mxu0 0.0
        %942 = vmatpush.msra.mxu0 0.0
        %943 = vmatpush.msra.mxu0 0.0
        %944 = vmatpush.msra.mxu0 0.0
        %945 = vmatpush.msra.mxu0 0.0
        %946 = vmatpush.msra.mxu0 0.0
        %947 = vmatpush.msra.mxu0 0.0
        %948 = vmatpush.msra.mxu0 0.0
        %949 = vmatpush.msra.mxu0 0.0
        %950 = vmatpush.msra.mxu0 0.0
        %951 = vmatpush.msra.mxu0 0.0
        %952 = vmatpush.msra.mxu0 0.0
        %953 = vmatpush.msra.mxu0 0.0
        %954 = vmatpush.msra.mxu0 0.0
        %955 = vmatpush.msra.mxu0 0.0
        %956 = vmatpush.msra.mxu0 %v787
        %957 = vmatmul.f32.gmra.mxu0 %v930
        %v958 = vpop.f32.mrf.mxu0
        %v959 = vadd.f32 0.0, %v958
        %960 = vmatmul.f32.gmra.mxu0 %v933
        %v961 = vpop.f32.mrf.mxu0
        %v962 = vadd.f32 0.0, %v961
        %963 = vmatmul.f32.gmra.mxu0 %v936
        %v964 = vpop.f32.mrf.mxu0
        %v965 = vadd.f32 0.0, %v964
        %966 = vmatmul.f32.gmra.mxu0 %v939
        %v967 = vpop.f32.mrf.mxu0
        %v968 = vadd.f32 0.0, %v967
        %969 = vdwg.mxu0
        %v970 = vadd.f32 %v913, %v959
        %v971 = vadd.f32 %v916, %v962
        %v972 = vadd.f32 %v919, %v965
        %v973 = vadd.f32 %v922, %v968
        %974 = vmatpush.msra.mxu0 0.0
        %975 = vmatpush.msra.mxu0 0.0
        %976 = vmatpush.msra.mxu0 0.0
        %977 = vmatpush.msra.mxu0 0.0
        %978 = vmatpush.msra.mxu0 0.0
        %979 = vmatpush.msra.mxu0 0.0
        %980 = vmatpush.msra.mxu0 0.0
        %981 = vmatpush.msra.mxu0 0.0
        %982 = vmatpush.msra.mxu0 %v523
        %983 = vmatpush.msra.mxu0 %v522
        %984 = vmatpush.msra.mxu0 %v521
        %985 = vmatpush.msra.mxu0 %v520
        %986 = vmatpush.msra.mxu0 %v519
        %987 = vmatpush.msra.mxu0 %v518
        %988 = vmatpush.msra.mxu0 %v517
        %989 = vmatpush.msra.mxu0 %v516
        %990 = vmatmul.f32.gmra.mxu0 %v790
        %v991 = vpop.f32.mrf.mxu0
        %v992 = vadd.f32 0.0, %v991
        %993 = vdwg.mxu0
        %s994 = scalar_lea.vmem %s3, 96
        %v995 = vld [vmem:[%s994] sm:$0xff]
        %v996 = vld [vmem:[%s994 + $0x8] sm:$0xff]
        %v997 = vld [vmem:[%s994 + $0x10] sm:$0xff]
        %v998 = vld [vmem:[%s994 + $0x18] sm:$0xff]
        %v1000 = vsel %vm841, %v995, 0
        %v1003 = vsel %vm841, %v996, 0
        %v1006 = vsel %vm841, %v997, 0
        %v1009 = vsel %vm841, %v998, 0
        %1011 = vmatpush.msra.mxu0 0.0
        %1012 = vmatpush.msra.mxu0 0.0
        %1013 = vmatpush.msra.mxu0 0.0
        %1014 = vmatpush.msra.mxu0 0.0
        %1015 = vmatpush.msra.mxu0 0.0
        %1016 = vmatpush.msra.mxu0 0.0
        %1017 = vmatpush.msra.mxu0 0.0
        %1018 = vmatpush.msra.mxu0 0.0
        %1019 = vmatpush.msra.mxu0 0.0
        %1020 = vmatpush.msra.mxu0 0.0
        %1021 = vmatpush.msra.mxu0 0.0
        %1022 = vmatpush.msra.mxu0 0.0
        %1023 = vmatpush.msra.mxu0 0.0
        %1024 = vmatpush.msra.mxu0 0.0
        %1025 = vmatpush.msra.mxu0 0.0
        %1026 = vmatpush.msra.mxu0 %v992
        %1027 = vmatmul.f32.gmra.mxu0 %v1000
        %v1028 = vpop.f32.mrf.mxu0
        %v1029 = vadd.f32 0.0, %v1028
        %1030 = vmatmul.f32.gmra.mxu0 %v1003
        %v1031 = vpop.f32.mrf.mxu0
        %v1032 = vadd.f32 0.0, %v1031
        %1033 = vmatmul.f32.gmra.mxu0 %v1006
        %v1034 = vpop.f32.mrf.mxu0
        %v1035 = vadd.f32 0.0, %v1034
        %1036 = vmatmul.f32.gmra.mxu0 %v1009
        %v1037 = vpop.f32.mrf.mxu0
        %v1038 = vadd.f32 0.0, %v1037
        %1039 = vdwg.mxu0
        %v1040 = vadd.f32 %v970, %v1029
        %v1041 = vadd.f32 %v971, %v1032
        %v1042 = vadd.f32 %v972, %v1035
        %v1043 = vadd.f32 %v973, %v1038
        %1044 = vmatpush.msra.mxu0 0.0
        %1045 = vmatpush.msra.mxu0 0.0
        %1046 = vmatpush.msra.mxu0 0.0
        %1047 = vmatpush.msra.mxu0 0.0
        %1048 = vmatpush.msra.mxu0 0.0
        %1049 = vmatpush.msra.mxu0 0.0
        %1050 = vmatpush.msra.mxu0 0.0
        %1051 = vmatpush.msra.mxu0 0.0
        %1052 = vmatpush.msra.mxu0 %v602
        %1053 = vmatpush.msra.mxu0 %v601
        %1054 = vmatpush.msra.mxu0 %v600
        %1055 = vmatpush.msra.mxu0 %v599
        %1056 = vmatpush.msra.mxu0 %v598
        %1057 = vmatpush.msra.mxu0 %v597
        %1058 = vmatpush.msra.mxu0 %v596
        %1059 = vmatpush.msra.mxu0 %v595
        %1060 = vmatmul.f32.gmra.mxu0 %v790
        %v1061 = vpop.f32.mrf.mxu0
        %v1062 = vadd.f32 0.0, %v1061
        %1063 = vdwg.mxu0
        %s1064 = scalar_lea.vmem %s3, 128
        %v1065 = vld [vmem:[%s1064] sm:$0xff]
        %v1066 = vld [vmem:[%s1064 + $0x8] sm:$0xff]
        %v1067 = vld [vmem:[%s1064 + $0x10] sm:$0xff]
        %v1068 = vld [vmem:[%s1064 + $0x18] sm:$0xff]
        %v1070 = vsel %vm841, %v1065, 0
        %v1073 = vsel %vm841, %v1066, 0
        %v1076 = vsel %vm841, %v1067, 0
        %v1079 = vsel %vm841, %v1068, 0
        %1081 = vmatpush.msra.mxu0 0.0
        %1082 = vmatpush.msra.mxu0 0.0
        %1083 = vmatpush.msra.mxu0 0.0
        %1084 = vmatpush.msra.mxu0 0.0
        %1085 = vmatpush.msra.mxu0 0.0
        %1086 = vmatpush.msra.mxu0 0.0
        %1087 = vmatpush.msra.mxu0 0.0
        %1088 = vmatpush.msra.mxu0 0.0
        %1089 = vmatpush.msra.mxu0 0.0
        %1090 = vmatpush.msra.mxu0 0.0
        %1091 = vmatpush.msra.mxu0 0.0
        %1092 = vmatpush.msra.mxu0 0.0
        %1093 = vmatpush.msra.mxu0 0.0
        %1094 = vmatpush.msra.mxu0 0.0
        %1095 = vmatpush.msra.mxu0 0.0
        %1096 = vmatpush.msra.mxu0 %v1062
        %1097 = vmatmul.f32.gmra.mxu0 %v1070
        %v1098 = vpop.f32.mrf.mxu0
        %v1099 = vadd.f32 0.0, %v1098
        %1100 = vmatmul.f32.gmra.mxu0 %v1073
        %v1101 = vpop.f32.mrf.mxu0
        %v1102 = vadd.f32 0.0, %v1101
        %1103 = vmatmul.f32.gmra.mxu0 %v1076
        %v1104 = vpop.f32.mrf.mxu0
        %v1105 = vadd.f32 0.0, %v1104
        %1106 = vmatmul.f32.gmra.mxu0 %v1079
        %v1107 = vpop.f32.mrf.mxu0
        %v1108 = vadd.f32 0.0, %v1107
        %1109 = vdwg.mxu0
        %v1110 = vadd.f32 %v1040, %v1099
        %v1111 = vadd.f32 %v1041, %v1102
        %v1112 = vadd.f32 %v1042, %v1105
        %v1113 = vadd.f32 %v1043, %v1108
        %v1114 = vld [vmem:[%s4] sm:$0xff]
        %v1115 = vld [vmem:[%s4 + $0x8] sm:$0xff]
        %v1116 = vld [vmem:[%s4 + $0x10] sm:$0xff]
        %v1117 = vld [vmem:[%s4 + $0x18] sm:$0xff]
        %1119 = vset.pattern.permute.xlu0 0
        %1120 = vperm.xlu0 %1119, %v1114
        %v1121 = vpop.permute.xlu0 %1120
        %1124 = vset.pattern.permute.xlu0 0
        %1125 = vperm.xlu0 %1124, %v1115
        %v1126 = vpop.permute.xlu0 %1125
        %1129 = vset.pattern.permute.xlu0 0
        %1130 = vperm.xlu0 %1129, %v1116
        %v1131 = vpop.permute.xlu0 %1130
        %1134 = vset.pattern.permute.xlu0 0
        %1135 = vperm.xlu0 %1134, %v1117
        %v1136 = vpop.permute.xlu0 %1135
        %v1138 = vadd.f32 %v1110, %v1121
        %v1139 = vadd.f32 %v1111, %v1126
        %v1140 = vadd.f32 %v1112, %v1131
        %v1141 = vadd.f32 %v1113, %v1136
        %v1142 = vmax.f32 %v1138, 0.0
        %v1143 = vmax.f32 %v1139, 0.0
        %v1144 = vmax.f32 %v1140, 0.0
        %v1145 = vmax.f32 %v1141, 0.0
        %v1147 = vsel %vm788, %v1142, 0
        %v1150 = vsel %vm788, %v1143, 0
        %v1153 = vsel %vm788, %v1144, 0
        %v1156 = vsel %vm788, %v1145, 0
        %1158 = vmatpush.msra.mxu0 0.0
        %1159 = vmatpush.msra.mxu0 0.0
        %1160 = vmatpush.msra.mxu0 0.0
        %1161 = vmatpush.msra.mxu0 0.0
        %1162 = vmatpush.msra.mxu0 0.0
        %1163 = vmatpush.msra.mxu0 0.0
        %1164 = vmatpush.msra.mxu0 0.0
        %1165 = vmatpush.msra.mxu0 0.0
        %1166 = vmatpush.msra.mxu0 %v689
        %1167 = vmatpush.msra.mxu0 %v688
        %1168 = vmatpush.msra.mxu0 %v687
        %1169 = vmatpush.msra.mxu0 %v686
        %1170 = vmatpush.msra.mxu0 %v685
        %1171 = vmatpush.msra.mxu0 %v684
        %1172 = vmatpush.msra.mxu0 %v683
        %1173 = vmatpush.msra.mxu0 %v682
        %1174 = vmatmul.f32.gmra.mxu0 %v1147
        %v1175 = vpop.f32.mrf.mxu0
        %v1176 = vadd.f32 0.0, %v1175
        %1177 = vmatmul.f32.gmra.mxu0 %v1150
        %v1178 = vpop.f32.mrf.mxu0
        %v1179 = vadd.f32 0.0, %v1178
        %1180 = vmatmul.f32.gmra.mxu0 %v1153
        %v1181 = vpop.f32.mrf.mxu0
        %v1182 = vadd.f32 0.0, %v1181
        %1183 = vmatmul.f32.gmra.mxu0 %v1156
        %v1184 = vpop.f32.mrf.mxu0
        %v1185 = vadd.f32 0.0, %v1184
        %1186 = vdwg.mxu0
        %1187 = vmatpush.msra.mxu0 0.0
        %1188 = vmatpush.msra.mxu0 0.0
        %1189 = vmatpush.msra.mxu0 0.0
        %1190 = vmatpush.msra.mxu0 0.0
        %1191 = vmatpush.msra.mxu0 0.0
        %1192 = vmatpush.msra.mxu0 0.0
        %1193 = vmatpush.msra.mxu0 0.0
        %1194 = vmatpush.msra.mxu0 0.0
        %1195 = vmatpush.msra.mxu0 %v758
        %1196 = vmatpush.msra.mxu0 %v757
        %1197 = vmatpush.msra.mxu0 %v756
        %1198 = vmatpush.msra.mxu0 %v755
        %1199 = vmatpush.msra.mxu0 %v754
        %1200 = vmatpush.msra.mxu0 %v753
        %1201 = vmatpush.msra.mxu0 %v752
        %1202 = vmatpush.msra.mxu0 %v751
        %1203 = vmatmul.f32.gmra.mxu0 %v1147
        %v1204 = vpop.f32.mrf.mxu0
        %v1205 = vadd.f32 0.0, %v1204
        %1206 = vmatmul.f32.gmra.mxu0 %v1150
        %v1207 = vpop.f32.mrf.mxu0
        %v1208 = vadd.f32 0.0, %v1207
        %1209 = vmatmul.f32.gmra.mxu0 %v1153
        %v1210 = vpop.f32.mrf.mxu0
        %v1211 = vadd.f32 0.0, %v1210
        %1212 = vmatmul.f32.gmra.mxu0 %v1156
        %v1213 = vpop.f32.mrf.mxu0
        %v1214 = vadd.f32 0.0, %v1213
        %1215 = vdwg.mxu0
        %v1216 = vmax.f32 %v1176, %v1205
        %v1217 = vmax.f32 %v1179, %v1208
        %v1218 = vmax.f32 %v1182, %v1211
        %v1219 = vmax.f32 %v1185, %v1214
        %vm1220 = vcmask 261120
        %v1222 = vsel %vm1220, %v1216, 0
        %v1225 = vsel %vm1220, %v1217, 0
        %v1228 = vsel %vm1220, %v1218, 0
        %v1231 = vsel %vm1220, %v1219, 0
        %1233 = vmatpush.msra.mxu0 0.0
        %1234 = vmatpush.msra.mxu0 0.0
        %1235 = vmatpush.msra.mxu0 0.0
        %1236 = vmatpush.msra.mxu0 0.0
        %1237 = vmatpush.msra.mxu0 0.0
        %1238 = vmatpush.msra.mxu0 0.0
        %1239 = vmatpush.msra.mxu0 0.0
        %1240 = vmatpush.msra.mxu0 0.0
        %1241 = vmatpush.msra.mxu0 0.0
        %1242 = vmatpush.msra.mxu0 0.0
        %1243 = vmatpush.msra.mxu0 0.0
        %1244 = vmatpush.msra.mxu0 0.0
        %1245 = vmatpush.msra.mxu0 %v350
        %1246 = vmatpush.msra.mxu0 %v349
        %1247 = vmatpush.msra.mxu0 %v348
        %1248 = vmatpush.msra.mxu0 %v347
        %1249 = vmatmul.f32.gmra.mxu0 %v1222
        %v1250 = vpop.f32.mrf.mxu0
        %v1251 = vadd.f32 0.0, %v1250
        %1252 = vmatmul.f32.gmra.mxu0 %v1225
        %v1253 = vpop.f32.mrf.mxu0
        %v1254 = vadd.f32 0.0, %v1253
        %1255 = vmatmul.f32.gmra.mxu0 %v1228
        %v1256 = vpop.f32.mrf.mxu0
        %v1257 = vadd.f32 0.0, %v1256
        %1258 = vmatmul.f32.gmra.mxu0 %v1231
        %v1259 = vpop.f32.mrf.mxu0
        %v1260 = vadd.f32 0.0, %v1259
        %1261 = vdwg.mxu0
        %v1262 = vld [vmem:[%s5] sm:$0xff]
        %v1263 = vld [vmem:[%s5 + $0x8] sm:$0xff]
        %v1264 = vld [vmem:[%s5 + $0x10] sm:$0xff]
        %v1265 = vld [vmem:[%s5 + $0x18] sm:$0xff]
        %v1266 = vld [vmem:[%s5 + $0x20] sm:$0xff]
        %v1267 = vld [vmem:[%s5 + $0x28] sm:$0xff]
        %v1268 = vld [vmem:[%s5 + $0x30] sm:$0xff]
        %v1269 = vld [vmem:[%s5 + $0x38] sm:$0xff]
        %1270 = vmatpush.msra.mxu0 0.0
        %1271 = vmatpush.msra.mxu0 0.0
        %1272 = vmatpush.msra.mxu0 0.0
        %1273 = vmatpush.msra.mxu0 0.0
        %1274 = vmatpush.msra.mxu0 0.0
        %1275 = vmatpush.msra.mxu0 0.0
        %1276 = vmatpush.msra.mxu0 0.0
        %1277 = vmatpush.msra.mxu0 0.0
        %1278 = vmatpush.msra.mxu0 0.0
        %1279 = vmatpush.msra.mxu0 0.0
        %1280 = vmatpush.msra.mxu0 0.0
        %1281 = vmatpush.msra.mxu0 0.0
        %1282 = vmatpush.msra.mxu0 %v428
        %1283 = vmatpush.msra.mxu0 %v427
        %1284 = vmatpush.msra.mxu0 %v426
        %1285 = vmatpush.msra.mxu0 %v425
        %1286 = vmatmul.f32.gmra.mxu0 %v1222
        %v1287 = vpop.f32.mrf.mxu0
        %v1288 = vadd.f32 0.0, %v1287
        %1289 = vmatmul.f32.gmra.mxu0 %v1225
        %v1290 = vpop.f32.mrf.mxu0
        %v1291 = vadd.f32 0.0, %v1290
        %1292 = vmatmul.f32.gmra.mxu0 %v1228
        %v1293 = vpop.f32.mrf.mxu0
        %v1294 = vadd.f32 0.0, %v1293
        %1295 = vmatmul.f32.gmra.mxu0 %v1231
        %v1296 = vpop.f32.mrf.mxu0
        %v1297 = vadd.f32 0.0, %v1296
        %1298 = vdwg.mxu0
        %s1299 = scalar_lea.vmem %s5, 64
        %v1300 = vld [vmem:[%s1299] sm:$0xff]
        %v1301 = vld [vmem:[%s1299 + $0x8] sm:$0xff]
        %v1302 = vld [vmem:[%s1299 + $0x10] sm:$0xff]
        %v1303 = vld [vmem:[%s1299 + $0x18] sm:$0xff]
        %v1304 = vld [vmem:[%s1299 + $0x20] sm:$0xff]
        %v1305 = vld [vmem:[%s1299 + $0x28] sm:$0xff]
        %v1306 = vld [vmem:[%s1299 + $0x30] sm:$0xff]
        %v1307 = vld [vmem:[%s1299 + $0x38] sm:$0xff]
        %v1309 = vsel %vm1220, %v1300, 0
        %v1312 = vsel %vm1220, %v1301, 0
        %v1315 = vsel %vm1220, %v1302, 0
        %v1318 = vsel %vm1220, %v1303, 0
        %v1321 = vsel %vm1220, %v1304, 0
        %v1324 = vsel %vm1220, %v1305, 0
        %v1327 = vsel %vm1220, %v1306, 0
        %v1330 = vsel %vm1220, %v1307, 0
        %1332 = vmatpush.msra.mxu0 0.0
        %1333 = vmatpush.msra.mxu0 0.0
        %1334 = vmatpush.msra.mxu0 0.0
        %1335 = vmatpush.msra.mxu0 0.0
        %1336 = vmatpush.msra.mxu0 0.0
        %1337 = vmatpush.msra.mxu0 0.0
        %1338 = vmatpush.msra.mxu0 0.0
        %1339 = vmatpush.msra.mxu0 0.0
        %1340 = vmatpush.msra.mxu0 0.0
        %1341 = vmatpush.msra.mxu0 0.0
        %1342 = vmatpush.msra.mxu0 0.0
        %1343 = vmatpush.msra.mxu0 0.0
        %1344 = vmatpush.msra.mxu0 %v1297
        %1345 = vmatpush.msra.mxu0 %v1294
        %1346 = vmatpush.msra.mxu0 %v1291
        %1347 = vmatpush.msra.mxu0 %v1288
        %1348 = vmatmul.f32.gmra.mxu0 %v1309
        %v1349 = vpop.f32.mrf.mxu0
        %v1350 = vadd.f32 0.0, %v1349
        %1351 = vmatmul.f32.gmra.mxu0 %v1312
        %v1352 = vpop.f32.mrf.mxu0
        %v1353 = vadd.f32 0.0, %v1352
        %1354 = vmatmul.f32.gmra.mxu0 %v1315
        %v1355 = vpop.f32.mrf.mxu0
        %v1356 = vadd.f32 0.0, %v1355
        %1357 = vmatmul.f32.gmra.mxu0 %v1318
        %v1358 = vpop.f32.mrf.mxu0
        %v1359 = vadd.f32 0.0, %v1358
        %1360 = vmatmul.f32.gmra.mxu0 %v1321
        %v1361 = vpop.f32.mrf.mxu0
        %v1362 = vadd.f32 0.0, %v1361
        %1363 = vmatmul.f32.gmra.mxu0 %v1324
        %v1364 = vpop.f32.mrf.mxu0
        %v1365 = vadd.f32 0.0, %v1364
        %1366 = vmatmul.f32.gmra.mxu0 %v1327
        %v1367 = vpop.f32.mrf.mxu0
        %v1368 = vadd.f32 0.0, %v1367
        %1369 = vmatmul.f32.gmra.mxu0 %v1330
        %v1370 = vpop.f32.mrf.mxu0
        %v1371 = vadd.f32 0.0, %v1370
        %1372 = vdwg.mxu0
        %v1374 = vsel %vm1220, %v1262, 0
        %v1377 = vsel %vm1220, %v1263, 0
        %v1380 = vsel %vm1220, %v1264, 0
        %v1383 = vsel %vm1220, %v1265, 0
        %v1386 = vsel %vm1220, %v1266, 0
        %v1389 = vsel %vm1220, %v1267, 0
        %v1392 = vsel %vm1220, %v1268, 0
        %v1395 = vsel %vm1220, %v1269, 0
        %1397 = vmatpush.msra.mxu0 0.0
        %1398 = vmatpush.msra.mxu0 0.0
        %1399 = vmatpush.msra.mxu0 0.0
        %1400 = vmatpush.msra.mxu0 0.0
        %1401 = vmatpush.msra.mxu0 0.0
        %1402 = vmatpush.msra.mxu0 0.0
        %1403 = vmatpush.msra.mxu0 0.0
        %1404 = vmatpush.msra.mxu0 0.0
        %1405 = vmatpush.msra.mxu0 0.0
        %1406 = vmatpush.msra.mxu0 0.0
        %1407 = vmatpush.msra.mxu0 0.0
        %1408 = vmatpush.msra.mxu0 0.0
        %1409 = vmatpush.msra.mxu0 %v1260
        %1410 = vmatpush.msra.mxu0 %v1257
        %1411 = vmatpush.msra.mxu0 %v1254
        %1412 = vmatpush.msra.mxu0 %v1251
        %1413 = vmatmul.f32.gmra.mxu0 %v1374
        %v1414 = vpop.f32.mrf.mxu0
        %v1415 = vadd.f32 %v1350, %v1414
        %1416 = vmatmul.f32.gmra.mxu0 %v1377
        %v1417 = vpop.f32.mrf.mxu0
        %v1418 = vadd.f32 %v1353, %v1417
        %1419 = vmatmul.f32.gmra.mxu0 %v1380
        %v1420 = vpop.f32.mrf.mxu0
        %v1421 = vadd.f32 %v1356, %v1420
        %1422 = vmatmul.f32.gmra.mxu0 %v1383
        %v1423 = vpop.f32.mrf.mxu0
        %v1424 = vadd.f32 %v1359, %v1423
        %1425 = vmatmul.f32.gmra.mxu0 %v1386
        %v1426 = vpop.f32.mrf.mxu0
        %v1427 = vadd.f32 %v1362, %v1426
        %1428 = vmatmul.f32.gmra.mxu0 %v1389
        %v1429 = vpop.f32.mrf.mxu0
        %v1430 = vadd.f32 %v1365, %v1429
        %1431 = vmatmul.f32.gmra.mxu0 %v1392
        %v1432 = vpop.f32.mrf.mxu0
        %v1433 = vadd.f32 %v1368, %v1432
        %1434 = vmatmul.f32.gmra.mxu0 %v1395
        %v1435 = vpop.f32.mrf.mxu0
        %v1436 = vadd.f32 %v1371, %v1435
        %1437 = vdwg.mxu0
        %s1438 = scalar_lea.vmem %s5, 128
        %v1439 = vld [vmem:[%s1438] sm:$0xff]
        %v1440 = vld [vmem:[%s1438 + $0x8] sm:$0xff]
        %v1441 = vld [vmem:[%s1438 + $0x10] sm:$0xff]
        %v1442 = vld [vmem:[%s1438 + $0x18] sm:$0xff]
        %v1443 = vld [vmem:[%s1438 + $0x20] sm:$0xff]
        %v1444 = vld [vmem:[%s1438 + $0x28] sm:$0xff]
        %v1445 = vld [vmem:[%s1438 + $0x30] sm:$0xff]
        %v1446 = vld [vmem:[%s1438 + $0x38] sm:$0xff]
        %v1448 = vsel %vm1220, %v1439, 0
        %v1451 = vsel %vm1220, %v1440, 0
        %v1454 = vsel %vm1220, %v1441, 0
        %v1457 = vsel %vm1220, %v1442, 0
        %v1460 = vsel %vm1220, %v1443, 0
        %v1463 = vsel %vm1220, %v1444, 0
        %v1466 = vsel %vm1220, %v1445, 0
        %v1469 = vsel %vm1220, %v1446, 0
        %1471 = vmatpush.msra.mxu0 0.0
        %1472 = vmatpush.msra.mxu0 0.0
        %1473 = vmatpush.msra.mxu0 0.0
        %1474 = vmatpush.msra.mxu0 0.0
        %1475 = vmatpush.msra.mxu0 0.0
        %1476 = vmatpush.msra.mxu0 0.0
        %1477 = vmatpush.msra.mxu0 0.0
        %1478 = vmatpush.msra.mxu0 0.0
        %1479 = vmatpush.msra.mxu0 0.0
        %1480 = vmatpush.msra.mxu0 0.0
        %1481 = vmatpush.msra.mxu0 0.0
        %1482 = vmatpush.msra.mxu0 0.0
        %1483 = vmatpush.msra.mxu0 %v1219
        %1484 = vmatpush.msra.mxu0 %v1218
        %1485 = vmatpush.msra.mxu0 %v1217
        %1486 = vmatpush.msra.mxu0 %v1216
        %1487 = vmatmul.f32.gmra.mxu0 %v1448
        %v1488 = vpop.f32.mrf.mxu0
        %v1489 = vadd.f32 0.0, %v1488
        %1490 = vmatmul.f32.gmra.mxu0 %v1451
        %v1491 = vpop.f32.mrf.mxu0
        %v1492 = vadd.f32 0.0, %v1491
        %1493 = vmatmul.f32.gmra.mxu0 %v1454
        %v1494 = vpop.f32.mrf.mxu0
        %v1495 = vadd.f32 0.0, %v1494
        %1496 = vmatmul.f32.gmra.mxu0 %v1457
        %v1497 = vpop.f32.mrf.mxu0
        %v1498 = vadd.f32 0.0, %v1497
        %1499 = vmatmul.f32.gmra.mxu0 %v1460
        %v1500 = vpop.f32.mrf.mxu0
        %v1501 = vadd.f32 0.0, %v1500
        %1502 = vmatmul.f32.gmra.mxu0 %v1463
        %v1503 = vpop.f32.mrf.mxu0
        %v1504 = vadd.f32 0.0, %v1503
        %1505 = vmatmul.f32.gmra.mxu0 %v1466
        %v1506 = vpop.f32.mrf.mxu0
        %v1507 = vadd.f32 0.0, %v1506
        %1508 = vmatmul.f32.gmra.mxu0 %v1469
        %v1509 = vpop.f32.mrf.mxu0
        %v1510 = vadd.f32 0.0, %v1509
        %1511 = vdwg.mxu0
        %v1512 = vadd.f32 %v1415, %v1489
        %v1513 = vadd.f32 %v1418, %v1492
        %v1514 = vadd.f32 %v1421, %v1495
        %v1515 = vadd.f32 %v1424, %v1498
        %v1516 = vadd.f32 %v1427, %v1501
        %v1517 = vadd.f32 %v1430, %v1504
        %v1518 = vadd.f32 %v1433, %v1507
        %v1519 = vadd.f32 %v1436, %v1510
        %1520 = vmatpush.msra.mxu0 0.0
        %1521 = vmatpush.msra.mxu0 0.0
        %1522 = vmatpush.msra.mxu0 0.0
        %1523 = vmatpush.msra.mxu0 0.0
        %1524 = vmatpush.msra.mxu0 0.0
        %1525 = vmatpush.msra.mxu0 0.0
        %1526 = vmatpush.msra.mxu0 0.0
        %1527 = vmatpush.msra.mxu0 0.0
        %1528 = vmatpush.msra.mxu0 0.0
        %1529 = vmatpush.msra.mxu0 0.0
        %1530 = vmatpush.msra.mxu0 0.0
        %1531 = vmatpush.msra.mxu0 0.0
        %1532 = vmatpush.msra.mxu0 %v519
        %1533 = vmatpush.msra.mxu0 %v518
        %1534 = vmatpush.msra.mxu0 %v517
        %1535 = vmatpush.msra.mxu0 %v516
        %1536 = vmatmul.f32.gmra.mxu0 %v1222
        %v1537 = vpop.f32.mrf.mxu0
        %v1538 = vadd.f32 0.0, %v1537
        %1539 = vmatmul.f32.gmra.mxu0 %v1225
        %v1540 = vpop.f32.mrf.mxu0
        %v1541 = vadd.f32 0.0, %v1540
        %1542 = vmatmul.f32.gmra.mxu0 %v1228
        %v1543 = vpop.f32.mrf.mxu0
        %v1544 = vadd.f32 0.0, %v1543
        %1545 = vmatmul.f32.gmra.mxu0 %v1231
        %v1546 = vpop.f32.mrf.mxu0
        %v1547 = vadd.f32 0.0, %v1546
        %1548 = vdwg.mxu0
        %s1549 = scalar_lea.vmem %s5, 192
        %v1550 = vld [vmem:[%s1549] sm:$0xff]
        %v1551 = vld [vmem:[%s1549 + $0x8] sm:$0xff]
        %v1552 = vld [vmem:[%s1549 + $0x10] sm:$0xff]
        %v1553 = vld [vmem:[%s1549 + $0x18] sm:$0xff]
        %v1554 = vld [vmem:[%s1549 + $0x20] sm:$0xff]
        %v1555 = vld [vmem:[%s1549 + $0x28] sm:$0xff]
        %v1556 = vld [vmem:[%s1549 + $0x30] sm:$0xff]
        %v1557 = vld [vmem:[%s1549 + $0x38] sm:$0xff]
        %v1559 = vsel %vm1220, %v1550, 0
        %v1562 = vsel %vm1220, %v1551, 0
        %v1565 = vsel %vm1220, %v1552, 0
        %v1568 = vsel %vm1220, %v1553, 0
        %v1571 = vsel %vm1220, %v1554, 0
        %v1574 = vsel %vm1220, %v1555, 0
        %v1577 = vsel %vm1220, %v1556, 0
        %v1580 = vsel %vm1220, %v1557, 0
        %1582 = vmatpush.msra.mxu0 0.0
        %1583 = vmatpush.msra.mxu0 0.0
        %1584 = vmatpush.msra.mxu0 0.0
        %1585 = vmatpush.msra.mxu0 0.0
        %1586 = vmatpush.msra.mxu0 0.0
        %1587 = vmatpush.msra.mxu0 0.0
        %1588 = vmatpush.msra.mxu0 0.0
        %1589 = vmatpush.msra.mxu0 0.0
        %1590 = vmatpush.msra.mxu0 0.0
        %1591 = vmatpush.msra.mxu0 0.0
        %1592 = vmatpush.msra.mxu0 0.0
        %1593 = vmatpush.msra.mxu0 0.0
        %1594 = vmatpush.msra.mxu0 %v1547
        %1595 = vmatpush.msra.mxu0 %v1544
        %1596 = vmatpush.msra.mxu0 %v1541
        %1597 = vmatpush.msra.mxu0 %v1538
        %1598 = vmatmul.f32.gmra.mxu0 %v1559
        %v1599 = vpop.f32.mrf.mxu0
        %v1600 = vadd.f32 0.0, %v1599
        %1601 = vmatmul.f32.gmra.mxu0 %v1562
        %v1602 = vpop.f32.mrf.mxu0
        %v1603 = vadd.f32 0.0, %v1602
        %1604 = vmatmul.f32.gmra.mxu0 %v1565
        %v1605 = vpop.f32.mrf.mxu0
        %v1606 = vadd.f32 0.0, %v1605
        %1607 = vmatmul.f32.gmra.mxu0 %v1568
        %v1608 = vpop.f32.mrf.mxu0
        %v1609 = vadd.f32 0.0, %v1608
        %1610 = vmatmul.f32.gmra.mxu0 %v1571
        %v1611 = vpop.f32.mrf.mxu0
        %v1612 = vadd.f32 0.0, %v1611
        %1613 = vmatmul.f32.gmra.mxu0 %v1574
        %v1614 = vpop.f32.mrf.mxu0
        %v1615 = vadd.f32 0.0, %v1614
        %1616 = vmatmul.f32.gmra.mxu0 %v1577
        %v1617 = vpop.f32.mrf.mxu0
        %v1618 = vadd.f32 0.0, %v1617
        %1619 = vmatmul.f32.gmra.mxu0 %v1580
        %v1620 = vpop.f32.mrf.mxu0
        %v1621 = vadd.f32 0.0, %v1620
        %1622 = vdwg.mxu0
        %v1623 = vadd.f32 %v1512, %v1600
        %v1624 = vadd.f32 %v1513, %v1603
        %v1625 = vadd.f32 %v1514, %v1606
        %v1626 = vadd.f32 %v1515, %v1609
        %v1627 = vadd.f32 %v1516, %v1612
        %v1628 = vadd.f32 %v1517, %v1615
        %v1629 = vadd.f32 %v1518, %v1618
        %v1630 = vadd.f32 %v1519, %v1621
        %1631 = vmatpush.msra.mxu0 0.0
        %1632 = vmatpush.msra.mxu0 0.0
        %1633 = vmatpush.msra.mxu0 0.0
        %1634 = vmatpush.msra.mxu0 0.0
        %1635 = vmatpush.msra.mxu0 0.0
        %1636 = vmatpush.msra.mxu0 0.0
        %1637 = vmatpush.msra.mxu0 0.0
        %1638 = vmatpush.msra.mxu0 0.0
        %1639 = vmatpush.msra.mxu0 0.0
        %1640 = vmatpush.msra.mxu0 0.0
        %1641 = vmatpush.msra.mxu0 0.0
        %1642 = vmatpush.msra.mxu0 0.0
        %1643 = vmatpush.msra.mxu0 %v598
        %1644 = vmatpush.msra.mxu0 %v597
        %1645 = vmatpush.msra.mxu0 %v596
        %1646 = vmatpush.msra.mxu0 %v595
        %1647 = vmatmul.f32.gmra.mxu0 %v1222
        %v1648 = vpop.f32.mrf.mxu0
        %v1649 = vadd.f32 0.0, %v1648
        %1650 = vmatmul.f32.gmra.mxu0 %v1225
        %v1651 = vpop.f32.mrf.mxu0
        %v1652 = vadd.f32 0.0, %v1651
        %1653 = vmatmul.f32.gmra.mxu0 %v1228
        %v1654 = vpop.f32.mrf.mxu0
        %v1655 = vadd.f32 0.0, %v1654
        %1656 = vmatmul.f32.gmra.mxu0 %v1231
        %v1657 = vpop.f32.mrf.mxu0
        %v1658 = vadd.f32 0.0, %v1657
        %1659 = vdwg.mxu0
        %s1660 = scalar_lea.vmem %s5, 256
        %v1661 = vld [vmem:[%s1660] sm:$0xff]
        %v1662 = vld [vmem:[%s1660 + $0x8] sm:$0xff]
        %v1663 = vld [vmem:[%s1660 + $0x10] sm:$0xff]
        %v1664 = vld [vmem:[%s1660 + $0x18] sm:$0xff]
        %v1665 = vld [vmem:[%s1660 + $0x20] sm:$0xff]
        %v1666 = vld [vmem:[%s1660 + $0x28] sm:$0xff]
        %v1667 = vld [vmem:[%s1660 + $0x30] sm:$0xff]
        %v1668 = vld [vmem:[%s1660 + $0x38] sm:$0xff]
        %v1670 = vsel %vm1220, %v1661, 0
        %v1673 = vsel %vm1220, %v1662, 0
        %v1676 = vsel %vm1220, %v1663, 0
        %v1679 = vsel %vm1220, %v1664, 0
        %v1682 = vsel %vm1220, %v1665, 0
        %v1685 = vsel %vm1220, %v1666, 0
        %v1688 = vsel %vm1220, %v1667, 0
        %v1691 = vsel %vm1220, %v1668, 0
        %1693 = vmatpush.msra.mxu0 0.0
        %1694 = vmatpush.msra.mxu0 0.0
        %1695 = vmatpush.msra.mxu0 0.0
        %1696 = vmatpush.msra.mxu0 0.0
        %1697 = vmatpush.msra.mxu0 0.0
        %1698 = vmatpush.msra.mxu0 0.0
        %1699 = vmatpush.msra.mxu0 0.0
        %1700 = vmatpush.msra.mxu0 0.0
        %1701 = vmatpush.msra.mxu0 0.0
        %1702 = vmatpush.msra.mxu0 0.0
        %1703 = vmatpush.msra.mxu0 0.0
        %1704 = vmatpush.msra.mxu0 0.0
        %1705 = vmatpush.msra.mxu0 %v1658
        %1706 = vmatpush.msra.mxu0 %v1655
        %1707 = vmatpush.msra.mxu0 %v1652
        %1708 = vmatpush.msra.mxu0 %v1649
        %1709 = vmatmul.f32.gmra.mxu0 %v1670
        %v1710 = vpop.f32.mrf.mxu0
        %v1711 = vadd.f32 0.0, %v1710
        %1712 = vmatmul.f32.gmra.mxu0 %v1673
        %v1713 = vpop.f32.mrf.mxu0
        %v1714 = vadd.f32 0.0, %v1713
        %1715 = vmatmul.f32.gmra.mxu0 %v1676
        %v1716 = vpop.f32.mrf.mxu0
        %v1717 = vadd.f32 0.0, %v1716
        %1718 = vmatmul.f32.gmra.mxu0 %v1679
        %v1719 = vpop.f32.mrf.mxu0
        %v1720 = vadd.f32 0.0, %v1719
        %1721 = vmatmul.f32.gmra.mxu0 %v1682
        %v1722 = vpop.f32.mrf.mxu0
        %v1723 = vadd.f32 0.0, %v1722
        %1724 = vmatmul.f32.gmra.mxu0 %v1685
        %v1725 = vpop.f32.mrf.mxu0
        %v1726 = vadd.f32 0.0, %v1725
        %1727 = vmatmul.f32.gmra.mxu0 %v1688
        %v1728 = vpop.f32.mrf.mxu0
        %v1729 = vadd.f32 0.0, %v1728
        %1730 = vmatmul.f32.gmra.mxu0 %v1691
        %v1731 = vpop.f32.mrf.mxu0
        %v1732 = vadd.f32 0.0, %v1731
        %1733 = vdwg.mxu0
        %v1734 = vadd.f32 %v1623, %v1711
        %v1735 = vadd.f32 %v1624, %v1714
        %v1736 = vadd.f32 %v1625, %v1717
        %v1737 = vadd.f32 %v1626, %v1720
        %v1738 = vadd.f32 %v1627, %v1723
        %v1739 = vadd.f32 %v1628, %v1726
        %v1740 = vadd.f32 %v1629, %v1729
        %v1741 = vadd.f32 %v1630, %v1732
        %v1742 = vld [vmem:[%s6] sm:$0xff]
        %v1743 = vld [vmem:[%s6 + $0x8] sm:$0xff]
        %v1744 = vld [vmem:[%s6 + $0x10] sm:$0xff]
        %v1745 = vld [vmem:[%s6 + $0x18] sm:$0xff]
        %v1746 = vld [vmem:[%s6 + $0x20] sm:$0xff]
        %v1747 = vld [vmem:[%s6 + $0x28] sm:$0xff]
        %v1748 = vld [vmem:[%s6 + $0x30] sm:$0xff]
        %v1749 = vld [vmem:[%s6 + $0x38] sm:$0xff]
        %1751 = vset.pattern.permute.xlu0 0
        %1752 = vperm.xlu0 %1751, %v1742
        %v1753 = vpop.permute.xlu0 %1752
        %1756 = vset.pattern.permute.xlu0 0
        %1757 = vperm.xlu0 %1756, %v1743
        %v1758 = vpop.permute.xlu0 %1757
        %1761 = vset.pattern.permute.xlu0 0
        %1762 = vperm.xlu0 %1761, %v1744
        %v1763 = vpop.permute.xlu0 %1762
        %1766 = vset.pattern.permute.xlu0 0
        %1767 = vperm.xlu0 %1766, %v1745
        %v1768 = vpop.permute.xlu0 %1767
        %1771 = vset.pattern.permute.xlu0 0
        %1772 = vperm.xlu0 %1771, %v1746
        %v1773 = vpop.permute.xlu0 %1772
        %1776 = vset.pattern.permute.xlu0 0
        %1777 = vperm.xlu0 %1776, %v1747
        %v1778 = vpop.permute.xlu0 %1777
        %1781 = vset.pattern.permute.xlu0 0
        %1782 = vperm.xlu0 %1781, %v1748
        %v1783 = vpop.permute.xlu0 %1782
        %1786 = vset.pattern.permute.xlu0 0
        %1787 = vperm.xlu0 %1786, %v1749
        %v1788 = vpop.permute.xlu0 %1787
        %v1790 = vadd.f32 %v1734, %v1753
        %v1791 = vadd.f32 %v1735, %v1758
        %v1792 = vadd.f32 %v1736, %v1763
        %v1793 = vadd.f32 %v1737, %v1768
        %v1794 = vadd.f32 %v1738, %v1773
        %v1795 = vadd.f32 %v1739, %v1778
        %v1796 = vadd.f32 %v1740, %v1783
        %v1797 = vadd.f32 %v1741, %v1788
        %v1798 = vmax.f32 %v1790, 0.0
        %v1799 = vmax.f32 %v1791, 0.0
        %v1800 = vmax.f32 %v1792, 0.0
        %v1801 = vmax.f32 %v1793, 0.0
        %v1802 = vmax.f32 %v1794, 0.0
        %v1803 = vmax.f32 %v1795, 0.0
        %v1804 = vmax.f32 %v1796, 0.0
        %v1805 = vmax.f32 %v1797, 0.0
        %v1807 = vsel %vm1220, %v1798, 0
        %v1810 = vsel %vm1220, %v1799, 0
        %v1813 = vsel %vm1220, %v1800, 0
        %v1816 = vsel %vm1220, %v1801, 0
        %v1819 = vsel %vm1220, %v1802, 0
        %v1822 = vsel %vm1220, %v1803, 0
        %v1825 = vsel %vm1220, %v1804, 0
        %v1828 = vsel %vm1220, %v1805, 0
        %1830 = vmatpush.msra.mxu0 0.0
        %1831 = vmatpush.msra.mxu0 0.0
        %1832 = vmatpush.msra.mxu0 0.0
        %1833 = vmatpush.msra.mxu0 0.0
        %1834 = vmatpush.msra.mxu0 0.0
        %1835 = vmatpush.msra.mxu0 0.0
        %1836 = vmatpush.msra.mxu0 0.0
        %1837 = vmatpush.msra.mxu0 0.0
        %1838 = vmatpush.msra.mxu0 0.0
        %1839 = vmatpush.msra.mxu0 0.0
        %1840 = vmatpush.msra.mxu0 0.0
        %1841 = vmatpush.msra.mxu0 0.0
        %1842 = vmatpush.msra.mxu0 %v685
        %1843 = vmatpush.msra.mxu0 %v684
        %1844 = vmatpush.msra.mxu0 %v683
        %1845 = vmatpush.msra.mxu0 %v682
        %1846 = vmatmul.f32.gmra.mxu0 %v1807
        %v1847 = vpop.f32.mrf.mxu0
        %v1848 = vadd.f32 0.0, %v1847
        %1849 = vmatmul.f32.gmra.mxu0 %v1810
        %v1850 = vpop.f32.mrf.mxu0
        %v1851 = vadd.f32 0.0, %v1850
        %1852 = vmatmul.f32.gmra.mxu0 %v1813
        %v1853 = vpop.f32.mrf.mxu0
        %v1854 = vadd.f32 0.0, %v1853
        %1855 = vmatmul.f32.gmra.mxu0 %v1816
        %v1856 = vpop.f32.mrf.mxu0
        %v1857 = vadd.f32 0.0, %v1856
        %1858 = vmatmul.f32.gmra.mxu0 %v1819
        %v1859 = vpop.f32.mrf.mxu0
        %v1860 = vadd.f32 0.0, %v1859
        %1861 = vmatmul.f32.gmra.mxu0 %v1822
        %v1862 = vpop.f32.mrf.mxu0
        %v1863 = vadd.f32 0.0, %v1862
        %1864 = vmatmul.f32.gmra.mxu0 %v1825
        %v1865 = vpop.f32.mrf.mxu0
        %v1866 = vadd.f32 0.0, %v1865
        %1867 = vmatmul.f32.gmra.mxu0 %v1828
        %v1868 = vpop.f32.mrf.mxu0
        %v1869 = vadd.f32 0.0, %v1868
        %1870 = vdwg.mxu0
        %1871 = vmatpush.msra.mxu0 0.0
        %1872 = vmatpush.msra.mxu0 0.0
        %1873 = vmatpush.msra.mxu0 0.0
        %1874 = vmatpush.msra.mxu0 0.0
        %1875 = vmatpush.msra.mxu0 0.0
        %1876 = vmatpush.msra.mxu0 0.0
        %1877 = vmatpush.msra.mxu0 0.0
        %1878 = vmatpush.msra.mxu0 0.0
        %1879 = vmatpush.msra.mxu0 0.0
        %1880 = vmatpush.msra.mxu0 0.0
        %1881 = vmatpush.msra.mxu0 0.0
        %1882 = vmatpush.msra.mxu0 0.0
        %1883 = vmatpush.msra.mxu0 %v754
        %1884 = vmatpush.msra.mxu0 %v753
        %1885 = vmatpush.msra.mxu0 %v752
        %1886 = vmatpush.msra.mxu0 %v751
        %1887 = vmatmul.f32.gmra.mxu0 %v1807
        %v1888 = vpop.f32.mrf.mxu0
        %v1889 = vadd.f32 0.0, %v1888
        %1890 = vmatmul.f32.gmra.mxu0 %v1810
        %v1891 = vpop.f32.mrf.mxu0
        %v1892 = vadd.f32 0.0, %v1891
        %1893 = vmatmul.f32.gmra.mxu0 %v1813
        %v1894 = vpop.f32.mrf.mxu0
        %v1895 = vadd.f32 0.0, %v1894
        %1896 = vmatmul.f32.gmra.mxu0 %v1816
        %v1897 = vpop.f32.mrf.mxu0
        %v1898 = vadd.f32 0.0, %v1897
        %1899 = vmatmul.f32.gmra.mxu0 %v1819
        %v1900 = vpop.f32.mrf.mxu0
        %v1901 = vadd.f32 0.0, %v1900
        %1902 = vmatmul.f32.gmra.mxu0 %v1822
        %v1903 = vpop.f32.mrf.mxu0
        %v1904 = vadd.f32 0.0, %v1903
        %1905 = vmatmul.f32.gmra.mxu0 %v1825
        %v1906 = vpop.f32.mrf.mxu0
        %v1907 = vadd.f32 0.0, %v1906
        %1908 = vmatmul.f32.gmra.mxu0 %v1828
        %v1909 = vpop.f32.mrf.mxu0
        %v1910 = vadd.f32 0.0, %v1909
        %1911 = vdwg.mxu0
        %v1912 = vmax.f32 %v1848, %v1889
        %v1913 = vmax.f32 %v1851, %v1892
        %v1914 = vmax.f32 %v1854, %v1895
        %v1915 = vmax.f32 %v1857, %v1898
        %v1916 = vmax.f32 %v1860, %v1901
        %v1917 = vmax.f32 %v1863, %v1904
        %v1918 = vmax.f32 %v1866, %v1907
        %v1919 = vmax.f32 %v1869, %v1910
        %vm1920 = vcmask 130048
        %1921 = vst.msk [vmem:[%s293] sm:$0xff] %vm1920, %v1912
        %1922 = vst.msk [vmem:[%s293 + $0x8] sm:$0xff] %vm1920, %v1913
        %1923 = vst.msk [vmem:[%s293 + $0x10] sm:$0xff] %vm1920, %v1914
        %1924 = vst.msk [vmem:[%s293 + $0x18] sm:$0xff] %vm1920, %v1915
        %1925 = vst.msk [vmem:[%s293 + $0x20] sm:$0xff] %vm1920, %v1916
        %1926 = vst.msk [vmem:[%s293 + $0x28] sm:$0xff] %vm1920, %v1917
        %1927 = vst.msk [vmem:[%s293 + $0x30] sm:$0xff] %vm1920, %v1918
        %1928 = vst.msk [vmem:[%s293 + $0x38] sm:$0xff] %vm1920, %v1919
        %p1929 = scmp.lt.s32.totalorder %s21, 1
        %s1930 = scalar_select %p1929, %s21, 1
        %s1931 = smul.addr %s1930, 8
        %s1932 = smul.addr %s1931, 8
        %s1933 = scalar_lea.vmem %s7, %s1932
        // Predicated region
        $region53: #{simple1d_cnn_forward.2} parent=47 // pred_check
          %p1934 = pneg %p191
        $region54: #{simple1d_cnn_forward.2} parent=47 // pred_check_branch
          %1936 = sbr.rel (%p1934) target = $region56
        $region55: #{simple1d_cnn_forward.2} parent=47 // pred_region
          _
        $region56: #{simple1d_cnn_forward.2} parent=47 // pred_fallthru
          _
      $region48: #{simple1d_cnn_forward.2} parent=5 // pred_fallthru
        _
      %p1937 = scmp.le.s32.totalorder 2, %s16
      // Predicated region
      $region57: #{simple1d_cnn_forward.2} parent=5 // pred_check
        %p1938 = pneg %p1937
      $region58: #{simple1d_cnn_forward.2} parent=5 // pred_check_branch
        %1940 = sbr.rel (%p1938) target = $region60
      $region59: #{simple1d_cnn_forward.2} parent=5 // pred_region
        %s1941 = ssub.s32 %s16, 2
        // Predicated region
        $region61: #{simple1d_cnn_forward.2} parent=59 // pred_check
          %p1942 = pneg %p197
        $region62: #{simple1d_cnn_forward.2} parent=59 // pred_check_branch
          %1944 = sbr.rel (%p1942) target = $region64
        $region63: #{simple1d_cnn_forward.2} parent=59 // pred_region
          %p1945 = scmp.lt.s32.totalorder %s22, 1
          %s1946 = scalar_select %p1945, %s22, 1
          %s1947 = smul.addr %s1946, 8
          %s1948 = smul.addr %s1947, 8
          %s1949 = scalar_lea.vmem %s7, %s1948
        $region64: #{simple1d_cnn_forward.2} parent=59 // pred_fallthru
          _
      $region60: #{simple1d_cnn_forward.2} parent=5 // pred_fallthru
        _
    $region6: #{simple1d_cnn_forward.2} parent=1 // loop_footer
      %s20 = sadd.s32 1, %s16
    $region7: #{simple1d_cnn_forward.2} parent=1 // loop_footer_branch
      %15 = sbr.rel target = $region3
    $region8: #{simple1d_cnn_forward.2} parent=1 // loop_exit
      _
    %1950 = vsyncpa [#allocation3], 1
    %s1951 = scalar_lea.sflag [#allocation3], 1
    %1952 = vsyncpa %s1951, 1

// kernel: simple1d_cnn_forward.3
$region0: #{simple1d_cnn_forward.3}
  #allocation0 [shape = 'u32[]', space=smem, size = 0x4, offset = 0x4, fixed_abs, tag = 'smem constant byte address 0x4 - core index']
  #allocation1 [shape = 'u32[72,128]{1,0:T(1,128)}', space=vmem, size = 0x9000, scoped, tag = 'internal scratch']
  #allocation2 [shape = 'f32[1,1]{1,0:T(1,128)S(1)}', space=vmem, size = 0x200, scoped, tag = 'scoped memory for simple1d_cnn_forward.3']
  %s0 = inlined_call_operand.vmem [shape: f32[2,1024], index: 0, kind: input, shape index: {}]
  %s1 = inlined_call_operand.vmem [shape: f32[1024,512], index: 1, kind: input, shape index: {}]
  %s2 = inlined_call_operand.vmem [shape: f32[1,512], index: 2, kind: input, shape index: {}]
  %s3 = inlined_call_operand.vmem [shape: f32[512,256], index: 3, kind: input, shape index: {}]
  %s4 = inlined_call_operand.vmem [shape: f32[1,256], index: 4, kind: input, shape index: {}]
  %s5 = inlined_call_operand.vmem [shape: f32[256,128], index: 5, kind: input, shape index: {}]
  %s6 = inlined_call_operand.vmem [shape: f32[1,128], index: 6, kind: input, shape index: {}]
  %s7 = inlined_call_operand.vmem [shape: f32[128,64], index: 7, kind: input, shape index: {}]
  %s8 = inlined_call_operand.vmem [shape: f32[1,64], index: 8, kind: input, shape index: {}]
  %s9 = inlined_call_operand.vmem [shape: f32[64,1], index: 9, kind: input, shape index: {}]
  %s10 = inlined_call_operand.<no memory space> [shape: f32[1,1], index: 10, kind: input, shape index: {}]
  %s11 = inlined_call_operand.vmem [shape: f32[2,1], index: 11, kind: output, shape index: {}]
  %s12 = sld [smem:[#allocation0]]
  $region54: #{simple1d_cnn_forward.3} parent=0
    _
  %s14 = ssub.s32 1, %s12
  %s15 = scalar_select 0, %s14, %s12
  %v16 = vstv %s10
  %17 = vst [vmem:[#allocation2] sm:$0x1] %v16
  // Predicated region
  $region2: #{simple1d_cnn_forward.3} parent=0 // pred_check
    _
  $region3: #{simple1d_cnn_forward.3} parent=0 // pred_check_branch
    %19 = sbr.rel (0) target = $region5
  $region4: #{simple1d_cnn_forward.3} parent=0 // pred_region
    _
  $region5: #{simple1d_cnn_forward.3} parent=0 // pred_fallthru
    _
  // Predicated region
  $region6: #{simple1d_cnn_forward.3} parent=0 // pred_check
    _
  $region7: #{simple1d_cnn_forward.3} parent=0 // pred_check_branch
    %21 = sbr.rel (0) target = $region9
  $region8: #{simple1d_cnn_forward.3} parent=0 // pred_region
    _
  $region9: #{simple1d_cnn_forward.3} parent=0 // pred_fallthru
    _
  // Predicated region
  $region10: #{simple1d_cnn_forward.3} parent=0 // pred_check
    _
  $region11: #{simple1d_cnn_forward.3} parent=0 // pred_check_branch
    %23 = sbr.rel (0) target = $region13
  $region12: #{simple1d_cnn_forward.3} parent=0 // pred_region
    _
  $region13: #{simple1d_cnn_forward.3} parent=0 // pred_fallthru
    _
  // Predicated region
  $region14: #{simple1d_cnn_forward.3} parent=0 // pred_check
    _
  $region15: #{simple1d_cnn_forward.3} parent=0 // pred_check_branch
    %25 = sbr.rel (0) target = $region17
  $region16: #{simple1d_cnn_forward.3} parent=0 // pred_region
    _
  $region17: #{simple1d_cnn_forward.3} parent=0 // pred_fallthru
    _
  // Predicated region
  $region18: #{simple1d_cnn_forward.3} parent=0 // pred_check
    _
  $region19: #{simple1d_cnn_forward.3} parent=0 // pred_check_branch
    %27 = sbr.rel (0) target = $region21
  $region20: #{simple1d_cnn_forward.3} parent=0 // pred_region
    _
  $region21: #{simple1d_cnn_forward.3} parent=0 // pred_fallthru
    _
  // Predicated region
  $region22: #{simple1d_cnn_forward.3} parent=0 // pred_check
    _
  $region23: #{simple1d_cnn_forward.3} parent=0 // pred_check_branch
    %29 = sbr.rel (0) target = $region25
  $region24: #{simple1d_cnn_forward.3} parent=0 // pred_region
    _
  $region25: #{simple1d_cnn_forward.3} parent=0 // pred_fallthru
    _
  // Predicated region
  $region26: #{simple1d_cnn_forward.3} parent=0 // pred_check
    _
  $region27: #{simple1d_cnn_forward.3} parent=0 // pred_check_branch
    %31 = sbr.rel (0) target = $region29
  $region28: #{simple1d_cnn_forward.3} parent=0 // pred_region
    _
  $region29: #{simple1d_cnn_forward.3} parent=0 // pred_fallthru
    _
  // Predicated region
  $region30: #{simple1d_cnn_forward.3} parent=0 // pred_check
    _
  $region31: #{simple1d_cnn_forward.3} parent=0 // pred_check_branch
    %33 = sbr.rel (0) target = $region33
  $region32: #{simple1d_cnn_forward.3} parent=0 // pred_region
    _
  $region33: #{simple1d_cnn_forward.3} parent=0 // pred_fallthru
    _
  // Predicated region
  $region34: #{simple1d_cnn_forward.3} parent=0 // pred_check
    _
  $region35: #{simple1d_cnn_forward.3} parent=0 // pred_check_branch
    %35 = sbr.rel (0) target = $region37
  $region36: #{simple1d_cnn_forward.3} parent=0 // pred_region
    _
  $region37: #{simple1d_cnn_forward.3} parent=0 // pred_fallthru
    _
  // Predicated region
  $region38: #{simple1d_cnn_forward.3} parent=0 // pred_check
    _
  $region39: #{simple1d_cnn_forward.3} parent=0 // pred_check_branch
    %37 = sbr.rel (0) target = $region41
  $region40: #{simple1d_cnn_forward.3} parent=0 // pred_region
    _
  $region41: #{simple1d_cnn_forward.3} parent=0 // pred_fallthru
    _
  // Predicated region
  $region42: #{simple1d_cnn_forward.3} parent=0 // pred_check
    _
  $region43: #{simple1d_cnn_forward.3} parent=0 // pred_check_branch
    %39 = sbr.rel (0) target = $region45
  $region44: #{simple1d_cnn_forward.3} parent=0 // pred_region
    _
  $region45: #{simple1d_cnn_forward.3} parent=0 // pred_fallthru
    _
  %v40 = vld [vmem:[%s0] sm:$0xff]
  %v41 = vld [vmem:[%s0 + $0x8] sm:$0xff]
  %v42 = vld [vmem:[%s1] sm:$0xff]
  %v43 = vld [vmem:[%s1 + $0x8] sm:$0xff]
  %v44 = vld [vmem:[%s1 + $0x10] sm:$0xff]
  %v45 = vld [vmem:[%s1 + $0x18] sm:$0xff]
  %v46 = vld [vmem:[%s1 + $0x20] sm:$0xff]
  %v47 = vld [vmem:[%s1 + $0x28] sm:$0xff]
  %v48 = vld [vmem:[%s1 + $0x30] sm:$0xff]
  %v49 = vld [vmem:[%s1 + $0x38] sm:$0xff]
  %v50 = vld [vmem:[%s1 + $0x40] sm:$0xff]
  %v51 = vld [vmem:[%s1 + $0x48] sm:$0xff]
  %v52 = vld [vmem:[%s1 + $0x50] sm:$0xff]
  %v53 = vld [vmem:[%s1 + $0x58] sm:$0xff]
  %v54 = vld [vmem:[%s1 + $0x60] sm:$0xff]
  %v55 = vld [vmem:[%s1 + $0x68] sm:$0xff]
  %v56 = vld [vmem:[%s1 + $0x70] sm:$0xff]
  %v57 = vld [vmem:[%s1 + $0x78] sm:$0xff]
  %v58 = vld [vmem:[%s1 + $0x80] sm:$0xff]
  %v59 = vld [vmem:[%s1 + $0x88] sm:$0xff]
  %v60 = vld [vmem:[%s1 + $0x90] sm:$0xff]
  %v61 = vld [vmem:[%s1 + $0x98] sm:$0xff]
  %v62 = vld [vmem:[%s1 + $0xa0] sm:$0xff]
  %v63 = vld [vmem:[%s1 + $0xa8] sm:$0xff]
  %v64 = vld [vmem:[%s1 + $0xb0] sm:$0xff]
  %v65 = vld [vmem:[%s1 + $0xb8] sm:$0xff]
  %v66 = vld [vmem:[%s1 + $0xc0] sm:$0xff]
  %v67 = vld [vmem:[%s1 + $0xc8] sm:$0xff]
  %v68 = vld [vmem:[%s1 + $0xd0] sm:$0xff]
  %v69 = vld [vmem:[%s1 + $0xd8] sm:$0xff]
  %v70 = vld [vmem:[%s1 + $0xe0] sm:$0xff]
  %v71 = vld [vmem:[%s1 + $0xe8] sm:$0xff]
  %v72 = vld [vmem:[%s1 + $0xf0] sm:$0xff]
  %v73 = vld [vmem:[%s1 + $0xf8] sm:$0xff]
  %v74 = vld [vmem:[%s1 + $0x100] sm:$0xff]
  %v75 = vld [vmem:[%s1 + $0x108] sm:$0xff]
  %v76 = vld [vmem:[%s1 + $0x110] sm:$0xff]
  %v77 = vld [vmem:[%s1 + $0x118] sm:$0xff]
  %v78 = vld [vmem:[%s1 + $0x120] sm:$0xff]
  %v79 = vld [vmem:[%s1 + $0x128] sm:$0xff]
  %v80 = vld [vmem:[%s1 + $0x130] sm:$0xff]
  %v81 = vld [vmem:[%s1 + $0x138] sm:$0xff]
  %v82 = vld [vmem:[%s1 + $0x140] sm:$0xff]
  %v83 = vld [vmem:[%s1 + $0x148] sm:$0xff]
  %v84 = vld [vmem:[%s1 + $0x150] sm:$0xff]
  %v85 = vld [vmem:[%s1 + $0x158] sm:$0xff]
  %v86 = vld [vmem:[%s1 + $0x160] sm:$0xff]
  %v87 = vld [vmem:[%s1 + $0x168] sm:$0xff]
  %v88 = vld [vmem:[%s1 + $0x170] sm:$0xff]
  %v89 = vld [vmem:[%s1 + $0x178] sm:$0xff]
  %v90 = vld [vmem:[%s1 + $0x180] sm:$0xff]
  %v91 = vld [vmem:[%s1 + $0x188] sm:$0xff]
  %v92 = vld [vmem:[%s1 + $0x190] sm:$0xff]
  %v93 = vld [vmem:[%s1 + $0x198] sm:$0xff]
  %v94 = vld [vmem:[%s1 + $0x1a0] sm:$0xff]
  %v95 = vld [vmem:[%s1 + $0x1a8] sm:$0xff]
  %v96 = vld [vmem:[%s1 + $0x1b0] sm:$0xff]
  %v97 = vld [vmem:[%s1 + $0x1b8] sm:$0xff]
  %v98 = vld [vmem:[%s1 + $0x1c0] sm:$0xff]
  %v99 = vld [vmem:[%s1 + $0x1c8] sm:$0xff]
  %v100 = vld [vmem:[%s1 + $0x1d0] sm:$0xff]
  %v101 = vld [vmem:[%s1 + $0x1d8] sm:$0xff]
  %v102 = vld [vmem:[%s1 + $0x1e0] sm:$0xff]
  %v103 = vld [vmem:[%s1 + $0x1e8] sm:$0xff]
  %v104 = vld [vmem:[%s1 + $0x1f0] sm:$0xff]
  %v105 = vld [vmem:[%s1 + $0x1f8] sm:$0xff]
  %v106 = vld [vmem:[%s1 + $0x200] sm:$0xff]
  %v107 = vld [vmem:[%s1 + $0x208] sm:$0xff]
  %v108 = vld [vmem:[%s1 + $0x210] sm:$0xff]
  %v109 = vld [vmem:[%s1 + $0x218] sm:$0xff]
  %v110 = vld [vmem:[%s1 + $0x220] sm:$0xff]
  %v111 = vld [vmem:[%s1 + $0x228] sm:$0xff]
  %v112 = vld [vmem:[%s1 + $0x230] sm:$0xff]
  %v113 = vld [vmem:[%s1 + $0x238] sm:$0xff]
  %v114 = vld [vmem:[%s1 + $0x240] sm:$0xff]
  %v115 = vld [vmem:[%s1 + $0x248] sm:$0xff]
  %v116 = vld [vmem:[%s1 + $0x250] sm:$0xff]
  %v117 = vld [vmem:[%s1 + $0x258] sm:$0xff]
  %v118 = vld [vmem:[%s1 + $0x260] sm:$0xff]
  %v119 = vld [vmem:[%s1 + $0x268] sm:$0xff]
  %v120 = vld [vmem:[%s1 + $0x270] sm:$0xff]
  %v121 = vld [vmem:[%s1 + $0x278] sm:$0xff]
  %v122 = vld [vmem:[%s1 + $0x280] sm:$0xff]
  %v123 = vld [vmem:[%s1 + $0x288] sm:$0xff]
  %v124 = vld [vmem:[%s1 + $0x290] sm:$0xff]
  %v125 = vld [vmem:[%s1 + $0x298] sm:$0xff]
  %v126 = vld [vmem:[%s1 + $0x2a0] sm:$0xff]
  %v127 = vld [vmem:[%s1 + $0x2a8] sm:$0xff]
  %v128 = vld [vmem:[%s1 + $0x2b0] sm:$0xff]
  %v129 = vld [vmem:[%s1 + $0x2b8] sm:$0xff]
  %v130 = vld [vmem:[%s1 + $0x2c0] sm:$0xff]
  %v131 = vld [vmem:[%s1 + $0x2c8] sm:$0xff]
  %v132 = vld [vmem:[%s1 + $0x2d0] sm:$0xff]
  %v133 = vld [vmem:[%s1 + $0x2d8] sm:$0xff]
  %v134 = vld [vmem:[%s1 + $0x2e0] sm:$0xff]
  %v135 = vld [vmem:[%s1 + $0x2e8] sm:$0xff]
  %v136 = vld [vmem:[%s1 + $0x2f0] sm:$0xff]
  %v137 = vld [vmem:[%s1 + $0x2f8] sm:$0xff]
  %v138 = vld [vmem:[%s1 + $0x300] sm:$0xff]
  %v139 = vld [vmem:[%s1 + $0x308] sm:$0xff]
  %v140 = vld [vmem:[%s1 + $0x310] sm:$0xff]
  %v141 = vld [vmem:[%s1 + $0x318] sm:$0xff]
  %v142 = vld [vmem:[%s1 + $0x320] sm:$0xff]
  %v143 = vld [vmem:[%s1 + $0x328] sm:$0xff]
  %v144 = vld [vmem:[%s1 + $0x330] sm:$0xff]
  %v145 = vld [vmem:[%s1 + $0x338] sm:$0xff]
  %v146 = vld [vmem:[%s1 + $0x340] sm:$0xff]
  %v147 = vld [vmem:[%s1 + $0x348] sm:$0xff]
  %v148 = vld [vmem:[%s1 + $0x350] sm:$0xff]
  %v149 = vld [vmem:[%s1 + $0x358] sm:$0xff]
  %v150 = vld [vmem:[%s1 + $0x360] sm:$0xff]
  %v151 = vld [vmem:[%s1 + $0x368] sm:$0xff]
  %v152 = vld [vmem:[%s1 + $0x370] sm:$0xff]
  %v153 = vld [vmem:[%s1 + $0x378] sm:$0xff]
  %v154 = vld [vmem:[%s1 + $0x380] sm:$0xff]
  %v155 = vld [vmem:[%s1 + $0x388] sm:$0xff]
  %v156 = vld [vmem:[%s1 + $0x390] sm:$0xff]
  %v157 = vld [vmem:[%s1 + $0x398] sm:$0xff]
  %v158 = vld [vmem:[%s1 + $0x3a0] sm:$0xff]
  %v159 = vld [vmem:[%s1 + $0x3a8] sm:$0xff]
  %v160 = vld [vmem:[%s1 + $0x3b0] sm:$0xff]
  %v161 = vld [vmem:[%s1 + $0x3b8] sm:$0xff]
  %v162 = vld [vmem:[%s1 + $0x3c0] sm:$0xff]
  %v163 = vld [vmem:[%s1 + $0x3c8] sm:$0xff]
  %v164 = vld [vmem:[%s1 + $0x3d0] sm:$0xff]
  %v165 = vld [vmem:[%s1 + $0x3d8] sm:$0xff]
  %v166 = vld [vmem:[%s1 + $0x3e0] sm:$0xff]
  %v167 = vld [vmem:[%s1 + $0x3e8] sm:$0xff]
  %v168 = vld [vmem:[%s1 + $0x3f0] sm:$0xff]
  %v169 = vld [vmem:[%s1 + $0x3f8] sm:$0xff]
  %v170 = vld [vmem:[%s1 + $0x400] sm:$0xff]
  %v171 = vld [vmem:[%s1 + $0x408] sm:$0xff]
  %v172 = vld [vmem:[%s1 + $0x410] sm:$0xff]
  %v173 = vld [vmem:[%s1 + $0x418] sm:$0xff]
  %v174 = vld [vmem:[%s1 + $0x420] sm:$0xff]
  %v175 = vld [vmem:[%s1 + $0x428] sm:$0xff]
  %v176 = vld [vmem:[%s1 + $0x430] sm:$0xff]
  %v177 = vld [vmem:[%s1 + $0x438] sm:$0xff]
  %v178 = vld [vmem:[%s1 + $0x440] sm:$0xff]
  %v179 = vld [vmem:[%s1 + $0x448] sm:$0xff]
  %v180 = vld [vmem:[%s1 + $0x450] sm:$0xff]
  %v181 = vld [vmem:[%s1 + $0x458] sm:$0xff]
  %v182 = vld [vmem:[%s1 + $0x460] sm:$0xff]
  %v183 = vld [vmem:[%s1 + $0x468] sm:$0xff]
  %v184 = vld [vmem:[%s1 + $0x470] sm:$0xff]
  %v185 = vld [vmem:[%s1 + $0x478] sm:$0xff]
  %v186 = vld [vmem:[%s1 + $0x480] sm:$0xff]
  %v187 = vld [vmem:[%s1 + $0x488] sm:$0xff]
  %v188 = vld [vmem:[%s1 + $0x490] sm:$0xff]
  %v189 = vld [vmem:[%s1 + $0x498] sm:$0xff]
  %v190 = vld [vmem:[%s1 + $0x4a0] sm:$0xff]
  %v191 = vld [vmem:[%s1 + $0x4a8] sm:$0xff]
  %v192 = vld [vmem:[%s1 + $0x4b0] sm:$0xff]
  %v193 = vld [vmem:[%s1 + $0x4b8] sm:$0xff]
  %v194 = vld [vmem:[%s1 + $0x4c0] sm:$0xff]
  %v195 = vld [vmem:[%s1 + $0x4c8] sm:$0xff]
  %v196 = vld [vmem:[%s1 + $0x4d0] sm:$0xff]
  %v197 = vld [vmem:[%s1 + $0x4d8] sm:$0xff]
  %v198 = vld [vmem:[%s1 + $0x4e0] sm:$0xff]
  %v199 = vld [vmem:[%s1 + $0x4e8] sm:$0xff]
  %v200 = vld [vmem:[%s1 + $0x4f0] sm:$0xff]
  %v201 = vld [vmem:[%s1 + $0x4f8] sm:$0xff]
  %v202 = vld [vmem:[%s1 + $0x500] sm:$0xff]
  %v203 = vld [vmem:[%s1 + $0x508] sm:$0xff]
  %v204 = vld [vmem:[%s1 + $0x510] sm:$0xff]
  %v205 = vld [vmem:[%s1 + $0x518] sm:$0xff]
  %v206 = vld [vmem:[%s1 + $0x520] sm:$0xff]
  %v207 = vld [vmem:[%s1 + $0x528] sm:$0xff]
  %v208 = vld [vmem:[%s1 + $0x530] sm:$0xff]
  %v209 = vld [vmem:[%s1 + $0x538] sm:$0xff]
  %v210 = vld [vmem:[%s1 + $0x540] sm:$0xff]
  %v211 = vld [vmem:[%s1 + $0x548] sm:$0xff]
  %v212 = vld [vmem:[%s1 + $0x550] sm:$0xff]
  %v213 = vld [vmem:[%s1 + $0x558] sm:$0xff]
  %v214 = vld [vmem:[%s1 + $0x560] sm:$0xff]
  %v215 = vld [vmem:[%s1 + $0x568] sm:$0xff]
  %v216 = vld [vmem:[%s1 + $0x570] sm:$0xff]
  %v217 = vld [vmem:[%s1 + $0x578] sm:$0xff]
  %v218 = vld [vmem:[%s1 + $0x580] sm:$0xff]
  %v219 = vld [vmem:[%s1 + $0x588] sm:$0xff]
  %v220 = vld [vmem:[%s1 + $0x590] sm:$0xff]
  %v221 = vld [vmem:[%s1 + $0x598] sm:$0xff]
  %v222 = vld [vmem:[%s1 + $0x5a0] sm:$0xff]
  %v223 = vld [vmem:[%s1 + $0x5a8] sm:$0xff]
  %v224 = vld [vmem:[%s1 + $0x5b0] sm:$0xff]
  %v225 = vld [vmem:[%s1 + $0x5b8] sm:$0xff]
  %v226 = vld [vmem:[%s1 + $0x5c0] sm:$0xff]
  %v227 = vld [vmem:[%s1 + $0x5c8] sm:$0xff]
  %v228 = vld [vmem:[%s1 + $0x5d0] sm:$0xff]
  %v229 = vld [vmem:[%s1 + $0x5d8] sm:$0xff]
  %v230 = vld [vmem:[%s1 + $0x5e0] sm:$0xff]
  %v231 = vld [vmem:[%s1 + $0x5e8] sm:$0xff]
  %v232 = vld [vmem:[%s1 + $0x5f0] sm:$0xff]
  %v233 = vld [vmem:[%s1 + $0x5f8] sm:$0xff]
  %v234 = vld [vmem:[%s1 + $0x600] sm:$0xff]
  %v235 = vld [vmem:[%s1 + $0x608] sm:$0xff]
  %v236 = vld [vmem:[%s1 + $0x610] sm:$0xff]
  %v237 = vld [vmem:[%s1 + $0x618] sm:$0xff]
  %v238 = vld [vmem:[%s1 + $0x620] sm:$0xff]
  %v239 = vld [vmem:[%s1 + $0x628] sm:$0xff]
  %v240 = vld [vmem:[%s1 + $0x630] sm:$0xff]
  %v241 = vld [vmem:[%s1 + $0x638] sm:$0xff]
  %v242 = vld [vmem:[%s1 + $0x640] sm:$0xff]
  %v243 = vld [vmem:[%s1 + $0x648] sm:$0xff]
  %v244 = vld [vmem:[%s1 + $0x650] sm:$0xff]
  %v245 = vld [vmem:[%s1 + $0x658] sm:$0xff]
  %v246 = vld [vmem:[%s1 + $0x660] sm:$0xff]
  %v247 = vld [vmem:[%s1 + $0x668] sm:$0xff]
  %v248 = vld [vmem:[%s1 + $0x670] sm:$0xff]
  %v249 = vld [vmem:[%s1 + $0x678] sm:$0xff]
  %v250 = vld [vmem:[%s1 + $0x680] sm:$0xff]
  %v251 = vld [vmem:[%s1 + $0x688] sm:$0xff]
  %v252 = vld [vmem:[%s1 + $0x690] sm:$0xff]
  %v253 = vld [vmem:[%s1 + $0x698] sm:$0xff]
  %v254 = vld [vmem:[%s1 + $0x6a0] sm:$0xff]
  %v255 = vld [vmem:[%s1 + $0x6a8] sm:$0xff]
  %v256 = vld [vmem:[%s1 + $0x6b0] sm:$0xff]
  %v257 = vld [vmem:[%s1 + $0x6b8] sm:$0xff]
  %v258 = vld [vmem:[%s1 + $0x6c0] sm:$0xff]
  %v259 = vld [vmem:[%s1 + $0x6c8] sm:$0xff]
  %v260 = vld [vmem:[%s1 + $0x6d0] sm:$0xff]
  %v261 = vld [vmem:[%s1 + $0x6d8] sm:$0xff]
  %v262 = vld [vmem:[%s1 + $0x6e0] sm:$0xff]
  %v263 = vld [vmem:[%s1 + $0x6e8] sm:$0xff]
  %v264 = vld [vmem:[%s1 + $0x6f0] sm:$0xff]
  %v265 = vld [vmem:[%s1 + $0x6f8] sm:$0xff]
  %v266 = vld [vmem:[%s1 + $0x700] sm:$0xff]
  %v267 = vld [vmem:[%s1 + $0x708] sm:$0xff]
  %v268 = vld [vmem:[%s1 + $0x710] sm:$0xff]
  %v269 = vld [vmem:[%s1 + $0x718] sm:$0xff]
  %v270 = vld [vmem:[%s1 + $0x720] sm:$0xff]
  %v271 = vld [vmem:[%s1 + $0x728] sm:$0xff]
  %v272 = vld [vmem:[%s1 + $0x730] sm:$0xff]
  %v273 = vld [vmem:[%s1 + $0x738] sm:$0xff]
  %v274 = vld [vmem:[%s1 + $0x740] sm:$0xff]
  %v275 = vld [vmem:[%s1 + $0x748] sm:$0xff]
  %v276 = vld [vmem:[%s1 + $0x750] sm:$0xff]
  %v277 = vld [vmem:[%s1 + $0x758] sm:$0xff]
  %v278 = vld [vmem:[%s1 + $0x760] sm:$0xff]
  %v279 = vld [vmem:[%s1 + $0x768] sm:$0xff]
  %v280 = vld [vmem:[%s1 + $0x770] sm:$0xff]
  %v281 = vld [vmem:[%s1 + $0x778] sm:$0xff]
  %v282 = vld [vmem:[%s1 + $0x780] sm:$0xff]
  %v283 = vld [vmem:[%s1 + $0x788] sm:$0xff]
  %v284 = vld [vmem:[%s1 + $0x790] sm:$0xff]
  %v285 = vld [vmem:[%s1 + $0x798] sm:$0xff]
  %v286 = vld [vmem:[%s1 + $0x7a0] sm:$0xff]
  %v287 = vld [vmem:[%s1 + $0x7a8] sm:$0xff]
  %v288 = vld [vmem:[%s1 + $0x7b0] sm:$0xff]
  %v289 = vld [vmem:[%s1 + $0x7b8] sm:$0xff]
  %v290 = vld [vmem:[%s1 + $0x7c0] sm:$0xff]
  %v291 = vld [vmem:[%s1 + $0x7c8] sm:$0xff]
  %v292 = vld [vmem:[%s1 + $0x7d0] sm:$0xff]
  %v293 = vld [vmem:[%s1 + $0x7d8] sm:$0xff]
  %v294 = vld [vmem:[%s1 + $0x7e0] sm:$0xff]
  %v295 = vld [vmem:[%s1 + $0x7e8] sm:$0xff]
  %v296 = vld [vmem:[%s1 + $0x7f0] sm:$0xff]
  %v297 = vld [vmem:[%s1 + $0x7f8] sm:$0xff]
  %v298 = vld [vmem:[%s1 + $0x800] sm:$0xff]
  %v299 = vld [vmem:[%s1 + $0x808] sm:$0xff]
  %v300 = vld [vmem:[%s1 + $0x810] sm:$0xff]
  %v301 = vld [vmem:[%s1 + $0x818] sm:$0xff]
  %v302 = vld [vmem:[%s1 + $0x820] sm:$0xff]
  %v303 = vld [vmem:[%s1 + $0x828] sm:$0xff]
  %v304 = vld [vmem:[%s1 + $0x830] sm:$0xff]
  %v305 = vld [vmem:[%s1 + $0x838] sm:$0xff]
  %v306 = vld [vmem:[%s1 + $0x840] sm:$0xff]
  %v307 = vld [vmem:[%s1 + $0x848] sm:$0xff]
  %v308 = vld [vmem:[%s1 + $0x850] sm:$0xff]
  %v309 = vld [vmem:[%s1 + $0x858] sm:$0xff]
  %v310 = vld [vmem:[%s1 + $0x860] sm:$0xff]
  %v311 = vld [vmem:[%s1 + $0x868] sm:$0xff]
  %v312 = vld [vmem:[%s1 + $0x870] sm:$0xff]
  %v313 = vld [vmem:[%s1 + $0x878] sm:$0xff]
  %v314 = vld [vmem:[%s1 + $0x880] sm:$0xff]
  %v315 = vld [vmem:[%s1 + $0x888] sm:$0xff]
  %v316 = vld [vmem:[%s1 + $0x890] sm:$0xff]
  %v317 = vld [vmem:[%s1 + $0x898] sm:$0xff]
  %v318 = vld [vmem:[%s1 + $0x8a0] sm:$0xff]
  %v319 = vld [vmem:[%s1 + $0x8a8] sm:$0xff]
  %v320 = vld [vmem:[%s1 + $0x8b0] sm:$0xff]
  %v321 = vld [vmem:[%s1 + $0x8b8] sm:$0xff]
  %v322 = vld [vmem:[%s1 + $0x8c0] sm:$0xff]
  %v323 = vld [vmem:[%s1 + $0x8c8] sm:$0xff]
  %v324 = vld [vmem:[%s1 + $0x8d0] sm:$0xff]
  %v325 = vld [vmem:[%s1 + $0x8d8] sm:$0xff]
  %v326 = vld [vmem:[%s1 + $0x8e0] sm:$0xff]
  %v327 = vld [vmem:[%s1 + $0x8e8] sm:$0xff]
  %v328 = vld [vmem:[%s1 + $0x8f0] sm:$0xff]
  %v329 = vld [vmem:[%s1 + $0x8f8] sm:$0xff]
  %v330 = vld [vmem:[%s1 + $0x900] sm:$0xff]
  %v331 = vld [vmem:[%s1 + $0x908] sm:$0xff]
  %v332 = vld [vmem:[%s1 + $0x910] sm:$0xff]
  %v333 = vld [vmem:[%s1 + $0x918] sm:$0xff]
  %v334 = vld [vmem:[%s1 + $0x920] sm:$0xff]
  %v335 = vld [vmem:[%s1 + $0x928] sm:$0xff]
  %v336 = vld [vmem:[%s1 + $0x930] sm:$0xff]
  %v337 = vld [vmem:[%s1 + $0x938] sm:$0xff]
  %v338 = vld [vmem:[%s1 + $0x940] sm:$0xff]
  %v339 = vld [vmem:[%s1 + $0x948] sm:$0xff]
  %v340 = vld [vmem:[%s1 + $0x950] sm:$0xff]
  %v341 = vld [vmem:[%s1 + $0x958] sm:$0xff]
  %v342 = vld [vmem:[%s1 + $0x960] sm:$0xff]
  %v343 = vld [vmem:[%s1 + $0x968] sm:$0xff]
  %v344 = vld [vmem:[%s1 + $0x970] sm:$0xff]
  %v345 = vld [vmem:[%s1 + $0x978] sm:$0xff]
  %v346 = vld [vmem:[%s1 + $0x980] sm:$0xff]
  %v347 = vld [vmem:[%s1 + $0x988] sm:$0xff]
  %v348 = vld [vmem:[%s1 + $0x990] sm:$0xff]
  %v349 = vld [vmem:[%s1 + $0x998] sm:$0xff]
  %v350 = vld [vmem:[%s1 + $0x9a0] sm:$0xff]
  %v351 = vld [vmem:[%s1 + $0x9a8] sm:$0xff]
  %v352 = vld [vmem:[%s1 + $0x9b0] sm:$0xff]
  %v353 = vld [vmem:[%s1 + $0x9b8] sm:$0xff]
  %v354 = vld [vmem:[%s1 + $0x9c0] sm:$0xff]
  %v355 = vld [vmem:[%s1 + $0x9c8] sm:$0xff]
  %v356 = vld [vmem:[%s1 + $0x9d0] sm:$0xff]
  %v357 = vld [vmem:[%s1 + $0x9d8] sm:$0xff]
  %v358 = vld [vmem:[%s1 + $0x9e0] sm:$0xff]
  %v359 = vld [vmem:[%s1 + $0x9e8] sm:$0xff]
  %v360 = vld [vmem:[%s1 + $0x9f0] sm:$0xff]
  %v361 = vld [vmem:[%s1 + $0x9f8] sm:$0xff]
  %v362 = vld [vmem:[%s1 + $0xa00] sm:$0xff]
  %v363 = vld [vmem:[%s1 + $0xa08] sm:$0xff]
  %v364 = vld [vmem:[%s1 + $0xa10] sm:$0xff]
  %v365 = vld [vmem:[%s1 + $0xa18] sm:$0xff]
  %v366 = vld [vmem:[%s1 + $0xa20] sm:$0xff]
  %v367 = vld [vmem:[%s1 + $0xa28] sm:$0xff]
  %v368 = vld [vmem:[%s1 + $0xa30] sm:$0xff]
  %v369 = vld [vmem:[%s1 + $0xa38] sm:$0xff]
  %v370 = vld [vmem:[%s1 + $0xa40] sm:$0xff]
  %v371 = vld [vmem:[%s1 + $0xa48] sm:$0xff]
  %v372 = vld [vmem:[%s1 + $0xa50] sm:$0xff]
  %v373 = vld [vmem:[%s1 + $0xa58] sm:$0xff]
  %v374 = vld [vmem:[%s1 + $0xa60] sm:$0xff]
  %v375 = vld [vmem:[%s1 + $0xa68] sm:$0xff]
  %v376 = vld [vmem:[%s1 + $0xa70] sm:$0xff]
  %v377 = vld [vmem:[%s1 + $0xa78] sm:$0xff]
  %v378 = vld [vmem:[%s1 + $0xa80] sm:$0xff]
  %v379 = vld [vmem:[%s1 + $0xa88] sm:$0xff]
  %v380 = vld [vmem:[%s1 + $0xa90] sm:$0xff]
  %v381 = vld [vmem:[%s1 + $0xa98] sm:$0xff]
  %v382 = vld [vmem:[%s1 + $0xaa0] sm:$0xff]
  %v383 = vld [vmem:[%s1 + $0xaa8] sm:$0xff]
  %v384 = vld [vmem:[%s1 + $0xab0] sm:$0xff]
  %v385 = vld [vmem:[%s1 + $0xab8] sm:$0xff]
  %v386 = vld [vmem:[%s1 + $0xac0] sm:$0xff]
  %v387 = vld [vmem:[%s1 + $0xac8] sm:$0xff]
  %v388 = vld [vmem:[%s1 + $0xad0] sm:$0xff]
  %v389 = vld [vmem:[%s1 + $0xad8] sm:$0xff]
  %v390 = vld [vmem:[%s1 + $0xae0] sm:$0xff]
  %v391 = vld [vmem:[%s1 + $0xae8] sm:$0xff]
  %v392 = vld [vmem:[%s1 + $0xaf0] sm:$0xff]
  %v393 = vld [vmem:[%s1 + $0xaf8] sm:$0xff]
  %v394 = vld [vmem:[%s1 + $0xb00] sm:$0xff]
  %v395 = vld [vmem:[%s1 + $0xb08] sm:$0xff]
  %v396 = vld [vmem:[%s1 + $0xb10] sm:$0xff]
  %v397 = vld [vmem:[%s1 + $0xb18] sm:$0xff]
  %v398 = vld [vmem:[%s1 + $0xb20] sm:$0xff]
  %v399 = vld [vmem:[%s1 + $0xb28] sm:$0xff]
  %v400 = vld [vmem:[%s1 + $0xb30] sm:$0xff]
  %v401 = vld [vmem:[%s1 + $0xb38] sm:$0xff]
  %v402 = vld [vmem:[%s1 + $0xb40] sm:$0xff]
  %v403 = vld [vmem:[%s1 + $0xb48] sm:$0xff]
  %v404 = vld [vmem:[%s1 + $0xb50] sm:$0xff]
  %v405 = vld [vmem:[%s1 + $0xb58] sm:$0xff]
  %v406 = vld [vmem:[%s1 + $0xb60] sm:$0xff]
  %v407 = vld [vmem:[%s1 + $0xb68] sm:$0xff]
  %v408 = vld [vmem:[%s1 + $0xb70] sm:$0xff]
  %v409 = vld [vmem:[%s1 + $0xb78] sm:$0xff]
  %v410 = vld [vmem:[%s1 + $0xb80] sm:$0xff]
  %v411 = vld [vmem:[%s1 + $0xb88] sm:$0xff]
  %v412 = vld [vmem:[%s1 + $0xb90] sm:$0xff]
  %v413 = vld [vmem:[%s1 + $0xb98] sm:$0xff]
  %v414 = vld [vmem:[%s1 + $0xba0] sm:$0xff]
  %v415 = vld [vmem:[%s1 + $0xba8] sm:$0xff]
  %v416 = vld [vmem:[%s1 + $0xbb0] sm:$0xff]
  %v417 = vld [vmem:[%s1 + $0xbb8] sm:$0xff]
  %v418 = vld [vmem:[%s1 + $0xbc0] sm:$0xff]
  %v419 = vld [vmem:[%s1 + $0xbc8] sm:$0xff]
  %v420 = vld [vmem:[%s1 + $0xbd0] sm:$0xff]
  %v421 = vld [vmem:[%s1 + $0xbd8] sm:$0xff]
  %v422 = vld [vmem:[%s1 + $0xbe0] sm:$0xff]
  %v423 = vld [vmem:[%s1 + $0xbe8] sm:$0xff]
  %v424 = vld [vmem:[%s1 + $0xbf0] sm:$0xff]
  %v425 = vld [vmem:[%s1 + $0xbf8] sm:$0xff]
  %v426 = vld [vmem:[%s1 + $0xc00] sm:$0xff]
  %v427 = vld [vmem:[%s1 + $0xc08] sm:$0xff]
  %v428 = vld [vmem:[%s1 + $0xc10] sm:$0xff]
  %v429 = vld [vmem:[%s1 + $0xc18] sm:$0xff]
  %v430 = vld [vmem:[%s1 + $0xc20] sm:$0xff]
  %v431 = vld [vmem:[%s1 + $0xc28] sm:$0xff]
  %v432 = vld [vmem:[%s1 + $0xc30] sm:$0xff]
  %v433 = vld [vmem:[%s1 + $0xc38] sm:$0xff]
  %v434 = vld [vmem:[%s1 + $0xc40] sm:$0xff]
  %v435 = vld [vmem:[%s1 + $0xc48] sm:$0xff]
  %v436 = vld [vmem:[%s1 + $0xc50] sm:$0xff]
  %v437 = vld [vmem:[%s1 + $0xc58] sm:$0xff]
  %v438 = vld [vmem:[%s1 + $0xc60] sm:$0xff]
  %v439 = vld [vmem:[%s1 + $0xc68] sm:$0xff]
  %v440 = vld [vmem:[%s1 + $0xc70] sm:$0xff]
  %v441 = vld [vmem:[%s1 + $0xc78] sm:$0xff]
  %v442 = vld [vmem:[%s1 + $0xc80] sm:$0xff]
  %v443 = vld [vmem:[%s1 + $0xc88] sm:$0xff]
  %v444 = vld [vmem:[%s1 + $0xc90] sm:$0xff]
  %v445 = vld [vmem:[%s1 + $0xc98] sm:$0xff]
  %v446 = vld [vmem:[%s1 + $0xca0] sm:$0xff]
  %v447 = vld [vmem:[%s1 + $0xca8] sm:$0xff]
  %v448 = vld [vmem:[%s1 + $0xcb0] sm:$0xff]
  %v449 = vld [vmem:[%s1 + $0xcb8] sm:$0xff]
  %v450 = vld [vmem:[%s1 + $0xcc0] sm:$0xff]
  %v451 = vld [vmem:[%s1 + $0xcc8] sm:$0xff]
  %v452 = vld [vmem:[%s1 + $0xcd0] sm:$0xff]
  %v453 = vld [vmem:[%s1 + $0xcd8] sm:$0xff]
  %v454 = vld [vmem:[%s1 + $0xce0] sm:$0xff]
  %v455 = vld [vmem:[%s1 + $0xce8] sm:$0xff]
  %v456 = vld [vmem:[%s1 + $0xcf0] sm:$0xff]
  %v457 = vld [vmem:[%s1 + $0xcf8] sm:$0xff]
  %v458 = vld [vmem:[%s1 + $0xd00] sm:$0xff]
  %v459 = vld [vmem:[%s1 + $0xd08] sm:$0xff]
  %v460 = vld [vmem:[%s1 + $0xd10] sm:$0xff]
  %v461 = vld [vmem:[%s1 + $0xd18] sm:$0xff]
  %v462 = vld [vmem:[%s1 + $0xd20] sm:$0xff]
  %v463 = vld [vmem:[%s1 + $0xd28] sm:$0xff]
  %v464 = vld [vmem:[%s1 + $0xd30] sm:$0xff]
  %v465 = vld [vmem:[%s1 + $0xd38] sm:$0xff]
  %v466 = vld [vmem:[%s1 + $0xd40] sm:$0xff]
  %v467 = vld [vmem:[%s1 + $0xd48] sm:$0xff]
  %v468 = vld [vmem:[%s1 + $0xd50] sm:$0xff]
  %v469 = vld [vmem:[%s1 + $0xd58] sm:$0xff]
  %v470 = vld [vmem:[%s1 + $0xd60] sm:$0xff]
  %v471 = vld [vmem:[%s1 + $0xd68] sm:$0xff]
  %v472 = vld [vmem:[%s1 + $0xd70] sm:$0xff]
  %v473 = vld [vmem:[%s1 + $0xd78] sm:$0xff]
  %v474 = vld [vmem:[%s1 + $0xd80] sm:$0xff]
  %v475 = vld [vmem:[%s1 + $0xd88] sm:$0xff]
  %v476 = vld [vmem:[%s1 + $0xd90] sm:$0xff]
  %v477 = vld [vmem:[%s1 + $0xd98] sm:$0xff]
  %v478 = vld [vmem:[%s1 + $0xda0] sm:$0xff]
  %v479 = vld [vmem:[%s1 + $0xda8] sm:$0xff]
  %v480 = vld [vmem:[%s1 + $0xdb0] sm:$0xff]
  %v481 = vld [vmem:[%s1 + $0xdb8] sm:$0xff]
  %v482 = vld [vmem:[%s1 + $0xdc0] sm:$0xff]
  %v483 = vld [vmem:[%s1 + $0xdc8] sm:$0xff]
  %v484 = vld [vmem:[%s1 + $0xdd0] sm:$0xff]
  %v485 = vld [vmem:[%s1 + $0xdd8] sm:$0xff]
  %v486 = vld [vmem:[%s1 + $0xde0] sm:$0xff]
  %v487 = vld [vmem:[%s1 + $0xde8] sm:$0xff]
  %v488 = vld [vmem:[%s1 + $0xdf0] sm:$0xff]
  %v489 = vld [vmem:[%s1 + $0xdf8] sm:$0xff]
  %v490 = vld [vmem:[%s1 + $0xe00] sm:$0xff]
  %v491 = vld [vmem:[%s1 + $0xe08] sm:$0xff]
  %v492 = vld [vmem:[%s1 + $0xe10] sm:$0xff]
  %v493 = vld [vmem:[%s1 + $0xe18] sm:$0xff]
  %v494 = vld [vmem:[%s1 + $0xe20] sm:$0xff]
  %v495 = vld [vmem:[%s1 + $0xe28] sm:$0xff]
  %v496 = vld [vmem:[%s1 + $0xe30] sm:$0xff]
  %v497 = vld [vmem:[%s1 + $0xe38] sm:$0xff]
  %v498 = vld [vmem:[%s1 + $0xe40] sm:$0xff]
  %v499 = vld [vmem:[%s1 + $0xe48] sm:$0xff]
  %v500 = vld [vmem:[%s1 + $0xe50] sm:$0xff]
  %v501 = vld [vmem:[%s1 + $0xe58] sm:$0xff]
  %v502 = vld [vmem:[%s1 + $0xe60] sm:$0xff]
  %v503 = vld [vmem:[%s1 + $0xe68] sm:$0xff]
  %v504 = vld [vmem:[%s1 + $0xe70] sm:$0xff]
  %v505 = vld [vmem:[%s1 + $0xe78] sm:$0xff]
  %v506 = vld [vmem:[%s1 + $0xe80] sm:$0xff]
  %v507 = vld [vmem:[%s1 + $0xe88] sm:$0xff]
  %v508 = vld [vmem:[%s1 + $0xe90] sm:$0xff]
  %v509 = vld [vmem:[%s1 + $0xe98] sm:$0xff]
  %v510 = vld [vmem:[%s1 + $0xea0] sm:$0xff]
  %v511 = vld [vmem:[%s1 + $0xea8] sm:$0xff]
  %v512 = vld [vmem:[%s1 + $0xeb0] sm:$0xff]
  %v513 = vld [vmem:[%s1 + $0xeb8] sm:$0xff]
  %v514 = vld [vmem:[%s1 + $0xec0] sm:$0xff]
  %v515 = vld [vmem:[%s1 + $0xec8] sm:$0xff]
  %v516 = vld [vmem:[%s1 + $0xed0] sm:$0xff]
  %v517 = vld [vmem:[%s1 + $0xed8] sm:$0xff]
  %v518 = vld [vmem:[%s1 + $0xee0] sm:$0xff]
  %v519 = vld [vmem:[%s1 + $0xee8] sm:$0xff]
  %v520 = vld [vmem:[%s1 + $0xef0] sm:$0xff]
  %v521 = vld [vmem:[%s1 + $0xef8] sm:$0xff]
  %v522 = vld [vmem:[%s1 + $0xf00] sm:$0xff]
  %v523 = vld [vmem:[%s1 + $0xf08] sm:$0xff]
  %v524 = vld [vmem:[%s1 + $0xf10] sm:$0xff]
  %v525 = vld [vmem:[%s1 + $0xf18] sm:$0xff]
  %v526 = vld [vmem:[%s1 + $0xf20] sm:$0xff]
  %v527 = vld [vmem:[%s1 + $0xf28] sm:$0xff]
  %v528 = vld [vmem:[%s1 + $0xf30] sm:$0xff]
  %v529 = vld [vmem:[%s1 + $0xf38] sm:$0xff]
  %v530 = vld [vmem:[%s1 + $0xf40] sm:$0xff]
  %v531 = vld [vmem:[%s1 + $0xf48] sm:$0xff]
  %v532 = vld [vmem:[%s1 + $0xf50] sm:$0xff]
  %v533 = vld [vmem:[%s1 + $0xf58] sm:$0xff]
  %v534 = vld [vmem:[%s1 + $0xf60] sm:$0xff]
  %v535 = vld [vmem:[%s1 + $0xf68] sm:$0xff]
  %v536 = vld [vmem:[%s1 + $0xf70] sm:$0xff]
  %v537 = vld [vmem:[%s1 + $0xf78] sm:$0xff]
  %v538 = vld [vmem:[%s1 + $0xf80] sm:$0xff]
  %v539 = vld [vmem:[%s1 + $0xf88] sm:$0xff]
  %v540 = vld [vmem:[%s1 + $0xf90] sm:$0xff]
  %v541 = vld [vmem:[%s1 + $0xf98] sm:$0xff]
  %v542 = vld [vmem:[%s1 + $0xfa0] sm:$0xff]
  %v543 = vld [vmem:[%s1 + $0xfa8] sm:$0xff]
  %v544 = vld [vmem:[%s1 + $0xfb0] sm:$0xff]
  %v545 = vld [vmem:[%s1 + $0xfb8] sm:$0xff]
  %v546 = vld [vmem:[%s1 + $0xfc0] sm:$0xff]
  %v547 = vld [vmem:[%s1 + $0xfc8] sm:$0xff]
  %v548 = vld [vmem:[%s1 + $0xfd0] sm:$0xff]
  %v549 = vld [vmem:[%s1 + $0xfd8] sm:$0xff]
  %v550 = vld [vmem:[%s1 + $0xfe0] sm:$0xff]
  %v551 = vld [vmem:[%s1 + $0xfe8] sm:$0xff]
  %v552 = vld [vmem:[%s1 + $0xff0] sm:$0xff]
  %v553 = vld [vmem:[%s1 + $0xff8] sm:$0xff]
  %v554 = vld [vmem:[%s2] sm:$0xf]
  %v556 = vperm.slane %v554, 0
  %v557 = vperm.slane %v554, 1
  %v558 = vperm.slane %v554, 2
  %v559 = vperm.slane %v554, 3
  %566 = vst [vmem:[#allocation1] ss:$4 sm:$0xff] %v40
  %s567 = scalar_lea.vmem [#allocation1], 32
  %568 = vst [vmem:[%s567] ss:$4 sm:$0xff] %v41
  %v569 = vld.sshfl [vmem:[#allocation1] sm:$0xff pattern:$0x73625140]
  %v570 = vld.sshfl [vmem:[#allocation1 + $0x8] sm:$0xff pattern:$0x73625140]
  %v571 = vld.sshfl [vmem:[#allocation1 + $0x10] sm:$0xff pattern:$0x73625140]
  %v572 = vld.sshfl [vmem:[#allocation1 + $0x18] sm:$0xff pattern:$0x73625140]
  %v573 = vld.sshfl [vmem:[#allocation1 + $0x20] sm:$0xff pattern:$0x73625140]
  %v574 = vld.sshfl [vmem:[#allocation1 + $0x28] sm:$0xff pattern:$0x73625140]
  %v575 = vld.sshfl [vmem:[#allocation1 + $0x30] sm:$0xff pattern:$0x73625140]
  %v576 = vld.sshfl [vmem:[#allocation1 + $0x38] sm:$0xff pattern:$0x73625140]
  %585 = vmatpush.msra.mxu0 %v102
  %586 = vmatpush.msra.mxu0 %v98
  %587 = vmatpush.msra.mxu0 %v94
  %588 = vmatpush.msra.mxu0 %v90
  %589 = vmatpush.msra.mxu0 %v86
  %590 = vmatpush.msra.mxu0 %v82
  %591 = vmatpush.msra.mxu0 %v78
  %592 = vmatpush.msra.mxu0 %v74
  %593 = vmatpush.msra.mxu0 %v70
  %594 = vmatpush.msra.mxu0 %v66
  %595 = vmatpush.msra.mxu0 %v62
  %596 = vmatpush.msra.mxu0 %v58
  %597 = vmatpush.msra.mxu0 %v54
  %598 = vmatpush.msra.mxu0 %v50
  %599 = vmatpush.msra.mxu0 %v46
  %600 = vmatpush.msra.mxu0 %v42
  %601 = vmatmul.f32.gmra.mxu0 %v569
  %v602 = vpop.f32.mrf.mxu0
  %v603 = vadd.f32 %v556, %v602
  %604 = vdwg.mxu0
  %605 = vmatpush.msra.mxu0 %v166
  %606 = vmatpush.msra.mxu0 %v162
  %607 = vmatpush.msra.mxu0 %v158
  %608 = vmatpush.msra.mxu0 %v154
  %609 = vmatpush.msra.mxu0 %v150
  %610 = vmatpush.msra.mxu0 %v146
  %611 = vmatpush.msra.mxu0 %v142
  %612 = vmatpush.msra.mxu0 %v138
  %613 = vmatpush.msra.mxu0 %v134
  %614 = vmatpush.msra.mxu0 %v130
  %615 = vmatpush.msra.mxu0 %v126
  %616 = vmatpush.msra.mxu0 %v122
  %617 = vmatpush.msra.mxu0 %v118
  %618 = vmatpush.msra.mxu0 %v114
  %619 = vmatpush.msra.mxu0 %v110
  %620 = vmatpush.msra.mxu0 %v106
  %621 = vmatmul.f32.gmra.mxu0 %v570
  %v622 = vpop.f32.mrf.mxu0
  %v623 = vadd.f32 %v603, %v622
  %624 = vdwg.mxu0
  %625 = vmatpush.msra.mxu0 %v230
  %626 = vmatpush.msra.mxu0 %v226
  %627 = vmatpush.msra.mxu0 %v222
  %628 = vmatpush.msra.mxu0 %v218
  %629 = vmatpush.msra.mxu0 %v214
  %630 = vmatpush.msra.mxu0 %v210
  %631 = vmatpush.msra.mxu0 %v206
  %632 = vmatpush.msra.mxu0 %v202
  %633 = vmatpush.msra.mxu0 %v198
  %634 = vmatpush.msra.mxu0 %v194
  %635 = vmatpush.msra.mxu0 %v190
  %636 = vmatpush.msra.mxu0 %v186
  %637 = vmatpush.msra.mxu0 %v182
  %638 = vmatpush.msra.mxu0 %v178
  %639 = vmatpush.msra.mxu0 %v174
  %640 = vmatpush.msra.mxu0 %v170
  %641 = vmatmul.f32.gmra.mxu0 %v571
  %v642 = vpop.f32.mrf.mxu0
  %v643 = vadd.f32 %v623, %v642
  %644 = vdwg.mxu0
  %645 = vmatpush.msra.mxu0 %v294
  %646 = vmatpush.msra.mxu0 %v290
  %647 = vmatpush.msra.mxu0 %v286
  %648 = vmatpush.msra.mxu0 %v282
  %649 = vmatpush.msra.mxu0 %v278
  %650 = vmatpush.msra.mxu0 %v274
  %651 = vmatpush.msra.mxu0 %v270
  %652 = vmatpush.msra.mxu0 %v266
  %653 = vmatpush.msra.mxu0 %v262
  %654 = vmatpush.msra.mxu0 %v258
  %655 = vmatpush.msra.mxu0 %v254
  %656 = vmatpush.msra.mxu0 %v250
  %657 = vmatpush.msra.mxu0 %v246
  %658 = vmatpush.msra.mxu0 %v242
  %659 = vmatpush.msra.mxu0 %v238
  %660 = vmatpush.msra.mxu0 %v234
  %661 = vmatmul.f32.gmra.mxu0 %v572
  %v662 = vpop.f32.mrf.mxu0
  %v663 = vadd.f32 %v643, %v662
  %664 = vdwg.mxu0
  %665 = vmatpush.msra.mxu0 %v358
  %666 = vmatpush.msra.mxu0 %v354
  %667 = vmatpush.msra.mxu0 %v350
  %668 = vmatpush.msra.mxu0 %v346
  %669 = vmatpush.msra.mxu0 %v342
  %670 = vmatpush.msra.mxu0 %v338
  %671 = vmatpush.msra.mxu0 %v334
  %672 = vmatpush.msra.mxu0 %v330
  %673 = vmatpush.msra.mxu0 %v326
  %674 = vmatpush.msra.mxu0 %v322
  %675 = vmatpush.msra.mxu0 %v318
  %676 = vmatpush.msra.mxu0 %v314
  %677 = vmatpush.msra.mxu0 %v310
  %678 = vmatpush.msra.mxu0 %v306
  %679 = vmatpush.msra.mxu0 %v302
  %680 = vmatpush.msra.mxu0 %v298
  %681 = vmatmul.f32.gmra.mxu0 %v573
  %v682 = vpop.f32.mrf.mxu0
  %v683 = vadd.f32 %v663, %v682
  %684 = vdwg.mxu0
  %685 = vmatpush.msra.mxu0 %v422
  %686 = vmatpush.msra.mxu0 %v418
  %687 = vmatpush.msra.mxu0 %v414
  %688 = vmatpush.msra.mxu0 %v410
  %689 = vmatpush.msra.mxu0 %v406
  %690 = vmatpush.msra.mxu0 %v402
  %691 = vmatpush.msra.mxu0 %v398
  %692 = vmatpush.msra.mxu0 %v394
  %693 = vmatpush.msra.mxu0 %v390
  %694 = vmatpush.msra.mxu0 %v386
  %695 = vmatpush.msra.mxu0 %v382
  %696 = vmatpush.msra.mxu0 %v378
  %697 = vmatpush.msra.mxu0 %v374
  %698 = vmatpush.msra.mxu0 %v370
  %699 = vmatpush.msra.mxu0 %v366
  %700 = vmatpush.msra.mxu0 %v362
  %701 = vmatmul.f32.gmra.mxu0 %v574
  %v702 = vpop.f32.mrf.mxu0
  %v703 = vadd.f32 %v683, %v702
  %704 = vdwg.mxu0
  %705 = vmatpush.msra.mxu0 %v486
  %706 = vmatpush.msra.mxu0 %v482
  %707 = vmatpush.msra.mxu0 %v478
  %708 = vmatpush.msra.mxu0 %v474
  %709 = vmatpush.msra.mxu0 %v470
  %710 = vmatpush.msra.mxu0 %v466
  %711 = vmatpush.msra.mxu0 %v462
  %712 = vmatpush.msra.mxu0 %v458
  %713 = vmatpush.msra.mxu0 %v454
  %714 = vmatpush.msra.mxu0 %v450
  %715 = vmatpush.msra.mxu0 %v446
  %716 = vmatpush.msra.mxu0 %v442
  %717 = vmatpush.msra.mxu0 %v438
  %718 = vmatpush.msra.mxu0 %v434
  %719 = vmatpush.msra.mxu0 %v430
  %720 = vmatpush.msra.mxu0 %v426
  %721 = vmatmul.f32.gmra.mxu0 %v575
  %v722 = vpop.f32.mrf.mxu0
  %v723 = vadd.f32 %v703, %v722
  %724 = vdwg.mxu0
  %725 = vmatpush.msra.mxu0 %v550
  %726 = vmatpush.msra.mxu0 %v546
  %727 = vmatpush.msra.mxu0 %v542
  %728 = vmatpush.msra.mxu0 %v538
  %729 = vmatpush.msra.mxu0 %v534
  %730 = vmatpush.msra.mxu0 %v530
  %731 = vmatpush.msra.mxu0 %v526
  %732 = vmatpush.msra.mxu0 %v522
  %733 = vmatpush.msra.mxu0 %v518
  %734 = vmatpush.msra.mxu0 %v514
  %735 = vmatpush.msra.mxu0 %v510
  %736 = vmatpush.msra.mxu0 %v506
  %737 = vmatpush.msra.mxu0 %v502
  %738 = vmatpush.msra.mxu0 %v498
  %739 = vmatpush.msra.mxu0 %v494
  %740 = vmatpush.msra.mxu0 %v490
  %741 = vmatmul.f32.gmra.mxu0 %v576
  %v742 = vpop.f32.mrf.mxu0
  %v743 = vadd.f32 %v723, %v742
  %744 = vdwg.mxu0
  %745 = vmatpush.msra.mxu0 %v103
  %746 = vmatpush.msra.mxu0 %v99
  %747 = vmatpush.msra.mxu0 %v95
  %748 = vmatpush.msra.mxu0 %v91
  %749 = vmatpush.msra.mxu0 %v87
  %750 = vmatpush.msra.mxu0 %v83
  %751 = vmatpush.msra.mxu0 %v79
  %752 = vmatpush.msra.mxu0 %v75
  %753 = vmatpush.msra.mxu0 %v71
  %754 = vmatpush.msra.mxu0 %v67
  %755 = vmatpush.msra.mxu0 %v63
  %756 = vmatpush.msra.mxu0 %v59
  %757 = vmatpush.msra.mxu0 %v55
  %758 = vmatpush.msra.mxu0 %v51
  %759 = vmatpush.msra.mxu0 %v47
  %760 = vmatpush.msra.mxu0 %v43
  %761 = vmatmul.f32.gmra.mxu0 %v569
  %v762 = vpop.f32.mrf.mxu0
  %v763 = vadd.f32 %v557, %v762
  %764 = vdwg.mxu0
  %765 = vmatpush.msra.mxu0 %v167
  %766 = vmatpush.msra.mxu0 %v163
  %767 = vmatpush.msra.mxu0 %v159
  %768 = vmatpush.msra.mxu0 %v155
  %769 = vmatpush.msra.mxu0 %v151
  %770 = vmatpush.msra.mxu0 %v147
  %771 = vmatpush.msra.mxu0 %v143
  %772 = vmatpush.msra.mxu0 %v139
  %773 = vmatpush.msra.mxu0 %v135
  %774 = vmatpush.msra.mxu0 %v131
  %775 = vmatpush.msra.mxu0 %v127
  %776 = vmatpush.msra.mxu0 %v123
  %777 = vmatpush.msra.mxu0 %v119
  %778 = vmatpush.msra.mxu0 %v115
  %779 = vmatpush.msra.mxu0 %v111
  %780 = vmatpush.msra.mxu0 %v107
  %781 = vmatmul.f32.gmra.mxu0 %v570
  %v782 = vpop.f32.mrf.mxu0
  %v783 = vadd.f32 %v763, %v782
  %784 = vdwg.mxu0
  %785 = vmatpush.msra.mxu0 %v231
  %786 = vmatpush.msra.mxu0 %v227
  %787 = vmatpush.msra.mxu0 %v223
  %788 = vmatpush.msra.mxu0 %v219
  %789 = vmatpush.msra.mxu0 %v215
  %790 = vmatpush.msra.mxu0 %v211
  %791 = vmatpush.msra.mxu0 %v207
  %792 = vmatpush.msra.mxu0 %v203
  %793 = vmatpush.msra.mxu0 %v199
  %794 = vmatpush.msra.mxu0 %v195
  %795 = vmatpush.msra.mxu0 %v191
  %796 = vmatpush.msra.mxu0 %v187
  %797 = vmatpush.msra.mxu0 %v183
  %798 = vmatpush.msra.mxu0 %v179
  %799 = vmatpush.msra.mxu0 %v175
  %800 = vmatpush.msra.mxu0 %v171
  %801 = vmatmul.f32.gmra.mxu0 %v571
  %v802 = vpop.f32.mrf.mxu0
  %v803 = vadd.f32 %v783, %v802
  %804 = vdwg.mxu0
  %805 = vmatpush.msra.mxu0 %v295
  %806 = vmatpush.msra.mxu0 %v291
  %807 = vmatpush.msra.mxu0 %v287
  %808 = vmatpush.msra.mxu0 %v283
  %809 = vmatpush.msra.mxu0 %v279
  %810 = vmatpush.msra.mxu0 %v275
  %811 = vmatpush.msra.mxu0 %v271
  %812 = vmatpush.msra.mxu0 %v267
  %813 = vmatpush.msra.mxu0 %v263
  %814 = vmatpush.msra.mxu0 %v259
  %815 = vmatpush.msra.mxu0 %v255
  %816 = vmatpush.msra.mxu0 %v251
  %817 = vmatpush.msra.mxu0 %v247
  %818 = vmatpush.msra.mxu0 %v243
  %819 = vmatpush.msra.mxu0 %v239
  %820 = vmatpush.msra.mxu0 %v235
  %821 = vmatmul.f32.gmra.mxu0 %v572
  %v822 = vpop.f32.mrf.mxu0
  %v823 = vadd.f32 %v803, %v822
  %824 = vdwg.mxu0
  %825 = vmatpush.msra.mxu0 %v359
  %826 = vmatpush.msra.mxu0 %v355
  %827 = vmatpush.msra.mxu0 %v351
  %828 = vmatpush.msra.mxu0 %v347
  %829 = vmatpush.msra.mxu0 %v343
  %830 = vmatpush.msra.mxu0 %v339
  %831 = vmatpush.msra.mxu0 %v335
  %832 = vmatpush.msra.mxu0 %v331
  %833 = vmatpush.msra.mxu0 %v327
  %834 = vmatpush.msra.mxu0 %v323
  %835 = vmatpush.msra.mxu0 %v319
  %836 = vmatpush.msra.mxu0 %v315
  %837 = vmatpush.msra.mxu0 %v311
  %838 = vmatpush.msra.mxu0 %v307
  %839 = vmatpush.msra.mxu0 %v303
  %840 = vmatpush.msra.mxu0 %v299
  %841 = vmatmul.f32.gmra.mxu0 %v573
  %v842 = vpop.f32.mrf.mxu0
  %v843 = vadd.f32 %v823, %v842
  %844 = vdwg.mxu0
  %845 = vmatpush.msra.mxu0 %v423
  %846 = vmatpush.msra.mxu0 %v419
  %847 = vmatpush.msra.mxu0 %v415
  %848 = vmatpush.msra.mxu0 %v411
  %849 = vmatpush.msra.mxu0 %v407
  %850 = vmatpush.msra.mxu0 %v403
  %851 = vmatpush.msra.mxu0 %v399
  %852 = vmatpush.msra.mxu0 %v395
  %853 = vmatpush.msra.mxu0 %v391
  %854 = vmatpush.msra.mxu0 %v387
  %855 = vmatpush.msra.mxu0 %v383
  %856 = vmatpush.msra.mxu0 %v379
  %857 = vmatpush.msra.mxu0 %v375
  %858 = vmatpush.msra.mxu0 %v371
  %859 = vmatpush.msra.mxu0 %v367
  %860 = vmatpush.msra.mxu0 %v363
  %861 = vmatmul.f32.gmra.mxu0 %v574
  %v862 = vpop.f32.mrf.mxu0
  %v863 = vadd.f32 %v843, %v862
  %864 = vdwg.mxu0
  %865 = vmatpush.msra.mxu0 %v487
  %866 = vmatpush.msra.mxu0 %v483
  %867 = vmatpush.msra.mxu0 %v479
  %868 = vmatpush.msra.mxu0 %v475
  %869 = vmatpush.msra.mxu0 %v471
  %870 = vmatpush.msra.mxu0 %v467
  %871 = vmatpush.msra.mxu0 %v463
  %872 = vmatpush.msra.mxu0 %v459
  %873 = vmatpush.msra.mxu0 %v455
  %874 = vmatpush.msra.mxu0 %v451
  %875 = vmatpush.msra.mxu0 %v447
  %876 = vmatpush.msra.mxu0 %v443
  %877 = vmatpush.msra.mxu0 %v439
  %878 = vmatpush.msra.mxu0 %v435
  %879 = vmatpush.msra.mxu0 %v431
  %880 = vmatpush.msra.mxu0 %v427
  %881 = vmatmul.f32.gmra.mxu0 %v575
  %v882 = vpop.f32.mrf.mxu0
  %v883 = vadd.f32 %v863, %v882
  %884 = vdwg.mxu0
  %885 = vmatpush.msra.mxu0 %v551
  %886 = vmatpush.msra.mxu0 %v547
  %887 = vmatpush.msra.mxu0 %v543
  %888 = vmatpush.msra.mxu0 %v539
  %889 = vmatpush.msra.mxu0 %v535
  %890 = vmatpush.msra.mxu0 %v531
  %891 = vmatpush.msra.mxu0 %v527
  %892 = vmatpush.msra.mxu0 %v523
  %893 = vmatpush.msra.mxu0 %v519
  %894 = vmatpush.msra.mxu0 %v515
  %895 = vmatpush.msra.mxu0 %v511
  %896 = vmatpush.msra.mxu0 %v507
  %897 = vmatpush.msra.mxu0 %v503
  %898 = vmatpush.msra.mxu0 %v499
  %899 = vmatpush.msra.mxu0 %v495
  %900 = vmatpush.msra.mxu0 %v491
  %901 = vmatmul.f32.gmra.mxu0 %v576
  %v902 = vpop.f32.mrf.mxu0
  %v903 = vadd.f32 %v883, %v902
  %904 = vdwg.mxu0
  %905 = vmatpush.msra.mxu0 %v104
  %906 = vmatpush.msra.mxu0 %v100
  %907 = vmatpush.msra.mxu0 %v96
  %908 = vmatpush.msra.mxu0 %v92
  %909 = vmatpush.msra.mxu0 %v88
  %910 = vmatpush.msra.mxu0 %v84
  %911 = vmatpush.msra.mxu0 %v80
  %912 = vmatpush.msra.mxu0 %v76
  %913 = vmatpush.msra.mxu0 %v72
  %914 = vmatpush.msra.mxu0 %v68
  %915 = vmatpush.msra.mxu0 %v64
  %916 = vmatpush.msra.mxu0 %v60
  %917 = vmatpush.msra.mxu0 %v56
  %918 = vmatpush.msra.mxu0 %v52
  %919 = vmatpush.msra.mxu0 %v48
  %920 = vmatpush.msra.mxu0 %v44
  %921 = vmatmul.f32.gmra.mxu0 %v569
  %v922 = vpop.f32.mrf.mxu0
  %v923 = vadd.f32 %v558, %v922
  %924 = vdwg.mxu0
  %925 = vmatpush.msra.mxu0 %v168
  %926 = vmatpush.msra.mxu0 %v164
  %927 = vmatpush.msra.mxu0 %v160
  %928 = vmatpush.msra.mxu0 %v156
  %929 = vmatpush.msra.mxu0 %v152
  %930 = vmatpush.msra.mxu0 %v148
  %931 = vmatpush.msra.mxu0 %v144
  %932 = vmatpush.msra.mxu0 %v140
  %933 = vmatpush.msra.mxu0 %v136
  %934 = vmatpush.msra.mxu0 %v132
  %935 = vmatpush.msra.mxu0 %v128
  %936 = vmatpush.msra.mxu0 %v124
  %937 = vmatpush.msra.mxu0 %v120
  %938 = vmatpush.msra.mxu0 %v116
  %939 = vmatpush.msra.mxu0 %v112
  %940 = vmatpush.msra.mxu0 %v108
  %941 = vmatmul.f32.gmra.mxu0 %v570
  %v942 = vpop.f32.mrf.mxu0
  %v943 = vadd.f32 %v923, %v942
  %944 = vdwg.mxu0
  %945 = vmatpush.msra.mxu0 %v232
  %946 = vmatpush.msra.mxu0 %v228
  %947 = vmatpush.msra.mxu0 %v224
  %948 = vmatpush.msra.mxu0 %v220
  %949 = vmatpush.msra.mxu0 %v216
  %950 = vmatpush.msra.mxu0 %v212
  %951 = vmatpush.msra.mxu0 %v208
  %952 = vmatpush.msra.mxu0 %v204
  %953 = vmatpush.msra.mxu0 %v200
  %954 = vmatpush.msra.mxu0 %v196
  %955 = vmatpush.msra.mxu0 %v192
  %956 = vmatpush.msra.mxu0 %v188
  %957 = vmatpush.msra.mxu0 %v184
  %958 = vmatpush.msra.mxu0 %v180
  %959 = vmatpush.msra.mxu0 %v176
  %960 = vmatpush.msra.mxu0 %v172
  %961 = vmatmul.f32.gmra.mxu0 %v571
  %v962 = vpop.f32.mrf.mxu0
  %v963 = vadd.f32 %v943, %v962
  %964 = vdwg.mxu0
  %965 = vmatpush.msra.mxu0 %v296
  %966 = vmatpush.msra.mxu0 %v292
  %967 = vmatpush.msra.mxu0 %v288
  %968 = vmatpush.msra.mxu0 %v284
  %969 = vmatpush.msra.mxu0 %v280
  %970 = vmatpush.msra.mxu0 %v276
  %971 = vmatpush.msra.mxu0 %v272
  %972 = vmatpush.msra.mxu0 %v268
  %973 = vmatpush.msra.mxu0 %v264
  %974 = vmatpush.msra.mxu0 %v260
  %975 = vmatpush.msra.mxu0 %v256
  %976 = vmatpush.msra.mxu0 %v252
  %977 = vmatpush.msra.mxu0 %v248
  %978 = vmatpush.msra.mxu0 %v244
  %979 = vmatpush.msra.mxu0 %v240
  %980 = vmatpush.msra.mxu0 %v236
  %981 = vmatmul.f32.gmra.mxu0 %v572
  %v982 = vpop.f32.mrf.mxu0
  %v983 = vadd.f32 %v963, %v982
  %984 = vdwg.mxu0
  %985 = vmatpush.msra.mxu0 %v360
  %986 = vmatpush.msra.mxu0 %v356
  %987 = vmatpush.msra.mxu0 %v352
  %988 = vmatpush.msra.mxu0 %v348
  %989 = vmatpush.msra.mxu0 %v344
  %990 = vmatpush.msra.mxu0 %v340
  %991 = vmatpush.msra.mxu0 %v336
  %992 = vmatpush.msra.mxu0 %v332
  %993 = vmatpush.msra.mxu0 %v328
  %994 = vmatpush.msra.mxu0 %v324
  %995 = vmatpush.msra.mxu0 %v320
  %996 = vmatpush.msra.mxu0 %v316
  %997 = vmatpush.msra.mxu0 %v312
  %998 = vmatpush.msra.mxu0 %v308
  %999 = vmatpush.msra.mxu0 %v304
  %1000 = vmatpush.msra.mxu0 %v300
  %1001 = vmatmul.f32.gmra.mxu0 %v573
  %v1002 = vpop.f32.mrf.mxu0
  %v1003 = vadd.f32 %v983, %v1002
  %1004 = vdwg.mxu0
  %1005 = vmatpush.msra.mxu0 %v424
  %1006 = vmatpush.msra.mxu0 %v420
  %1007 = vmatpush.msra.mxu0 %v416
  %1008 = vmatpush.msra.mxu0 %v412
  %1009 = vmatpush.msra.mxu0 %v408
  %1010 = vmatpush.msra.mxu0 %v404
  %1011 = vmatpush.msra.mxu0 %v400
  %1012 = vmatpush.msra.mxu0 %v396
  %1013 = vmatpush.msra.mxu0 %v392
  %1014 = vmatpush.msra.mxu0 %v388
  %1015 = vmatpush.msra.mxu0 %v384
  %1016 = vmatpush.msra.mxu0 %v380
  %1017 = vmatpush.msra.mxu0 %v376
  %1018 = vmatpush.msra.mxu0 %v372
  %1019 = vmatpush.msra.mxu0 %v368
  %1020 = vmatpush.msra.mxu0 %v364
  %1021 = vmatmul.f32.gmra.mxu0 %v574
  %v1022 = vpop.f32.mrf.mxu0
  %v1023 = vadd.f32 %v1003, %v1022
  %1024 = vdwg.mxu0
  %1025 = vmatpush.msra.mxu0 %v488
  %1026 = vmatpush.msra.mxu0 %v484
  %1027 = vmatpush.msra.mxu0 %v480
  %1028 = vmatpush.msra.mxu0 %v476
  %1029 = vmatpush.msra.mxu0 %v472
  %1030 = vmatpush.msra.mxu0 %v468
  %1031 = vmatpush.msra.mxu0 %v464
  %1032 = vmatpush.msra.mxu0 %v460
  %1033 = vmatpush.msra.mxu0 %v456
  %1034 = vmatpush.msra.mxu0 %v452
  %1035 = vmatpush.msra.mxu0 %v448
  %1036 = vmatpush.msra.mxu0 %v444
  %1037 = vmatpush.msra.mxu0 %v440
  %1038 = vmatpush.msra.mxu0 %v436
  %1039 = vmatpush.msra.mxu0 %v432
  %1040 = vmatpush.msra.mxu0 %v428
  %1041 = vmatmul.f32.gmra.mxu0 %v575
  %v1042 = vpop.f32.mrf.mxu0
  %v1043 = vadd.f32 %v1023, %v1042
  %1044 = vdwg.mxu0
  %1045 = vmatpush.msra.mxu0 %v552
  %1046 = vmatpush.msra.mxu0 %v548
  %1047 = vmatpush.msra.mxu0 %v544
  %1048 = vmatpush.msra.mxu0 %v540
  %1049 = vmatpush.msra.mxu0 %v536
  %1050 = vmatpush.msra.mxu0 %v532
  %1051 = vmatpush.msra.mxu0 %v528
  %1052 = vmatpush.msra.mxu0 %v524
  %1053 = vmatpush.msra.mxu0 %v520
  %1054 = vmatpush.msra.mxu0 %v516
  %1055 = vmatpush.msra.mxu0 %v512
  %1056 = vmatpush.msra.mxu0 %v508
  %1057 = vmatpush.msra.mxu0 %v504
  %1058 = vmatpush.msra.mxu0 %v500
  %1059 = vmatpush.msra.mxu0 %v496
  %1060 = vmatpush.msra.mxu0 %v492
  %1061 = vmatmul.f32.gmra.mxu0 %v576
  %v1062 = vpop.f32.mrf.mxu0
  %v1063 = vadd.f32 %v1043, %v1062
  %1064 = vdwg.mxu0
  %1065 = vmatpush.msra.mxu0 %v105
  %1066 = vmatpush.msra.mxu0 %v101
  %1067 = vmatpush.msra.mxu0 %v97
  %1068 = vmatpush.msra.mxu0 %v93
  %1069 = vmatpush.msra.mxu0 %v89
  %1070 = vmatpush.msra.mxu0 %v85
  %1071 = vmatpush.msra.mxu0 %v81
  %1072 = vmatpush.msra.mxu0 %v77
  %1073 = vmatpush.msra.mxu0 %v73
  %1074 = vmatpush.msra.mxu0 %v69
  %1075 = vmatpush.msra.mxu0 %v65
  %1076 = vmatpush.msra.mxu0 %v61
  %1077 = vmatpush.msra.mxu0 %v57
  %1078 = vmatpush.msra.mxu0 %v53
  %1079 = vmatpush.msra.mxu0 %v49
  %1080 = vmatpush.msra.mxu0 %v45
  %1081 = vmatmul.f32.gmra.mxu0 %v569
  %v1082 = vpop.f32.mrf.mxu0
  %v1083 = vadd.f32 %v559, %v1082
  %1084 = vdwg.mxu0
  %1085 = vmatpush.msra.mxu0 %v169
  %1086 = vmatpush.msra.mxu0 %v165
  %1087 = vmatpush.msra.mxu0 %v161
  %1088 = vmatpush.msra.mxu0 %v157
  %1089 = vmatpush.msra.mxu0 %v153
  %1090 = vmatpush.msra.mxu0 %v149
  %1091 = vmatpush.msra.mxu0 %v145
  %1092 = vmatpush.msra.mxu0 %v141
  %1093 = vmatpush.msra.mxu0 %v137
  %1094 = vmatpush.msra.mxu0 %v133
  %1095 = vmatpush.msra.mxu0 %v129
  %1096 = vmatpush.msra.mxu0 %v125
  %1097 = vmatpush.msra.mxu0 %v121
  %1098 = vmatpush.msra.mxu0 %v117
  %1099 = vmatpush.msra.mxu0 %v113
  %1100 = vmatpush.msra.mxu0 %v109
  %1101 = vmatmul.f32.gmra.mxu0 %v570
  %v1102 = vpop.f32.mrf.mxu0
  %v1103 = vadd.f32 %v1083, %v1102
  %1104 = vdwg.mxu0
  %1105 = vmatpush.msra.mxu0 %v233
  %1106 = vmatpush.msra.mxu0 %v229
  %1107 = vmatpush.msra.mxu0 %v225
  %1108 = vmatpush.msra.mxu0 %v221
  %1109 = vmatpush.msra.mxu0 %v217
  %1110 = vmatpush.msra.mxu0 %v213
  %1111 = vmatpush.msra.mxu0 %v209
  %1112 = vmatpush.msra.mxu0 %v205
  %1113 = vmatpush.msra.mxu0 %v201
  %1114 = vmatpush.msra.mxu0 %v197
  %1115 = vmatpush.msra.mxu0 %v193
  %1116 = vmatpush.msra.mxu0 %v189
  %1117 = vmatpush.msra.mxu0 %v185
  %1118 = vmatpush.msra.mxu0 %v181
  %1119 = vmatpush.msra.mxu0 %v177
  %1120 = vmatpush.msra.mxu0 %v173
  %1121 = vmatmul.f32.gmra.mxu0 %v571
  %v1122 = vpop.f32.mrf.mxu0
  %v1123 = vadd.f32 %v1103, %v1122
  %1124 = vdwg.mxu0
  %1125 = vmatpush.msra.mxu0 %v297
  %1126 = vmatpush.msra.mxu0 %v293
  %1127 = vmatpush.msra.mxu0 %v289
  %1128 = vmatpush.msra.mxu0 %v285
  %1129 = vmatpush.msra.mxu0 %v281
  %1130 = vmatpush.msra.mxu0 %v277
  %1131 = vmatpush.msra.mxu0 %v273
  %1132 = vmatpush.msra.mxu0 %v269
  %1133 = vmatpush.msra.mxu0 %v265
  %1134 = vmatpush.msra.mxu0 %v261
  %1135 = vmatpush.msra.mxu0 %v257
  %1136 = vmatpush.msra.mxu0 %v253
  %1137 = vmatpush.msra.mxu0 %v249
  %1138 = vmatpush.msra.mxu0 %v245
  %1139 = vmatpush.msra.mxu0 %v241
  %1140 = vmatpush.msra.mxu0 %v237
  %1141 = vmatmul.f32.gmra.mxu0 %v572
  %v1142 = vpop.f32.mrf.mxu0
  %v1143 = vadd.f32 %v1123, %v1142
  %1144 = vdwg.mxu0
  %1145 = vmatpush.msra.mxu0 %v361
  %1146 = vmatpush.msra.mxu0 %v357
  %1147 = vmatpush.msra.mxu0 %v353
  %1148 = vmatpush.msra.mxu0 %v349
  %1149 = vmatpush.msra.mxu0 %v345
  %1150 = vmatpush.msra.mxu0 %v341
  %1151 = vmatpush.msra.mxu0 %v337
  %1152 = vmatpush.msra.mxu0 %v333
  %1153 = vmatpush.msra.mxu0 %v329
  %1154 = vmatpush.msra.mxu0 %v325
  %1155 = vmatpush.msra.mxu0 %v321
  %1156 = vmatpush.msra.mxu0 %v317
  %1157 = vmatpush.msra.mxu0 %v313
  %1158 = vmatpush.msra.mxu0 %v309
  %1159 = vmatpush.msra.mxu0 %v305
  %1160 = vmatpush.msra.mxu0 %v301
  %1161 = vmatmul.f32.gmra.mxu0 %v573
  %v1162 = vpop.f32.mrf.mxu0
  %v1163 = vadd.f32 %v1143, %v1162
  %1164 = vdwg.mxu0
  %1165 = vmatpush.msra.mxu0 %v425
  %1166 = vmatpush.msra.mxu0 %v421
  %1167 = vmatpush.msra.mxu0 %v417
  %1168 = vmatpush.msra.mxu0 %v413
  %1169 = vmatpush.msra.mxu0 %v409
  %1170 = vmatpush.msra.mxu0 %v405
  %1171 = vmatpush.msra.mxu0 %v401
  %1172 = vmatpush.msra.mxu0 %v397
  %1173 = vmatpush.msra.mxu0 %v393
  %1174 = vmatpush.msra.mxu0 %v389
  %1175 = vmatpush.msra.mxu0 %v385
  %1176 = vmatpush.msra.mxu0 %v381
  %1177 = vmatpush.msra.mxu0 %v377
  %1178 = vmatpush.msra.mxu0 %v373
  %1179 = vmatpush.msra.mxu0 %v369
  %1180 = vmatpush.msra.mxu0 %v365
  %1181 = vmatmul.f32.gmra.mxu0 %v574
  %v1182 = vpop.f32.mrf.mxu0
  %v1183 = vadd.f32 %v1163, %v1182
  %1184 = vdwg.mxu0
  %1185 = vmatpush.msra.mxu0 %v489
  %1186 = vmatpush.msra.mxu0 %v485
  %1187 = vmatpush.msra.mxu0 %v481
  %1188 = vmatpush.msra.mxu0 %v477
  %1189 = vmatpush.msra.mxu0 %v473
  %1190 = vmatpush.msra.mxu0 %v469
  %1191 = vmatpush.msra.mxu0 %v465
  %1192 = vmatpush.msra.mxu0 %v461
  %1193 = vmatpush.msra.mxu0 %v457
  %1194 = vmatpush.msra.mxu0 %v453
  %1195 = vmatpush.msra.mxu0 %v449
  %1196 = vmatpush.msra.mxu0 %v445
  %1197 = vmatpush.msra.mxu0 %v441
  %1198 = vmatpush.msra.mxu0 %v437
  %1199 = vmatpush.msra.mxu0 %v433
  %1200 = vmatpush.msra.mxu0 %v429
  %1201 = vmatmul.f32.gmra.mxu0 %v575
  %v1202 = vpop.f32.mrf.mxu0
  %v1203 = vadd.f32 %v1183, %v1202
  %1204 = vdwg.mxu0
  %1205 = vmatpush.msra.mxu0 %v553
  %1206 = vmatpush.msra.mxu0 %v549
  %1207 = vmatpush.msra.mxu0 %v545
  %1208 = vmatpush.msra.mxu0 %v541
  %1209 = vmatpush.msra.mxu0 %v537
  %1210 = vmatpush.msra.mxu0 %v533
  %1211 = vmatpush.msra.mxu0 %v529
  %1212 = vmatpush.msra.mxu0 %v525
  %1213 = vmatpush.msra.mxu0 %v521
  %1214 = vmatpush.msra.mxu0 %v517
  %1215 = vmatpush.msra.mxu0 %v513
  %1216 = vmatpush.msra.mxu0 %v509
  %1217 = vmatpush.msra.mxu0 %v505
  %1218 = vmatpush.msra.mxu0 %v501
  %1219 = vmatpush.msra.mxu0 %v497
  %1220 = vmatpush.msra.mxu0 %v493
  %1221 = vmatmul.f32.gmra.mxu0 %v576
  %v1222 = vpop.f32.mrf.mxu0
  %v1223 = vadd.f32 %v1203, %v1222
  %1224 = vdwg.mxu0
  %v1225 = vld [vmem:[%s3] sm:$0xff]
  %v1226 = vld [vmem:[%s3 + $0x8] sm:$0xff]
  %v1227 = vld [vmem:[%s3 + $0x10] sm:$0xff]
  %v1228 = vld [vmem:[%s3 + $0x18] sm:$0xff]
  %v1229 = vld [vmem:[%s3 + $0x20] sm:$0xff]
  %v1230 = vld [vmem:[%s3 + $0x28] sm:$0xff]
  %v1231 = vld [vmem:[%s3 + $0x30] sm:$0xff]
  %v1232 = vld [vmem:[%s3 + $0x38] sm:$0xff]
  %v1233 = vld [vmem:[%s3 + $0x40] sm:$0xff]
  %v1234 = vld [vmem:[%s3 + $0x48] sm:$0xff]
  %v1235 = vld [vmem:[%s3 + $0x50] sm:$0xff]
  %v1236 = vld [vmem:[%s3 + $0x58] sm:$0xff]
  %v1237 = vld [vmem:[%s3 + $0x60] sm:$0xff]
  %v1238 = vld [vmem:[%s3 + $0x68] sm:$0xff]
  %v1239 = vld [vmem:[%s3 + $0x70] sm:$0xff]
  %v1240 = vld [vmem:[%s3 + $0x78] sm:$0xff]
  %v1241 = vld [vmem:[%s3 + $0x80] sm:$0xff]
  %v1242 = vld [vmem:[%s3 + $0x88] sm:$0xff]
  %v1243 = vld [vmem:[%s3 + $0x90] sm:$0xff]
  %v1244 = vld [vmem:[%s3 + $0x98] sm:$0xff]
  %v1245 = vld [vmem:[%s3 + $0xa0] sm:$0xff]
  %v1246 = vld [vmem:[%s3 + $0xa8] sm:$0xff]
  %v1247 = vld [vmem:[%s3 + $0xb0] sm:$0xff]
  %v1248 = vld [vmem:[%s3 + $0xb8] sm:$0xff]
  %v1249 = vld [vmem:[%s3 + $0xc0] sm:$0xff]
  %v1250 = vld [vmem:[%s3 + $0xc8] sm:$0xff]
  %v1251 = vld [vmem:[%s3 + $0xd0] sm:$0xff]
  %v1252 = vld [vmem:[%s3 + $0xd8] sm:$0xff]
  %v1253 = vld [vmem:[%s3 + $0xe0] sm:$0xff]
  %v1254 = vld [vmem:[%s3 + $0xe8] sm:$0xff]
  %v1255 = vld [vmem:[%s3 + $0xf0] sm:$0xff]
  %v1256 = vld [vmem:[%s3 + $0xf8] sm:$0xff]
  %v1257 = vld [vmem:[%s3 + $0x100] sm:$0xff]
  %v1258 = vld [vmem:[%s3 + $0x108] sm:$0xff]
  %v1259 = vld [vmem:[%s3 + $0x110] sm:$0xff]
  %v1260 = vld [vmem:[%s3 + $0x118] sm:$0xff]
  %v1261 = vld [vmem:[%s3 + $0x120] sm:$0xff]
  %v1262 = vld [vmem:[%s3 + $0x128] sm:$0xff]
  %v1263 = vld [vmem:[%s3 + $0x130] sm:$0xff]
  %v1264 = vld [vmem:[%s3 + $0x138] sm:$0xff]
  %v1265 = vld [vmem:[%s3 + $0x140] sm:$0xff]
  %v1266 = vld [vmem:[%s3 + $0x148] sm:$0xff]
  %v1267 = vld [vmem:[%s3 + $0x150] sm:$0xff]
  %v1268 = vld [vmem:[%s3 + $0x158] sm:$0xff]
  %v1269 = vld [vmem:[%s3 + $0x160] sm:$0xff]
  %v1270 = vld [vmem:[%s3 + $0x168] sm:$0xff]
  %v1271 = vld [vmem:[%s3 + $0x170] sm:$0xff]
  %v1272 = vld [vmem:[%s3 + $0x178] sm:$0xff]
  %v1273 = vld [vmem:[%s3 + $0x180] sm:$0xff]
  %v1274 = vld [vmem:[%s3 + $0x188] sm:$0xff]
  %v1275 = vld [vmem:[%s3 + $0x190] sm:$0xff]
  %v1276 = vld [vmem:[%s3 + $0x198] sm:$0xff]
  %v1277 = vld [vmem:[%s3 + $0x1a0] sm:$0xff]
  %v1278 = vld [vmem:[%s3 + $0x1a8] sm:$0xff]
  %v1279 = vld [vmem:[%s3 + $0x1b0] sm:$0xff]
  %v1280 = vld [vmem:[%s3 + $0x1b8] sm:$0xff]
  %v1281 = vld [vmem:[%s3 + $0x1c0] sm:$0xff]
  %v1282 = vld [vmem:[%s3 + $0x1c8] sm:$0xff]
  %v1283 = vld [vmem:[%s3 + $0x1d0] sm:$0xff]
  %v1284 = vld [vmem:[%s3 + $0x1d8] sm:$0xff]
  %v1285 = vld [vmem:[%s3 + $0x1e0] sm:$0xff]
  %v1286 = vld [vmem:[%s3 + $0x1e8] sm:$0xff]
  %v1287 = vld [vmem:[%s3 + $0x1f0] sm:$0xff]
  %v1288 = vld [vmem:[%s3 + $0x1f8] sm:$0xff]
  %v1289 = vld [vmem:[%s3 + $0x200] sm:$0xff]
  %v1290 = vld [vmem:[%s3 + $0x208] sm:$0xff]
  %v1291 = vld [vmem:[%s3 + $0x210] sm:$0xff]
  %v1292 = vld [vmem:[%s3 + $0x218] sm:$0xff]
  %v1293 = vld [vmem:[%s3 + $0x220] sm:$0xff]
  %v1294 = vld [vmem:[%s3 + $0x228] sm:$0xff]
  %v1295 = vld [vmem:[%s3 + $0x230] sm:$0xff]
  %v1296 = vld [vmem:[%s3 + $0x238] sm:$0xff]
  %v1297 = vld [vmem:[%s3 + $0x240] sm:$0xff]
  %v1298 = vld [vmem:[%s3 + $0x248] sm:$0xff]
  %v1299 = vld [vmem:[%s3 + $0x250] sm:$0xff]
  %v1300 = vld [vmem:[%s3 + $0x258] sm:$0xff]
  %v1301 = vld [vmem:[%s3 + $0x260] sm:$0xff]
  %v1302 = vld [vmem:[%s3 + $0x268] sm:$0xff]
  %v1303 = vld [vmem:[%s3 + $0x270] sm:$0xff]
  %v1304 = vld [vmem:[%s3 + $0x278] sm:$0xff]
  %v1305 = vld [vmem:[%s3 + $0x280] sm:$0xff]
  %v1306 = vld [vmem:[%s3 + $0x288] sm:$0xff]
  %v1307 = vld [vmem:[%s3 + $0x290] sm:$0xff]
  %v1308 = vld [vmem:[%s3 + $0x298] sm:$0xff]
  %v1309 = vld [vmem:[%s3 + $0x2a0] sm:$0xff]
  %v1310 = vld [vmem:[%s3 + $0x2a8] sm:$0xff]
  %v1311 = vld [vmem:[%s3 + $0x2b0] sm:$0xff]
  %v1312 = vld [vmem:[%s3 + $0x2b8] sm:$0xff]
  %v1313 = vld [vmem:[%s3 + $0x2c0] sm:$0xff]
  %v1314 = vld [vmem:[%s3 + $0x2c8] sm:$0xff]
  %v1315 = vld [vmem:[%s3 + $0x2d0] sm:$0xff]
  %v1316 = vld [vmem:[%s3 + $0x2d8] sm:$0xff]
  %v1317 = vld [vmem:[%s3 + $0x2e0] sm:$0xff]
  %v1318 = vld [vmem:[%s3 + $0x2e8] sm:$0xff]
  %v1319 = vld [vmem:[%s3 + $0x2f0] sm:$0xff]
  %v1320 = vld [vmem:[%s3 + $0x2f8] sm:$0xff]
  %v1321 = vld [vmem:[%s3 + $0x300] sm:$0xff]
  %v1322 = vld [vmem:[%s3 + $0x308] sm:$0xff]
  %v1323 = vld [vmem:[%s3 + $0x310] sm:$0xff]
  %v1324 = vld [vmem:[%s3 + $0x318] sm:$0xff]
  %v1325 = vld [vmem:[%s3 + $0x320] sm:$0xff]
  %v1326 = vld [vmem:[%s3 + $0x328] sm:$0xff]
  %v1327 = vld [vmem:[%s3 + $0x330] sm:$0xff]
  %v1328 = vld [vmem:[%s3 + $0x338] sm:$0xff]
  %v1329 = vld [vmem:[%s3 + $0x340] sm:$0xff]
  %v1330 = vld [vmem:[%s3 + $0x348] sm:$0xff]
  %v1331 = vld [vmem:[%s3 + $0x350] sm:$0xff]
  %v1332 = vld [vmem:[%s3 + $0x358] sm:$0xff]
  %v1333 = vld [vmem:[%s3 + $0x360] sm:$0xff]
  %v1334 = vld [vmem:[%s3 + $0x368] sm:$0xff]
  %v1335 = vld [vmem:[%s3 + $0x370] sm:$0xff]
  %v1336 = vld [vmem:[%s3 + $0x378] sm:$0xff]
  %v1337 = vld [vmem:[%s3 + $0x380] sm:$0xff]
  %v1338 = vld [vmem:[%s3 + $0x388] sm:$0xff]
  %v1339 = vld [vmem:[%s3 + $0x390] sm:$0xff]
  %v1340 = vld [vmem:[%s3 + $0x398] sm:$0xff]
  %v1341 = vld [vmem:[%s3 + $0x3a0] sm:$0xff]
  %v1342 = vld [vmem:[%s3 + $0x3a8] sm:$0xff]
  %v1343 = vld [vmem:[%s3 + $0x3b0] sm:$0xff]
  %v1344 = vld [vmem:[%s3 + $0x3b8] sm:$0xff]
  %v1345 = vld [vmem:[%s3 + $0x3c0] sm:$0xff]
  %v1346 = vld [vmem:[%s3 + $0x3c8] sm:$0xff]
  %v1347 = vld [vmem:[%s3 + $0x3d0] sm:$0xff]
  %v1348 = vld [vmem:[%s3 + $0x3d8] sm:$0xff]
  %v1349 = vld [vmem:[%s3 + $0x3e0] sm:$0xff]
  %v1350 = vld [vmem:[%s3 + $0x3e8] sm:$0xff]
  %v1351 = vld [vmem:[%s3 + $0x3f0] sm:$0xff]
  %v1352 = vld [vmem:[%s3 + $0x3f8] sm:$0xff]
  %v1353 = vld [vmem:[%s4] sm:$0x3]
  %v1355 = vperm.slane %v1353, 0
  %v1356 = vperm.slane %v1353, 1
  %1359 = vmatpush.msra.mxu0 %v1255
  %1360 = vmatpush.msra.mxu0 %v1253
  %1361 = vmatpush.msra.mxu0 %v1251
  %1362 = vmatpush.msra.mxu0 %v1249
  %1363 = vmatpush.msra.mxu0 %v1247
  %1364 = vmatpush.msra.mxu0 %v1245
  %1365 = vmatpush.msra.mxu0 %v1243
  %1366 = vmatpush.msra.mxu0 %v1241
  %1367 = vmatpush.msra.mxu0 %v1239
  %1368 = vmatpush.msra.mxu0 %v1237
  %1369 = vmatpush.msra.mxu0 %v1235
  %1370 = vmatpush.msra.mxu0 %v1233
  %1371 = vmatpush.msra.mxu0 %v1231
  %1372 = vmatpush.msra.mxu0 %v1229
  %1373 = vmatpush.msra.mxu0 %v1227
  %1374 = vmatpush.msra.mxu0 %v1225
  %1375 = vmatmul.f32.gmra.mxu0 %v743
  %v1376 = vpop.f32.mrf.mxu0
  %v1377 = vadd.f32 %v1355, %v1376
  %1378 = vdwg.mxu0
  %1379 = vmatpush.msra.mxu0 %v1287
  %1380 = vmatpush.msra.mxu0 %v1285
  %1381 = vmatpush.msra.mxu0 %v1283
  %1382 = vmatpush.msra.mxu0 %v1281
  %1383 = vmatpush.msra.mxu0 %v1279
  %1384 = vmatpush.msra.mxu0 %v1277
  %1385 = vmatpush.msra.mxu0 %v1275
  %1386 = vmatpush.msra.mxu0 %v1273
  %1387 = vmatpush.msra.mxu0 %v1271
  %1388 = vmatpush.msra.mxu0 %v1269
  %1389 = vmatpush.msra.mxu0 %v1267
  %1390 = vmatpush.msra.mxu0 %v1265
  %1391 = vmatpush.msra.mxu0 %v1263
  %1392 = vmatpush.msra.mxu0 %v1261
  %1393 = vmatpush.msra.mxu0 %v1259
  %1394 = vmatpush.msra.mxu0 %v1257
  %1395 = vmatmul.f32.gmra.mxu0 %v903
  %v1396 = vpop.f32.mrf.mxu0
  %v1397 = vadd.f32 %v1377, %v1396
  %1398 = vdwg.mxu0
  %1399 = vmatpush.msra.mxu0 %v1319
  %1400 = vmatpush.msra.mxu0 %v1317
  %1401 = vmatpush.msra.mxu0 %v1315
  %1402 = vmatpush.msra.mxu0 %v1313
  %1403 = vmatpush.msra.mxu0 %v1311
  %1404 = vmatpush.msra.mxu0 %v1309
  %1405 = vmatpush.msra.mxu0 %v1307
  %1406 = vmatpush.msra.mxu0 %v1305
  %1407 = vmatpush.msra.mxu0 %v1303
  %1408 = vmatpush.msra.mxu0 %v1301
  %1409 = vmatpush.msra.mxu0 %v1299
  %1410 = vmatpush.msra.mxu0 %v1297
  %1411 = vmatpush.msra.mxu0 %v1295
  %1412 = vmatpush.msra.mxu0 %v1293
  %1413 = vmatpush.msra.mxu0 %v1291
  %1414 = vmatpush.msra.mxu0 %v1289
  %1415 = vmatmul.f32.gmra.mxu0 %v1063
  %v1416 = vpop.f32.mrf.mxu0
  %v1417 = vadd.f32 %v1397, %v1416
  %1418 = vdwg.mxu0
  %1419 = vmatpush.msra.mxu0 %v1351
  %1420 = vmatpush.msra.mxu0 %v1349
  %1421 = vmatpush.msra.mxu0 %v1347
  %1422 = vmatpush.msra.mxu0 %v1345
  %1423 = vmatpush.msra.mxu0 %v1343
  %1424 = vmatpush.msra.mxu0 %v1341
  %1425 = vmatpush.msra.mxu0 %v1339
  %1426 = vmatpush.msra.mxu0 %v1337
  %1427 = vmatpush.msra.mxu0 %v1335
  %1428 = vmatpush.msra.mxu0 %v1333
  %1429 = vmatpush.msra.mxu0 %v1331
  %1430 = vmatpush.msra.mxu0 %v1329
  %1431 = vmatpush.msra.mxu0 %v1327
  %1432 = vmatpush.msra.mxu0 %v1325
  %1433 = vmatpush.msra.mxu0 %v1323
  %1434 = vmatpush.msra.mxu0 %v1321
  %1435 = vmatmul.f32.gmra.mxu0 %v1223
  %v1436 = vpop.f32.mrf.mxu0
  %v1437 = vadd.f32 %v1417, %v1436
  %1438 = vdwg.mxu0
  %1439 = vmatpush.msra.mxu0 %v1256
  %1440 = vmatpush.msra.mxu0 %v1254
  %1441 = vmatpush.msra.mxu0 %v1252
  %1442 = vmatpush.msra.mxu0 %v1250
  %1443 = vmatpush.msra.mxu0 %v1248
  %1444 = vmatpush.msra.mxu0 %v1246
  %1445 = vmatpush.msra.mxu0 %v1244
  %1446 = vmatpush.msra.mxu0 %v1242
  %1447 = vmatpush.msra.mxu0 %v1240
  %1448 = vmatpush.msra.mxu0 %v1238
  %1449 = vmatpush.msra.mxu0 %v1236
  %1450 = vmatpush.msra.mxu0 %v1234
  %1451 = vmatpush.msra.mxu0 %v1232
  %1452 = vmatpush.msra.mxu0 %v1230
  %1453 = vmatpush.msra.mxu0 %v1228
  %1454 = vmatpush.msra.mxu0 %v1226
  %1455 = vmatmul.f32.gmra.mxu0 %v743
  %v1456 = vpop.f32.mrf.mxu0
  %v1457 = vadd.f32 %v1356, %v1456
  %1458 = vdwg.mxu0
  %1459 = vmatpush.msra.mxu0 %v1288
  %1460 = vmatpush.msra.mxu0 %v1286
  %1461 = vmatpush.msra.mxu0 %v1284
  %1462 = vmatpush.msra.mxu0 %v1282
  %1463 = vmatpush.msra.mxu0 %v1280
  %1464 = vmatpush.msra.mxu0 %v1278
  %1465 = vmatpush.msra.mxu0 %v1276
  %1466 = vmatpush.msra.mxu0 %v1274
  %1467 = vmatpush.msra.mxu0 %v1272
  %1468 = vmatpush.msra.mxu0 %v1270
  %1469 = vmatpush.msra.mxu0 %v1268
  %1470 = vmatpush.msra.mxu0 %v1266
  %1471 = vmatpush.msra.mxu0 %v1264
  %1472 = vmatpush.msra.mxu0 %v1262
  %1473 = vmatpush.msra.mxu0 %v1260
  %1474 = vmatpush.msra.mxu0 %v1258
  %1475 = vmatmul.f32.gmra.mxu0 %v903
  %v1476 = vpop.f32.mrf.mxu0
  %v1477 = vadd.f32 %v1457, %v1476
  %1478 = vdwg.mxu0
  %1479 = vmatpush.msra.mxu0 %v1320
  %1480 = vmatpush.msra.mxu0 %v1318
  %1481 = vmatpush.msra.mxu0 %v1316
  %1482 = vmatpush.msra.mxu0 %v1314
  %1483 = vmatpush.msra.mxu0 %v1312
  %1484 = vmatpush.msra.mxu0 %v1310
  %1485 = vmatpush.msra.mxu0 %v1308
  %1486 = vmatpush.msra.mxu0 %v1306
  %1487 = vmatpush.msra.mxu0 %v1304
  %1488 = vmatpush.msra.mxu0 %v1302
  %1489 = vmatpush.msra.mxu0 %v1300
  %1490 = vmatpush.msra.mxu0 %v1298
  %1491 = vmatpush.msra.mxu0 %v1296
  %1492 = vmatpush.msra.mxu0 %v1294
  %1493 = vmatpush.msra.mxu0 %v1292
  %1494 = vmatpush.msra.mxu0 %v1290
  %1495 = vmatmul.f32.gmra.mxu0 %v1063
  %v1496 = vpop.f32.mrf.mxu0
  %v1497 = vadd.f32 %v1477, %v1496
  %1498 = vdwg.mxu0
  %1499 = vmatpush.msra.mxu0 %v1352
  %1500 = vmatpush.msra.mxu0 %v1350
  %1501 = vmatpush.msra.mxu0 %v1348
  %1502 = vmatpush.msra.mxu0 %v1346
  %1503 = vmatpush.msra.mxu0 %v1344
  %1504 = vmatpush.msra.mxu0 %v1342
  %1505 = vmatpush.msra.mxu0 %v1340
  %1506 = vmatpush.msra.mxu0 %v1338
  %1507 = vmatpush.msra.mxu0 %v1336
  %1508 = vmatpush.msra.mxu0 %v1334
  %1509 = vmatpush.msra.mxu0 %v1332
  %1510 = vmatpush.msra.mxu0 %v1330
  %1511 = vmatpush.msra.mxu0 %v1328
  %1512 = vmatpush.msra.mxu0 %v1326
  %1513 = vmatpush.msra.mxu0 %v1324
  %1514 = vmatpush.msra.mxu0 %v1322
  %1515 = vmatmul.f32.gmra.mxu0 %v1223
  %v1516 = vpop.f32.mrf.mxu0
  %v1517 = vadd.f32 %v1497, %v1516
  %1518 = vdwg.mxu0
  %v1519 = vld [vmem:[%s5] sm:$0xff]
  %v1520 = vld [vmem:[%s5 + $0x8] sm:$0xff]
  %v1521 = vld [vmem:[%s5 + $0x10] sm:$0xff]
  %v1522 = vld [vmem:[%s5 + $0x18] sm:$0xff]
  %v1523 = vld [vmem:[%s5 + $0x20] sm:$0xff]
  %v1524 = vld [vmem:[%s5 + $0x28] sm:$0xff]
  %v1525 = vld [vmem:[%s5 + $0x30] sm:$0xff]
  %v1526 = vld [vmem:[%s5 + $0x38] sm:$0xff]
  %v1527 = vld [vmem:[%s5 + $0x40] sm:$0xff]
  %v1528 = vld [vmem:[%s5 + $0x48] sm:$0xff]
  %v1529 = vld [vmem:[%s5 + $0x50] sm:$0xff]
  %v1530 = vld [vmem:[%s5 + $0x58] sm:$0xff]
  %v1531 = vld [vmem:[%s5 + $0x60] sm:$0xff]
  %v1532 = vld [vmem:[%s5 + $0x68] sm:$0xff]
  %v1533 = vld [vmem:[%s5 + $0x70] sm:$0xff]
  %v1534 = vld [vmem:[%s5 + $0x78] sm:$0xff]
  %v1535 = vld [vmem:[%s5 + $0x80] sm:$0xff]
  %v1536 = vld [vmem:[%s5 + $0x88] sm:$0xff]
  %v1537 = vld [vmem:[%s5 + $0x90] sm:$0xff]
  %v1538 = vld [vmem:[%s5 + $0x98] sm:$0xff]
  %v1539 = vld [vmem:[%s5 + $0xa0] sm:$0xff]
  %v1540 = vld [vmem:[%s5 + $0xa8] sm:$0xff]
  %v1541 = vld [vmem:[%s5 + $0xb0] sm:$0xff]
  %v1542 = vld [vmem:[%s5 + $0xb8] sm:$0xff]
  %v1543 = vld [vmem:[%s5 + $0xc0] sm:$0xff]
  %v1544 = vld [vmem:[%s5 + $0xc8] sm:$0xff]
  %v1545 = vld [vmem:[%s5 + $0xd0] sm:$0xff]
  %v1546 = vld [vmem:[%s5 + $0xd8] sm:$0xff]
  %v1547 = vld [vmem:[%s5 + $0xe0] sm:$0xff]
  %v1548 = vld [vmem:[%s5 + $0xe8] sm:$0xff]
  %v1549 = vld [vmem:[%s5 + $0xf0] sm:$0xff]
  %v1550 = vld [vmem:[%s5 + $0xf8] sm:$0xff]
  %v1551 = vld [vmem:[%s6] sm:$0x1]
  %v1553 = vperm.slane %v1551, 0
  %1555 = vmatpush.msra.mxu0 %v1534
  %1556 = vmatpush.msra.mxu0 %v1533
  %1557 = vmatpush.msra.mxu0 %v1532
  %1558 = vmatpush.msra.mxu0 %v1531
  %1559 = vmatpush.msra.mxu0 %v1530
  %1560 = vmatpush.msra.mxu0 %v1529
  %1561 = vmatpush.msra.mxu0 %v1528
  %1562 = vmatpush.msra.mxu0 %v1527
  %1563 = vmatpush.msra.mxu0 %v1526
  %1564 = vmatpush.msra.mxu0 %v1525
  %1565 = vmatpush.msra.mxu0 %v1524
  %1566 = vmatpush.msra.mxu0 %v1523
  %1567 = vmatpush.msra.mxu0 %v1522
  %1568 = vmatpush.msra.mxu0 %v1521
  %1569 = vmatpush.msra.mxu0 %v1520
  %1570 = vmatpush.msra.mxu0 %v1519
  %1571 = vmatmul.f32.gmra.mxu0 %v1437
  %v1572 = vpop.f32.mrf.mxu0
  %v1573 = vadd.f32 %v1553, %v1572
  %1574 = vdwg.mxu0
  %1575 = vmatpush.msra.mxu0 %v1550
  %1576 = vmatpush.msra.mxu0 %v1549
  %1577 = vmatpush.msra.mxu0 %v1548
  %1578 = vmatpush.msra.mxu0 %v1547
  %1579 = vmatpush.msra.mxu0 %v1546
  %1580 = vmatpush.msra.mxu0 %v1545
  %1581 = vmatpush.msra.mxu0 %v1544
  %1582 = vmatpush.msra.mxu0 %v1543
  %1583 = vmatpush.msra.mxu0 %v1542
  %1584 = vmatpush.msra.mxu0 %v1541
  %1585 = vmatpush.msra.mxu0 %v1540
  %1586 = vmatpush.msra.mxu0 %v1539
  %1587 = vmatpush.msra.mxu0 %v1538
  %1588 = vmatpush.msra.mxu0 %v1537
  %1589 = vmatpush.msra.mxu0 %v1536
  %1590 = vmatpush.msra.mxu0 %v1535
  %1591 = vmatmul.f32.gmra.mxu0 %v1517
  %v1592 = vpop.f32.mrf.mxu0
  %v1593 = vadd.f32 %v1573, %v1592
  %1594 = vdwg.mxu0
  %v1595 = vmax.f32 %v1593, 0.0
  %v1596 = vld [vmem:[%s7] sm:$0xff]
  %v1597 = vld [vmem:[%s7 + $0x8] sm:$0xff]
  %v1598 = vld [vmem:[%s7 + $0x10] sm:$0xff]
  %v1599 = vld [vmem:[%s7 + $0x18] sm:$0xff]
  %v1600 = vld [vmem:[%s7 + $0x20] sm:$0xff]
  %v1601 = vld [vmem:[%s7 + $0x28] sm:$0xff]
  %v1602 = vld [vmem:[%s7 + $0x30] sm:$0xff]
  %v1603 = vld [vmem:[%s7 + $0x38] sm:$0xff]
  %v1604 = vld [vmem:[%s7 + $0x40] sm:$0xff]
  %v1605 = vld [vmem:[%s7 + $0x48] sm:$0xff]
  %v1606 = vld [vmem:[%s7 + $0x50] sm:$0xff]
  %v1607 = vld [vmem:[%s7 + $0x58] sm:$0xff]
  %v1608 = vld [vmem:[%s7 + $0x60] sm:$0xff]
  %v1609 = vld [vmem:[%s7 + $0x68] sm:$0xff]
  %v1610 = vld [vmem:[%s7 + $0x70] sm:$0xff]
  %v1611 = vld [vmem:[%s7 + $0x78] sm:$0xff]
  %v1612 = vld [vmem:[%s8] sm:$0x1]
  %v1614 = vperm.slane %v1612, 0
  %1616 = vmatpush.msra.mxu0 %v1611
  %1617 = vmatpush.msra.mxu0 %v1610
  %1618 = vmatpush.msra.mxu0 %v1609
  %1619 = vmatpush.msra.mxu0 %v1608
  %1620 = vmatpush.msra.mxu0 %v1607
  %1621 = vmatpush.msra.mxu0 %v1606
  %1622 = vmatpush.msra.mxu0 %v1605
  %1623 = vmatpush.msra.mxu0 %v1604
  %1624 = vmatpush.msra.mxu0 %v1603
  %1625 = vmatpush.msra.mxu0 %v1602
  %1626 = vmatpush.msra.mxu0 %v1601
  %1627 = vmatpush.msra.mxu0 %v1600
  %1628 = vmatpush.msra.mxu0 %v1599
  %1629 = vmatpush.msra.mxu0 %v1598
  %1630 = vmatpush.msra.mxu0 %v1597
  %1631 = vmatpush.msra.mxu0 %v1596
  %1632 = vmatmul.f32.gmra.mxu0 %v1595
  %v1633 = vpop.f32.mrf.mxu0
  %v1634 = vadd.f32 %v1614, %v1633
  %1635 = vdwg.mxu0
  %v1636 = vmax.f32 %v1634, 0.0
  %v1637 = vld [vmem:[%s9] sm:$0xff]
  %v1638 = vld [vmem:[%s9 + $0x8] sm:$0xff]
  %v1639 = vld [vmem:[%s9 + $0x10] sm:$0xff]
  %v1640 = vld [vmem:[%s9 + $0x18] sm:$0xff]
  %v1641 = vld [vmem:[%s9 + $0x20] sm:$0xff]
  %v1642 = vld [vmem:[%s9 + $0x28] sm:$0xff]
  %v1643 = vld [vmem:[%s9 + $0x30] sm:$0xff]
  %v1644 = vld [vmem:[%s9 + $0x38] sm:$0xff]
  %v1645 = vld [vmem:[#allocation2] sm:$0x1]
  %v1647 = vperm.slane %v1645, 0
  %vm1649 = vcmask 523264
  %v1651 = vsel %vm1649, %v1636, 0
  %1653 = vmatpush.msra.mxu0 0.0
  %1654 = vmatpush.msra.mxu0 0.0
  %1655 = vmatpush.msra.mxu0 0.0
  %1656 = vmatpush.msra.mxu0 0.0
  %1657 = vmatpush.msra.mxu0 0.0
  %1658 = vmatpush.msra.mxu0 0.0
  %1659 = vmatpush.msra.mxu0 0.0
  %1660 = vmatpush.msra.mxu0 0.0
  %1661 = vmatpush.msra.mxu0 %v1644
  %1662 = vmatpush.msra.mxu0 %v1643
  %1663 = vmatpush.msra.mxu0 %v1642
  %1664 = vmatpush.msra.mxu0 %v1641
  %1665 = vmatpush.msra.mxu0 %v1640
  %1666 = vmatpush.msra.mxu0 %v1639
  %1667 = vmatpush.msra.mxu0 %v1638
  %1668 = vmatpush.msra.mxu0 %v1637
  %1669 = vmatmul.f32.gmra.mxu0 %v1651
  %v1670 = vpop.f32.mrf.mxu0
  %v1671 = vadd.f32 %v1647, %v1670
  %1672 = vdwg.mxu0
  %v1673 = vsub.f32 0.0, %v1671
  %v1674 = vmul.f32 %v1673, 1.442695
  %v1675 = vpow.pop %v1674
  %v1676 = vadd.f32 %v1675, 1.0
  %v1677 = vrcp.pop %v1676
  %v1678 = vmul.f32 %v1676, %v1677
  %v1679 = vsub.f32 1.0, %v1678
  %v1680 = vmul.f32 %v1677, %v1679
  %v1681 = vadd.f32 %v1677, %v1680
  %vm1682 = vweird.f32 %v1676
  %vm1683 = vweird.f32 %v1677
  %vm1684 = vmor %vm1682, %vm1683
  %v1685 = vsel %vm1684, %v1677, %v1681
  %v1686 = vand.u32 2147483647, %v1676
  %vm1687 = vcmp.eq.f32.partialorder %v1686, 8.507059e+37
  %v1688 = vand.u32 %v1676, 2147483648
  %v1689 = vor.u32 1.1754944e-38, %v1688
  %v1690 = vsel %vm1687, %v1689, %v1685
  %v1691 = vmul.f32 1.0, %v1690
  %vm1692 = vcmask 1024
  %1693 = vst.msk [vmem:[%s11] sm:$0x3] %vm1692, %v1691
  // Predicated region
  $region46: #{simple1d_cnn_forward.3} parent=0 // pred_check
    _
  $region47: #{simple1d_cnn_forward.3} parent=0 // pred_check_branch
    %1695 = sbr.rel (0) target = $region49
  $region48: #{simple1d_cnn_forward.3} parent=0 // pred_region
    _
  $region49: #{simple1d_cnn_forward.3} parent=0 // pred_fallthru
    _
  // Predicated region
  $region50: #{simple1d_cnn_forward.3} parent=0 // pred_check
    _
  $region51: #{simple1d_cnn_forward.3} parent=0 // pred_check_branch
    %1697 = sbr.rel (0) target = $region53
  $region52: #{simple1d_cnn_forward.3} parent=0 // pred_region
    _
  $region53: #{simple1d_cnn_forward.3} parent=0 // pred_fallthru
    _

</llo_original>
